<compile_context>
chip_gen: v7x
topology: tpu7x:2x2x1
jax: 0.10.0
libtpu: 0.0.40
codegen_flags: <defaults>
</compile_context>

<pallas_src>
import functools

import jax
import jax.numpy as jnp
from jax.experimental import pallas as pl
from jax.experimental.pallas import tpu as pltpu

LANES = 128                      # lane-dense padded conv output width
K_FC = 3136                      # real fc1 in-features (64 * 7 * 7)
K_FC_PAD = 3200                  # padded to 25 * 128
K_FC_TILE = 640                  # 5 K-steps of 5 * 128 lanes
_VMEM_LIMIT = 32 * 1024 * 1024   # fits v7x (64 MiB physical) with headroom


# ---------------------------------------------------------------------------
# Pallas kernels
# ---------------------------------------------------------------------------
def _matmul_bias_relu_kernel(x_ref, w_ref, b_ref, o_ref):
    # bf16 MXU operands, f32 accumulation; bias + ReLU in f32.
    acc = jnp.dot(x_ref[...], w_ref[...], preferred_element_type=jnp.float32)
    o_ref[...] = jnp.maximum(acc + b_ref[...], 0.0).astype(o_ref.dtype)


def _fused_fc_head_kernel(x_ref, w1_ref, b1_ref, w2_ref, b2_ref, o_ref,
                          acc_ref, *, num_actions):
    # Grid axis 0 tiles the fc1 contraction (K). fc1_adv || fc1_val share one
    # matmul: hidden cols [0:512) adv, [512:1024) val.
    k = pl.program_id(0)

    @pl.when(k == 0)
    def _():
        acc_ref[...] = jnp.zeros_like(acc_ref)

    acc_ref[...] += jnp.dot(x_ref[...], w1_ref[...],
                            preferred_element_type=jnp.float32)

    @pl.when(k == pl.num_programs(0) - 1)
    def _():
        h = jnp.maximum(acc_ref[...] + b1_ref[...], 0.0)
        # fc2_adv and fc2_val folded into one lane-dense matmul:
        #   cols [0:A) = advantage, col A = value, cols (A:128) = zero padding.
        z = jnp.dot(h.astype(jnp.bfloat16), w2_ref[...],
                    preferred_element_type=jnp.float32) + b2_ref[...]
        col = jax.lax.broadcasted_iota(jnp.int32, z.shape, 1)
        adv_sum = jnp.sum(jnp.where(col < num_actions, z, 0.0), axis=1,
                          keepdims=True)
        val = jnp.sum(jnp.where(col == num_actions, z, 0.0), axis=1,
                      keepdims=True)
        # q = val + adv - mean(adv); valid in cols [0:A), junk elsewhere
        # (sliced off by the wrapper). Output is 128-wide -> unmasked stores.
        o_ref[...] = (val + z - adv_sum * (1.0 / num_actions)).astype(o_ref.dtype)


# ---------------------------------------------------------------------------
# Pallas wrappers
# ---------------------------------------------------------------------------
def pallas_linear_relu(x, w, b):
    """relu(x @ w + b). x:(M,K) bf16, w:(K,N) bf16, b:(1,N) f32 -> (M,N) bf16."""
    M, K = x.shape
    N = w.shape[1]
    bytes_accessed = int(x.size * x.dtype.itemsize + w.size * w.dtype.itemsize
                         + b.size * b.dtype.itemsize + M * N * 2)
    return pl.pallas_call(
        _matmul_bias_relu_kernel,
        out_shape=jax.ShapeDtypeStruct((M, N), jnp.bfloat16),
        grid=(1,),
        in_specs=[pl.BlockSpec((M, K), lambda i: (0, 0)),
                  pl.BlockSpec((K, N), lambda i: (0, 0)),
                  pl.BlockSpec((1, N), lambda i: (0, 0))],
        out_specs=pl.BlockSpec((M, N), lambda i: (0, 0)),
        compiler_params=pltpu.CompilerParams(
            dimension_semantics=("arbitrary",),
            vmem_limit_bytes=_VMEM_LIMIT),
        cost_estimate=pl.CostEstimate(flops=2 * M * K * N, transcendentals=0,
                                      bytes_accessed=bytes_accessed),
    )(x, w, b)


def pallas_fused_fc_head(flat, w1, b1, w2, b2, num_actions):
    """K-pipelined fc1_adv/fc1_val + fused dueling head. Returns (B, A) f32."""
    B = flat.shape[0]
    # Pad K 3136 -> 3200 so the K grid axis tiles into 128-lane-aligned chunks
    # (w1 rows were zero-padded at prep time, so the extra columns contribute 0).
    flat = jnp.pad(flat, ((0, 0), (0, K_FC_PAD - flat.shape[1])))
    H2 = w1.shape[1]          # 1024 = 512 adv + 512 val
    NP = w2.shape[1]          # 128 (padded: [adv | val | zeros])
    n_k = K_FC_PAD // K_FC_TILE
    kern = functools.partial(_fused_fc_head_kernel, num_actions=num_actions)
    flops = 2 * B * K_FC_PAD * H2 + 2 * B * H2 * NP
    bytes_accessed = int(flat.size * 2 + w1.size * 2 + b1.size * 4
                         + w2.size * 2 + b2.size * 4 + B * NP * 4)
    out = pl.pallas_call(
        kern,
        out_shape=jax.ShapeDtypeStruct((B, NP), jnp.float32),
        grid=(n_k,),
        in_specs=[pl.BlockSpec((B, K_FC_TILE), lambda k: (0, k)),
                  pl.BlockSpec((K_FC_TILE, H2), lambda k: (k, 0)),
                  pl.BlockSpec((1, H2), lambda k: (0, 0)),
                  pl.BlockSpec((H2, NP), lambda k: (0, 0)),
                  pl.BlockSpec((1, NP), lambda k: (0, 0))],
        out_specs=pl.BlockSpec((B, NP), lambda k: (0, 0)),
        scratch_shapes=[pltpu.VMEM((B, H2), jnp.float32)],
        compiler_params=pltpu.CompilerParams(
            dimension_semantics=("arbitrary",),
            vmem_limit_bytes=_VMEM_LIMIT),
        cost_estimate=pl.CostEstimate(flops=flops, transcendentals=0,
                                      bytes_accessed=bytes_accessed),
    )(flat, w1, b1, w2, b2)
    return out[:, :num_actions]


# ---------------------------------------------------------------------------
# Conv via NHWC im2col + Pallas matmul (lane-dense padded output channels)
# ---------------------------------------------------------------------------
def conv_relu_pallas(x, w2d, b, *, kh, kw, stride):
    """x: NHWC (B,H,W,C) bf16 with the REAL channel count C.
    w2d: (kh*kw*C, 128) bf16 (feature order (i,j,c)).
    Returns NHWC (B,Ho,Wo,128) bf16 (channels beyond the real ones are zero)."""
    B, H, W, C = x.shape
    Ho = (H - kh) // stride + 1
    Wo = (W - kw) // stride + 1
    cols = []
    for i in range(kh):
        for j in range(kw):
            cols.append(x[:, i:i + stride * Ho:stride,
                          j:j + stride * Wo:stride, :])
    p = jnp.concatenate(cols, axis=-1)                # (B,Ho,Wo,kh*kw*C), (i,j,c)
    p = p.reshape(B * Ho * Wo, kh * kw * C)
    M = B * Ho * Wo
    Mp = ((M + 7) // 8) * 8                           # sublane-align M
    if Mp != M:
        p = jnp.pad(p, ((0, Mp - M), (0, 0)))
    out = pallas_linear_relu(p, w2d, b)
    if Mp != M:
        out = out[:M]
    return out.reshape(B, Ho, Wo, w2d.shape[1])


# ---------------------------------------------------------------------------
# Parameters (deterministic, PyTorch-shaped fan-in uniform init)
# ---------------------------------------------------------------------------
def init_params(key, in_channels, num_actions):
    def u(k, shape, fan_in):
        bound = 1.0 / (fan_in ** 0.5)
        return jax.random.uniform(k, shape, jnp.float32, -bound, bound)

    ks = jax.random.split(key, 14)
    p = {}
    p['conv1_w'] = u(ks[0], (32, in_channels, 8, 8), in_channels * 8 * 8)
    p['conv1_b'] = u(ks[1], (1, 32), in_channels * 8 * 8)
    p['conv2_w'] = u(ks[2], (64, 32, 4, 4), 32 * 4 * 4)
    p['conv2_b'] = u(ks[3], (1, 64), 32 * 4 * 4)
    p['conv3_w'] = u(ks[4], (64, 64, 3, 3), 64 * 3 * 3)
    p['conv3_b'] = u(ks[5], (1, 64), 64 * 3 * 3)
    p['fc1_adv_w'] = u(ks[6], (3136, 512), 3136)
    p['fc1_adv_b'] = u(ks[7], (1, 512), 3136)
    p['fc1_val_w'] = u(ks[8], (3136, 512), 3136)
    p['fc1_val_b'] = u(ks[9], (1, 512), 3136)
    p['fc2_adv_w'] = u(ks[10], (512, num_actions), 512)
    p['fc2_adv_b'] = u(ks[11], (1, num_actions), 512)
    p['fc2_val_w'] = u(ks[12], (512, 1), 512)
    p['fc2_val_b'] = u(ks[13], (1, 1), 512)
    return p


def prepare_kernel_params(p, num_actions):
    """One-time re-layout of torch-style params into kernel-ready tensors."""
    def prep_conv(w, b):
        # Real (unpadded) contraction dim; only the OUTPUT channels are padded
        # to 128 lanes (with zero weights AND zero bias -> padding stays zero).
        O, C, kh, kw = w.shape
        wt = jnp.transpose(w, (2, 3, 1, 0)).reshape(kh * kw * C, O)   # (i,j,c)
        wt = jnp.pad(wt, ((0, 0), (0, LANES - O))).astype(jnp.bfloat16)
        bb = jnp.pad(b, ((0, 0), (0, LANES - O))).astype(jnp.float32)
        return wt, bb

    kp = {}
    kp['c1_w'], kp['c1_b'] = prep_conv(p['conv1_w'], p['conv1_b'])   # K=256
    kp['c2_w'], kp['c2_b'] = prep_conv(p['conv2_w'], p['conv2_b'])   # K=512
    kp['c3_w'], kp['c3_b'] = prep_conv(p['conv3_w'], p['conv3_b'])   # K=576

    # fc1 rows: torch NCHW flatten order (c,h,w) -> NHWC flatten order (h,w,c).
    def perm_fc1(w):
        return w.reshape(64, 7, 7, w.shape[1]).transpose(1, 2, 0, 3) \
                .reshape(64 * 7 * 7, w.shape[1])

    w1 = jnp.concatenate([perm_fc1(p['fc1_adv_w']), perm_fc1(p['fc1_val_w'])],
                         axis=1)                                     # (3136, 1024)
    # Zero-pad K to 3200 so the FC-head kernel can tile it into 5 x 640.
    kp['fc1_w'] = jnp.pad(w1, ((0, K_FC_PAD - K_FC), (0, 0))).astype(jnp.bfloat16)
    kp['fc1_b'] = jnp.concatenate([p['fc1_adv_b'], p['fc1_val_b']],
                                  axis=1).astype(jnp.float32)        # (1, 1024)

    # Fold fc2_val into fc2_adv: block-diagonal (1024, A+1) padded to 128 lanes.
    Hh = p['fc2_adv_w'].shape[0]
    A = num_actions
    w2 = jnp.zeros((2 * Hh, LANES), jnp.float32)
    w2 = w2.at[:Hh, :A].set(p['fc2_adv_w'])
    w2 = w2.at[Hh:, A:A + 1].set(p['fc2_val_w'])
    kp['fc2_w'] = w2.astype(jnp.bfloat16)                            # (1024, 128)
    b2 = jnp.zeros((1, LANES), jnp.float32)
    b2 = b2.at[:, :A].set(p['fc2_adv_b'])
    b2 = b2.at[:, A:A + 1].set(p['fc2_val_b'])
    kp['fc2_b'] = b2                                                 # (1, 128)
    return kp


# ---------------------------------------------------------------------------
# Forward passes
# ---------------------------------------------------------------------------
def dueling_dqn_forward(kp, x, num_actions):
    # NCHW -> NHWC once, cast to bf16 once; everything downstream stays
    # NHWC/bf16 (f32 accumulation inside the kernels).
    h = jnp.transpose(x, (0, 2, 3, 1)).astype(jnp.bfloat16)
    h = conv_relu_pallas(h, kp['c1_w'], kp['c1_b'],
                         kh=8, kw=8, stride=4)                # (B,20,20,128)
    # Slice back to the real channel count before building the next taps so
    # the padded lanes never enter the next conv's contraction dim.
    h = conv_relu_pallas(h[..., :32], kp['c2_w'], kp['c2_b'],
                         kh=4, kw=4, stride=2)                # (B, 9, 9,128)
    h = conv_relu_pallas(h[..., :64], kp['c3_w'], kp['c3_b'],
                         kh=3, kw=3, stride=1)                # (B, 7, 7,128)
    B = h.shape[0]
    # Drop the padded channels (conv3 really has 64) and flatten in NHWC order;
    # fc1 weight rows were permuted to match this ordering at prep time.
    flat = h[..., :64].reshape(B, 7 * 7 * 64)                 # (B, 3136) bf16
    return pallas_fused_fc_head(flat, kp['fc1_w'], kp['fc1_b'],
                                kp['fc2_w'], kp['fc2_b'], num_actions)


def reference_forward(params, x):
    def conv(h, w, b, s):
        y = jax.lax.conv_general_dilated(
            h, w, (s, s), 'VALID',
            dimension_numbers=('NCHW', 'OIHW', 'NCHW'))
        return jax.nn.relu(y + b.reshape(1, -1, 1, 1))

    h = conv(x, params['conv1_w'], params['conv1_b'], 4)
    h = conv(h, params['conv2_w'], params['conv2_b'], 2)
    h = conv(h, params['conv3_w'], params['conv3_b'], 1)
    flat = h.reshape(h.shape[0], -1)
    adv_h = jax.nn.relu(flat @ params['fc1_adv_w'] + params['fc1_adv_b'])
    val_h = jax.nn.relu(flat @ params['fc1_val_w'] + params['fc1_val_b'])
    adv = adv_h @ params['fc2_adv_w'] + params['fc2_adv_b']
    val = val_h @ params['fc2_val_w'] + params['fc2_val_b']
    return val + adv - jnp.mean(adv, axis=1, keepdims=True)


# ---------------------------------------------------------------------------
if __name__ == "__main__":
    in_channels, num_actions = 4, 6
    batch = 2
    # 84x84 spatial size is forced by fc1 expecting 3136 = 64*7*7 features.
    key = jax.random.PRNGKey(0)
    k_x, k_p = jax.random.split(key)
    x = jax.random.uniform(k_x, (batch, in_channels, 84, 84), jnp.float32)
    params = init_params(k_p, in_channels, num_actions)
    kparams = prepare_kernel_params(params, num_actions)

    fwd = jax.jit(functools.partial(dueling_dqn_forward,
                                    num_actions=num_actions))
    out = jax.block_until_ready(fwd(kparams, x))

    ref = jax.block_until_ready(jax.jit(reference_forward)(params, x))
    assert out.shape == (batch, num_actions)
    # Matmul operands are bf16 (f32 accumulation), so compare against the f32
    # reference with a bf16-appropriate tolerance.
    assert jnp.allclose(out, ref, rtol=1e-2, atol=1e-2), "mismatch vs reference"

    print("KERNEL_OK")
</pallas_src>

<mosaic_0001>
module attributes {stable_mosaic.version = 11 : i64} {
  func.func @_matmul_bias_relu_kernel(%arg0: i32, %arg1: memref<800x256xbf16, #tpu.memory_space<vmem>>, %arg2: memref<256x128xbf16, #tpu.memory_space<vmem>>, %arg3: memref<1x128xf32, #tpu.memory_space<vmem>>, %arg4: memref<800x128xbf16, #tpu.memory_space<vmem>>) attributes {dimension_semantics = [#tpu.dimension_semantics<arbitrary>], iteration_bounds = array<i64: 1>, scalar_prefetch = 0 : i64, scratch_operands = 0 : i64, tpu.core_type = #tpu.core_type<tc>, window_params = [{pipeline_mode = #tpu.pipeline_mode<synchronous>, transform_indices = @transform_0, window_bounds = array<i64: 800, 256>}, {pipeline_mode = #tpu.pipeline_mode<synchronous>, transform_indices = @transform_1, window_bounds = array<i64: 256, 128>}, {pipeline_mode = #tpu.pipeline_mode<synchronous>, transform_indices = @transform_2, window_bounds = array<i64: 1, 128>}, {pipeline_mode = #tpu.pipeline_mode<synchronous>, transform_indices = @transform_3, window_bounds = array<i64: 800, 128>}]} {
    %c0 = arith.constant 0 : index
    %c0_0 = arith.constant 0 : index
    %0 = vector.load %arg1[%c0, %c0_0] : memref<800x256xbf16, #tpu.memory_space<vmem>>, vector<800x256xbf16>
    %c0_1 = arith.constant 0 : index
    %c0_2 = arith.constant 0 : index
    %1 = vector.load %arg2[%c0_1, %c0_2] : memref<256x128xbf16, #tpu.memory_space<vmem>>, vector<256x128xbf16>
    %cst = arith.constant dense<0.000000e+00> : vector<800x128xf32>
    %2 = tpu.matmul %0, %1, %cst {dimension_numbers = #tpu.dot_dimension_numbers<[1], [0], [0], [1], [0, 0, 1, 1], [], []>} : vector<800x256xbf16>, vector<256x128xbf16>, vector<800x128xf32> -> vector<800x128xf32>
    %c0_3 = arith.constant 0 : index
    %c0_4 = arith.constant 0 : index
    %3 = vector.load %arg3[%c0_3, %c0_4] : memref<1x128xf32, #tpu.memory_space<vmem>>, vector<1x128xf32>
    %4 = vector.broadcast %3 : vector<1x128xf32> to vector<800x128xf32>
    %5 = arith.addf %2, %4 : vector<800x128xf32>
    %cst_5 = arith.constant 0.000000e+00 : f32
    %6 = vector.broadcast %cst_5 : f32 to vector<800x128xf32>
    %7 = arith.maximumf %5, %6 : vector<800x128xf32>
    %8 = arith.truncf %7 : vector<800x128xf32> to vector<800x128xbf16>
    %c0_6 = arith.constant 0 : index
    %c0_7 = arith.constant 0 : index
    %9 = vector.load %arg4[%c0_6, %c0_7] : memref<800x128xbf16, #tpu.memory_space<vmem>>, vector<800x128xbf16>
    tpu.vector_store %arg4[%c0_6, %c0_7], %8 {strides = array<i32>} : memref<800x128xbf16, #tpu.memory_space<vmem>>, vector<800x128xbf16>,
    return
  }
  func.func @transform_0(%arg0: i32) -> (i32, i32) {
    %c0_i32 = arith.constant 0 : i32
    %c0_i32_0 = arith.constant 0 : i32
    %c0_i32_1 = arith.constant 0 : i32
    return %c0_i32, %c0_i32_0 : i32, i32
  }
  func.func @transform_1(%arg0: i32) -> (i32, i32) {
    %c0_i32 = arith.constant 0 : i32
    %c0_i32_0 = arith.constant 0 : i32
    %c0_i32_1 = arith.constant 0 : i32
    return %c0_i32, %c0_i32_0 : i32, i32
  }
  func.func @transform_2(%arg0: i32) -> (i32, i32) {
    %c0_i32 = arith.constant 0 : i32
    %c0_i32_0 = arith.constant 0 : i32
    %c0_i32_1 = arith.constant 0 : i32
    return %c0_i32, %c0_i32_0 : i32, i32
  }
  func.func @transform_3(%arg0: i32) -> (i32, i32) {
    %c0_i32 = arith.constant 0 : i32
    %c0_i32_0 = arith.constant 0 : i32
    %c0_i32_1 = arith.constant 0 : i32
    return %c0_i32, %c0_i32_0 : i32, i32
  }
}

module attributes {stable_mosaic.version = 11 : i64} {
  func.func @_matmul_bias_relu_kernel(%arg0: i32, %arg1: memref<168x512xbf16, #tpu.memory_space<vmem>>, %arg2: memref<512x128xbf16, #tpu.memory_space<vmem>>, %arg3: memref<1x128xf32, #tpu.memory_space<vmem>>, %arg4: memref<168x128xbf16, #tpu.memory_space<vmem>>) attributes {dimension_semantics = [#tpu.dimension_semantics<arbitrary>], iteration_bounds = array<i64: 1>, scalar_prefetch = 0 : i64, scratch_operands = 0 : i64, tpu.core_type = #tpu.core_type<tc>, window_params = [{pipeline_mode = #tpu.pipeline_mode<synchronous>, transform_indices = @transform_0, window_bounds = array<i64: 168, 512>}, {pipeline_mode = #tpu.pipeline_mode<synchronous>, transform_indices = @transform_1, window_bounds = array<i64: 512, 128>}, {pipeline_mode = #tpu.pipeline_mode<synchronous>, transform_indices = @transform_2, window_bounds = array<i64: 1, 128>}, {pipeline_mode = #tpu.pipeline_mode<synchronous>, transform_indices = @transform_3, window_bounds = array<i64: 168, 128>}]} {
    %c0 = arith.constant 0 : index
    %c0_0 = arith.constant 0 : index
    %0 = vector.load %arg1[%c0, %c0_0] : memref<168x512xbf16, #tpu.memory_space<vmem>>, vector<168x512xbf16>
    %c0_1 = arith.constant 0 : index
    %c0_2 = arith.constant 0 : index
    %1 = vector.load %arg2[%c0_1, %c0_2] : memref<512x128xbf16, #tpu.memory_space<vmem>>, vector<512x128xbf16>
    %cst = arith.constant dense<0.000000e+00> : vector<168x128xf32>
    %2 = tpu.matmul %0, %1, %cst {dimension_numbers = #tpu.dot_dimension_numbers<[1], [0], [0], [1], [0, 0, 1, 1], [], []>} : vector<168x512xbf16>, vector<512x128xbf16>, vector<168x128xf32> -> vector<168x128xf32>
    %c0_3 = arith.constant 0 : index
    %c0_4 = arith.constant 0 : index
    %3 = vector.load %arg3[%c0_3, %c0_4] : memref<1x128xf32, #tpu.memory_space<vmem>>, vector<1x128xf32>
    %4 = vector.broadcast %3 : vector<1x128xf32> to vector<168x128xf32>
    %5 = arith.addf %2, %4 : vector<168x128xf32>
    %cst_5 = arith.constant 0.000000e+00 : f32
    %6 = vector.broadcast %cst_5 : f32 to vector<168x128xf32>
    %7 = arith.maximumf %5, %6 : vector<168x128xf32>
    %8 = arith.truncf %7 : vector<168x128xf32> to vector<168x128xbf16>
    %c0_6 = arith.constant 0 : index
    %c0_7 = arith.constant 0 : index
    %9 = vector.load %arg4[%c0_6, %c0_7] : memref<168x128xbf16, #tpu.memory_space<vmem>>, vector<168x128xbf16>
    tpu.vector_store %arg4[%c0_6, %c0_7], %8 {strides = array<i32>} : memref<168x128xbf16, #tpu.memory_space<vmem>>, vector<168x128xbf16>,
    return
  }
  func.func @transform_0(%arg0: i32) -> (i32, i32) {
    %c0_i32 = arith.constant 0 : i32
    %c0_i32_0 = arith.constant 0 : i32
    %c0_i32_1 = arith.constant 0 : i32
    return %c0_i32, %c0_i32_0 : i32, i32
  }
  func.func @transform_1(%arg0: i32) -> (i32, i32) {
    %c0_i32 = arith.constant 0 : i32
    %c0_i32_0 = arith.constant 0 : i32
    %c0_i32_1 = arith.constant 0 : i32
    return %c0_i32, %c0_i32_0 : i32, i32
  }
  func.func @transform_2(%arg0: i32) -> (i32, i32) {
    %c0_i32 = arith.constant 0 : i32
    %c0_i32_0 = arith.constant 0 : i32
    %c0_i32_1 = arith.constant 0 : i32
    return %c0_i32, %c0_i32_0 : i32, i32
  }
  func.func @transform_3(%arg0: i32) -> (i32, i32) {
    %c0_i32 = arith.constant 0 : i32
    %c0_i32_0 = arith.constant 0 : i32
    %c0_i32_1 = arith.constant 0 : i32
    return %c0_i32, %c0_i32_0 : i32, i32
  }
}

module attributes {stable_mosaic.version = 11 : i64} {
  func.func @_matmul_bias_relu_kernel(%arg0: i32, %arg1: memref<104x576xbf16, #tpu.memory_space<vmem>>, %arg2: memref<576x128xbf16, #tpu.memory_space<vmem>>, %arg3: memref<1x128xf32, #tpu.memory_space<vmem>>, %arg4: memref<104x128xbf16, #tpu.memory_space<vmem>>) attributes {dimension_semantics = [#tpu.dimension_semantics<arbitrary>], iteration_bounds = array<i64: 1>, scalar_prefetch = 0 : i64, scratch_operands = 0 : i64, tpu.core_type = #tpu.core_type<tc>, window_params = [{pipeline_mode = #tpu.pipeline_mode<synchronous>, transform_indices = @transform_0, window_bounds = array<i64: 104, 576>}, {pipeline_mode = #tpu.pipeline_mode<synchronous>, transform_indices = @transform_1, window_bounds = array<i64: 576, 128>}, {pipeline_mode = #tpu.pipeline_mode<synchronous>, transform_indices = @transform_2, window_bounds = array<i64: 1, 128>}, {pipeline_mode = #tpu.pipeline_mode<synchronous>, transform_indices = @transform_3, window_bounds = array<i64: 104, 128>}]} {
    %c0 = arith.constant 0 : index
    %c0_0 = arith.constant 0 : index
    %0 = vector.load %arg1[%c0, %c0_0] : memref<104x576xbf16, #tpu.memory_space<vmem>>, vector<104x576xbf16>
    %c0_1 = arith.constant 0 : index
    %c0_2 = arith.constant 0 : index
    %1 = vector.load %arg2[%c0_1, %c0_2] : memref<576x128xbf16, #tpu.memory_space<vmem>>, vector<576x128xbf16>
    %cst = arith.constant dense<0.000000e+00> : vector<104x128xf32>
    %2 = tpu.matmul %0, %1, %cst {dimension_numbers = #tpu.dot_dimension_numbers<[1], [0], [0], [1], [0, 0, 1, 1], [], []>} : vector<104x576xbf16>, vector<576x128xbf16>, vector<104x128xf32> -> vector<104x128xf32>
    %c0_3 = arith.constant 0 : index
    %c0_4 = arith.constant 0 : index
    %3 = vector.load %arg3[%c0_3, %c0_4] : memref<1x128xf32, #tpu.memory_space<vmem>>, vector<1x128xf32>
    %4 = vector.broadcast %3 : vector<1x128xf32> to vector<104x128xf32>
    %5 = arith.addf %2, %4 : vector<104x128xf32>
    %cst_5 = arith.constant 0.000000e+00 : f32
    %6 = vector.broadcast %cst_5 : f32 to vector<104x128xf32>
    %7 = arith.maximumf %5, %6 : vector<104x128xf32>
    %8 = arith.truncf %7 : vector<104x128xf32> to vector<104x128xbf16>
    %c0_6 = arith.constant 0 : index
    %c0_7 = arith.constant 0 : index
    %9 = vector.load %arg4[%c0_6, %c0_7] : memref<104x128xbf16, #tpu.memory_space<vmem>>, vector<104x128xbf16>
    tpu.vector_store %arg4[%c0_6, %c0_7], %8 {strides = array<i32>} : memref<104x128xbf16, #tpu.memory_space<vmem>>, vector<104x128xbf16>,
    return
  }
  func.func @transform_0(%arg0: i32) -> (i32, i32) {
    %c0_i32 = arith.constant 0 : i32
    %c0_i32_0 = arith.constant 0 : i32
    %c0_i32_1 = arith.constant 0 : i32
    return %c0_i32, %c0_i32_0 : i32, i32
  }
  func.func @transform_1(%arg0: i32) -> (i32, i32) {
    %c0_i32 = arith.constant 0 : i32
    %c0_i32_0 = arith.constant 0 : i32
    %c0_i32_1 = arith.constant 0 : i32
    return %c0_i32, %c0_i32_0 : i32, i32
  }
  func.func @transform_2(%arg0: i32) -> (i32, i32) {
    %c0_i32 = arith.constant 0 : i32
    %c0_i32_0 = arith.constant 0 : i32
    %c0_i32_1 = arith.constant 0 : i32
    return %c0_i32, %c0_i32_0 : i32, i32
  }
  func.func @transform_3(%arg0: i32) -> (i32, i32) {
    %c0_i32 = arith.constant 0 : i32
    %c0_i32_0 = arith.constant 0 : i32
    %c0_i32_1 = arith.constant 0 : i32
    return %c0_i32, %c0_i32_0 : i32, i32
  }
}

module attributes {stable_mosaic.version = 11 : i64} {
  func.func @_fused_fc_head_kernel(%arg0: i32, %arg1: memref<2x640xbf16, #tpu.memory_space<vmem>>, %arg2: memref<640x1024xbf16, #tpu.memory_space<vmem>>, %arg3: memref<1x1024xf32, #tpu.memory_space<vmem>>, %arg4: memref<1024x128xbf16, #tpu.memory_space<vmem>>, %arg5: memref<1x128xf32, #tpu.memory_space<vmem>>, %arg6: memref<2x128xf32, #tpu.memory_space<vmem>>, %arg7: memref<2x1024xf32, #tpu.memory_space<vmem>>) attributes {dimension_semantics = [#tpu.dimension_semantics<arbitrary>], iteration_bounds = array<i64: 5>, scalar_prefetch = 0 : i64, scratch_operands = 1 : i64, tpu.core_type = #tpu.core_type<tc>, window_params = [{transform_indices = @transform_0, window_bounds = array<i64: 2, 640>}, {transform_indices = @transform_1, window_bounds = array<i64: 640, 1024>}, {pipeline_mode = #tpu.pipeline_mode<synchronous>, transform_indices = @transform_2, window_bounds = array<i64: 1, 1024>}, {pipeline_mode = #tpu.pipeline_mode<synchronous>, transform_indices = @transform_3, window_bounds = array<i64: 1024, 128>}, {pipeline_mode = #tpu.pipeline_mode<synchronous>, transform_indices = @transform_4, window_bounds = array<i64: 1, 128>}, {pipeline_mode = #tpu.pipeline_mode<synchronous>, transform_indices = @transform_5, window_bounds = array<i64: 2, 128>}]} {
    %c0_i32 = arith.constant 0 : i32
    %0 = arith.cmpi eq, %arg0, %c0_i32 : i32
    %1 = arith.extui %0 : i1 to i32
    %c0_i32_0 = arith.constant 0 : i32
    %2 = arith.cmpi ne, %1, %c0_i32_0 : i32
    scf.if %2 {
      %cst_9 = arith.constant 0.000000e+00 : f32
      %12 = vector.broadcast %cst_9 : f32 to vector<2x1024xf32>
      %c0_10 = arith.constant 0 : index
      %c0_11 = arith.constant 0 : index
      %13 = vector.load %arg7[%c0_10, %c0_11] : memref<2x1024xf32, #tpu.memory_space<vmem>>, vector<2x1024xf32>
      tpu.vector_store %arg7[%c0_10, %c0_11], %12 {strides = array<i32>} : memref<2x1024xf32, #tpu.memory_space<vmem>>, vector<2x1024xf32>,
    } else {
    }
    %c0 = arith.constant 0 : index
    %c0_1 = arith.constant 0 : index
    %3 = vector.load %arg7[%c0, %c0_1] : memref<2x1024xf32, #tpu.memory_space<vmem>>, vector<2x1024xf32>
    %c0_2 = arith.constant 0 : index
    %c0_3 = arith.constant 0 : index
    %4 = vector.load %arg1[%c0_2, %c0_3] : memref<2x640xbf16, #tpu.memory_space<vmem>>, vector<2x640xbf16>
    %c0_4 = arith.constant 0 : index
    %c0_5 = arith.constant 0 : index
    %5 = vector.load %arg2[%c0_4, %c0_5] : memref<640x1024xbf16, #tpu.memory_space<vmem>>, vector<640x1024xbf16>
    %cst = arith.constant dense<0.000000e+00> : vector<2x1024xf32>
    %6 = tpu.matmul %4, %5, %cst {dimension_numbers = #tpu.dot_dimension_numbers<[1], [0], [0], [1], [0, 0, 1, 1], [], []>} : vector<2x640xbf16>, vector<640x1024xbf16>, vector<2x1024xf32> -> vector<2x1024xf32>
    %7 = arith.addf %3, %6 : vector<2x1024xf32>
    %c0_6 = arith.constant 0 : index
    %c0_7 = arith.constant 0 : index
    %8 = vector.load %arg7[%c0_6, %c0_7] : memref<2x1024xf32, #tpu.memory_space<vmem>>, vector<2x1024xf32>
    tpu.vector_store %arg7[%c0_6, %c0_7], %7 {strides = array<i32>} : memref<2x1024xf32, #tpu.memory_space<vmem>>, vector<2x1024xf32>,
    %c4_i32 = arith.constant 4 : i32
    %9 = arith.cmpi eq, %arg0, %c4_i32 : i32
    %10 = arith.extui %9 : i1 to i32
    %c0_i32_8 = arith.constant 0 : i32
    %11 = arith.cmpi ne, %10, %c0_i32_8 : i32
    scf.if %11 {
      %c0_9 = arith.constant 0 : index
      %c0_10 = arith.constant 0 : index
      %12 = vector.load %arg7[%c0_9, %c0_10] : memref<2x1024xf32, #tpu.memory_space<vmem>>, vector<2x1024xf32>
      %c0_11 = arith.constant 0 : index
      %c0_12 = arith.constant 0 : index
      %13 = vector.load %arg3[%c0_11, %c0_12] : memref<1x1024xf32, #tpu.memory_space<vmem>>, vector<1x1024xf32>
      %14 = vector.broadcast %13 : vector<1x1024xf32> to vector<2x1024xf32>
      %15 = arith.addf %12, %14 : vector<2x1024xf32>
      %cst_13 = arith.constant 0.000000e+00 : f32
      %16 = vector.broadcast %cst_13 : f32 to vector<2x1024xf32>
      %17 = arith.maximumf %15, %16 : vector<2x1024xf32>
      %18 = arith.truncf %17 : vector<2x1024xf32> to vector<2x1024xbf16>
      %c0_14 = arith.constant 0 : index
      %c0_15 = arith.constant 0 : index
      %19 = vector.load %arg4[%c0_14, %c0_15] : memref<1024x128xbf16, #tpu.memory_space<vmem>>, vector<1024x128xbf16>
      %cst_16 = arith.constant dense<0.000000e+00> : vector<2x128xf32>
      %20 = tpu.matmul %18, %19, %cst_16 {dimension_numbers = #tpu.dot_dimension_numbers<[1], [0], [0], [1], [0, 0, 1, 1], [], []>} : vector<2x1024xbf16>, vector<1024x128xbf16>, vector<2x128xf32> -> vector<2x128xf32>
      %c0_17 = arith.constant 0 : index
      %c0_18 = arith.constant 0 : index
      %21 = vector.load %arg5[%c0_17, %c0_18] : memref<1x128xf32, #tpu.memory_space<vmem>>, vector<1x128xf32>
      %22 = vector.broadcast %21 : vector<1x128xf32> to vector<2x128xf32>
      %23 = arith.addf %20, %22 : vector<2x128xf32>
      %24 = tpu.iota {dimensions = array<i32: 1>} : vector<2x128xi32>
      %c6_i32 = arith.constant 6 : i32
      %25 = vector.broadcast %c6_i32 : i32 to vector<2x128xi32>
      %26 = arith.cmpi slt, %24, %25 : vector<2x128xi32>
      %cst_19 = arith.constant 0.000000e+00 : f32
      %27 = vector.broadcast %cst_19 : f32 to vector<2x128xf32>
      %28 = arith.select %26, %23, %27 : vector<2x128xi1>, vector<2x128xf32>
      %cst_20 = arith.constant dense<0.000000e+00> : vector<2xf32>
      %29 = vector.multi_reduction <add>, %28, %cst_20 [1] : vector<2x128xf32> to vector<2xf32>
      %30 = vector.shape_cast %29 : vector<2xf32> to vector<2x1xf32>
      %c6_i32_21 = arith.constant 6 : i32
      %31 = vector.broadcast %c6_i32_21 : i32 to vector<2x128xi32>
      %32 = arith.cmpi eq, %24, %31 : vector<2x128xi32>
      %cst_22 = arith.constant 0.000000e+00 : f32
      %33 = vector.broadcast %cst_22 : f32 to vector<2x128xf32>
      %34 = arith.select %32, %23, %33 : vector<2x128xi1>, vector<2x128xf32>
      %cst_23 = arith.constant dense<0.000000e+00> : vector<2xf32>
      %35 = vector.multi_reduction <add>, %34, %cst_23 [1] : vector<2x128xf32> to vector<2xf32>
      %36 = vector.shape_cast %35 : vector<2xf32> to vector<2x1xf32>
      %37 = vector.broadcast %36 : vector<2x1xf32> to vector<2x128xf32>
      %38 = arith.addf %37, %23 : vector<2x128xf32>
      %cst_24 = arith.constant 0.166666672 : f32
      %39 = vector.broadcast %cst_24 : f32 to vector<2x1xf32>
      %40 = arith.mulf %30, %39 : vector<2x1xf32>
      %41 = vector.broadcast %40 : vector<2x1xf32> to vector<2x128xf32>
      %42 = arith.subf %38, %41 : vector<2x128xf32>
      %c0_25 = arith.constant 0 : index
      %c0_26 = arith.constant 0 : index
      %43 = vector.load %arg6[%c0_25, %c0_26] : memref<2x128xf32, #tpu.memory_space<vmem>>, vector<2x128xf32>
      tpu.vector_store %arg6[%c0_25, %c0_26], %42 {strides = array<i32>} : memref<2x128xf32, #tpu.memory_space<vmem>>, vector<2x128xf32>,
    } else {
    }
    return
  }
  func.func @transform_0(%arg0: i32) -> (i32, i32) {
    %c0_i32 = arith.constant 0 : i32
    %c0_i32_0 = arith.constant 0 : i32
    return %c0_i32, %arg0 : i32, i32
  }
  func.func @transform_1(%arg0: i32) -> (i32, i32) {
    %c0_i32 = arith.constant 0 : i32
    %c0_i32_0 = arith.constant 0 : i32
    return %arg0, %c0_i32 : i32, i32
  }
  func.func @transform_2(%arg0: i32) -> (i32, i32) {
    %c0_i32 = arith.constant 0 : i32
    %c0_i32_0 = arith.constant 0 : i32
    %c0_i32_1 = arith.constant 0 : i32
    return %c0_i32, %c0_i32_0 : i32, i32
  }
  func.func @transform_3(%arg0: i32) -> (i32, i32) {
    %c0_i32 = arith.constant 0 : i32
    %c0_i32_0 = arith.constant 0 : i32
    %c0_i32_1 = arith.constant 0 : i32
    return %c0_i32, %c0_i32_0 : i32, i32
  }
  func.func @transform_4(%arg0: i32) -> (i32, i32) {
    %c0_i32 = arith.constant 0 : i32
    %c0_i32_0 = arith.constant 0 : i32
    %c0_i32_1 = arith.constant 0 : i32
    return %c0_i32, %c0_i32_0 : i32, i32
  }
  func.func @transform_5(%arg0: i32) -> (i32, i32) {
    %c0_i32 = arith.constant 0 : i32
    %c0_i32_0 = arith.constant 0 : i32
    %c0_i32_1 = arith.constant 0 : i32
    return %c0_i32, %c0_i32_0 : i32, i32
  }
}

</mosaic_0001>

<llo_original>
// kernel: dueling_dqn_forward.4
$region0: #{dueling_dqn_forward.4}
  #allocation0 [shape = 'u32[]', space=smem, size = 0x4, offset = 0x4, fixed_abs, tag = 'smem constant byte address 0x4 - core index']
  #allocation1 [shape = 'u32[144,128]{1,0:T(1,128)}', space=vmem, size = 0x12000, scoped, tag = 'internal scratch']
  %s0 = inlined_call_operand.vmem [shape: bf16[800,256], index: 0, kind: input, shape index: {}]
  %s1 = inlined_call_operand.vmem [shape: bf16[256,128], index: 1, kind: input, shape index: {}]
  %s2 = inlined_call_operand.vmem [shape: f32[1,128], index: 2, kind: input, shape index: {}]
  %s3 = inlined_call_operand.vmem [shape: bf16[800,128], index: 3, kind: output, shape index: {}]
  %s4 = sld [smem:[#allocation0]]
  $region22: #{dueling_dqn_forward.4} parent=0
    _
  %s6 = ssub.s32 1, %s4
  %s7 = scalar_select 0, %s6, %s4
  // Predicated region
  $region2: #{dueling_dqn_forward.4} parent=0 // pred_check
    _
  $region3: #{dueling_dqn_forward.4} parent=0 // pred_check_branch
    %9 = sbr.rel (0) target = $region5
  $region4: #{dueling_dqn_forward.4} parent=0 // pred_region
    _
  $region5: #{dueling_dqn_forward.4} parent=0 // pred_fallthru
    _
  // Predicated region
  $region6: #{dueling_dqn_forward.4} parent=0 // pred_check
    _
  $region7: #{dueling_dqn_forward.4} parent=0 // pred_check_branch
    %11 = sbr.rel (0) target = $region9
  $region8: #{dueling_dqn_forward.4} parent=0 // pred_region
    _
  $region9: #{dueling_dqn_forward.4} parent=0 // pred_fallthru
    _
  // Predicated region
  $region10: #{dueling_dqn_forward.4} parent=0 // pred_check
    _
  $region11: #{dueling_dqn_forward.4} parent=0 // pred_check_branch
    %13 = sbr.rel (0) target = $region13
  $region12: #{dueling_dqn_forward.4} parent=0 // pred_region
    _
  $region13: #{dueling_dqn_forward.4} parent=0 // pred_fallthru
    _
  %v15 = vld [vmem:[%s0] sm:$0xff]
  %v16 = vld [vmem:[%s0 + $0x8] sm:$0xff]
  %v17 = vld [vmem:[%s0 + $0x10] sm:$0xff]
  %v18 = vld [vmem:[%s0 + $0x18] sm:$0xff]
  %v19 = vld [vmem:[%s0 + $0x20] sm:$0xff]
  %v20 = vld [vmem:[%s0 + $0x28] sm:$0xff]
  %v21 = vld [vmem:[%s0 + $0x30] sm:$0xff]
  %v22 = vld [vmem:[%s0 + $0x38] sm:$0xff]
  %v23 = vld [vmem:[%s0 + $0x40] sm:$0xff]
  %v24 = vld [vmem:[%s0 + $0x48] sm:$0xff]
  %v25 = vld [vmem:[%s0 + $0x50] sm:$0xff]
  %v26 = vld [vmem:[%s0 + $0x58] sm:$0xff]
  %v27 = vld [vmem:[%s0 + $0x60] sm:$0xff]
  %v28 = vld [vmem:[%s0 + $0x68] sm:$0xff]
  %v29 = vld [vmem:[%s0 + $0x70] sm:$0xff]
  %v30 = vld [vmem:[%s0 + $0x78] sm:$0xff]
  %v31 = vld [vmem:[%s0 + $0x80] sm:$0xff]
  %v32 = vld [vmem:[%s0 + $0x88] sm:$0xff]
  %v33 = vld [vmem:[%s0 + $0x90] sm:$0xff]
  %v34 = vld [vmem:[%s0 + $0x98] sm:$0xff]
  %v35 = vld [vmem:[%s0 + $0xa0] sm:$0xff]
  %v36 = vld [vmem:[%s0 + $0xa8] sm:$0xff]
  %v37 = vld [vmem:[%s0 + $0xb0] sm:$0xff]
  %v38 = vld [vmem:[%s0 + $0xb8] sm:$0xff]
  %v39 = vld [vmem:[%s0 + $0xc0] sm:$0xff]
  %v40 = vld [vmem:[%s0 + $0xc8] sm:$0xff]
  %v41 = vld [vmem:[%s0 + $0xd0] sm:$0xff]
  %v42 = vld [vmem:[%s0 + $0xd8] sm:$0xff]
  %v43 = vld [vmem:[%s0 + $0xe0] sm:$0xff]
  %v44 = vld [vmem:[%s0 + $0xe8] sm:$0xff]
  %v45 = vld [vmem:[%s0 + $0xf0] sm:$0xff]
  %v46 = vld [vmem:[%s0 + $0xf8] sm:$0xff]
  %v47 = vld [vmem:[%s0 + $0x100] sm:$0xff]
  %v48 = vld [vmem:[%s0 + $0x108] sm:$0xff]
  %v49 = vld [vmem:[%s0 + $0x110] sm:$0xff]
  %v50 = vld [vmem:[%s0 + $0x118] sm:$0xff]
  %v51 = vld [vmem:[%s0 + $0x120] sm:$0xff]
  %v52 = vld [vmem:[%s0 + $0x128] sm:$0xff]
  %v53 = vld [vmem:[%s0 + $0x130] sm:$0xff]
  %v54 = vld [vmem:[%s0 + $0x138] sm:$0xff]
  %v55 = vld [vmem:[%s0 + $0x140] sm:$0xff]
  %v56 = vld [vmem:[%s0 + $0x148] sm:$0xff]
  %v57 = vld [vmem:[%s0 + $0x150] sm:$0xff]
  %v58 = vld [vmem:[%s0 + $0x158] sm:$0xff]
  %v59 = vld [vmem:[%s0 + $0x160] sm:$0xff]
  %v60 = vld [vmem:[%s0 + $0x168] sm:$0xff]
  %v61 = vld [vmem:[%s0 + $0x170] sm:$0xff]
  %v62 = vld [vmem:[%s0 + $0x178] sm:$0xff]
  %v63 = vld [vmem:[%s0 + $0x180] sm:$0xff]
  %v64 = vld [vmem:[%s0 + $0x188] sm:$0xff]
  %v65 = vld [vmem:[%s0 + $0x190] sm:$0xff]
  %v66 = vld [vmem:[%s0 + $0x198] sm:$0xff]
  %v67 = vld [vmem:[%s0 + $0x1a0] sm:$0xff]
  %v68 = vld [vmem:[%s0 + $0x1a8] sm:$0xff]
  %v69 = vld [vmem:[%s0 + $0x1b0] sm:$0xff]
  %v70 = vld [vmem:[%s0 + $0x1b8] sm:$0xff]
  %v71 = vld [vmem:[%s0 + $0x1c0] sm:$0xff]
  %v72 = vld [vmem:[%s0 + $0x1c8] sm:$0xff]
  %v73 = vld [vmem:[%s0 + $0x1d0] sm:$0xff]
  %v74 = vld [vmem:[%s0 + $0x1d8] sm:$0xff]
  %v75 = vld [vmem:[%s0 + $0x1e0] sm:$0xff]
  %v76 = vld [vmem:[%s0 + $0x1e8] sm:$0xff]
  %v77 = vld [vmem:[%s0 + $0x1f0] sm:$0xff]
  %v78 = vld [vmem:[%s0 + $0x1f8] sm:$0xff]
  %v79 = vld [vmem:[%s0 + $0x200] sm:$0xff]
  %v80 = vld [vmem:[%s0 + $0x208] sm:$0xff]
  %v81 = vld [vmem:[%s0 + $0x210] sm:$0xff]
  %v82 = vld [vmem:[%s0 + $0x218] sm:$0xff]
  %v83 = vld [vmem:[%s0 + $0x220] sm:$0xff]
  %v84 = vld [vmem:[%s0 + $0x228] sm:$0xff]
  %v85 = vld [vmem:[%s0 + $0x230] sm:$0xff]
  %v86 = vld [vmem:[%s0 + $0x238] sm:$0xff]
  %v87 = vld [vmem:[%s0 + $0x240] sm:$0xff]
  %v88 = vld [vmem:[%s0 + $0x248] sm:$0xff]
  %v89 = vld [vmem:[%s0 + $0x250] sm:$0xff]
  %v90 = vld [vmem:[%s0 + $0x258] sm:$0xff]
  %v91 = vld [vmem:[%s0 + $0x260] sm:$0xff]
  %v92 = vld [vmem:[%s0 + $0x268] sm:$0xff]
  %v93 = vld [vmem:[%s0 + $0x270] sm:$0xff]
  %v94 = vld [vmem:[%s0 + $0x278] sm:$0xff]
  %v95 = vld [vmem:[%s0 + $0x280] sm:$0xff]
  %v96 = vld [vmem:[%s0 + $0x288] sm:$0xff]
  %v97 = vld [vmem:[%s0 + $0x290] sm:$0xff]
  %v98 = vld [vmem:[%s0 + $0x298] sm:$0xff]
  %v99 = vld [vmem:[%s0 + $0x2a0] sm:$0xff]
  %v100 = vld [vmem:[%s0 + $0x2a8] sm:$0xff]
  %v101 = vld [vmem:[%s0 + $0x2b0] sm:$0xff]
  %v102 = vld [vmem:[%s0 + $0x2b8] sm:$0xff]
  %v103 = vld [vmem:[%s0 + $0x2c0] sm:$0xff]
  %v104 = vld [vmem:[%s0 + $0x2c8] sm:$0xff]
  %v105 = vld [vmem:[%s0 + $0x2d0] sm:$0xff]
  %v106 = vld [vmem:[%s0 + $0x2d8] sm:$0xff]
  %v107 = vld [vmem:[%s0 + $0x2e0] sm:$0xff]
  %v108 = vld [vmem:[%s0 + $0x2e8] sm:$0xff]
  %v109 = vld [vmem:[%s0 + $0x2f0] sm:$0xff]
  %v110 = vld [vmem:[%s0 + $0x2f8] sm:$0xff]
  %v111 = vld [vmem:[%s0 + $0x300] sm:$0xff]
  %v112 = vld [vmem:[%s0 + $0x308] sm:$0xff]
  %v113 = vld [vmem:[%s0 + $0x310] sm:$0xff]
  %v114 = vld [vmem:[%s0 + $0x318] sm:$0xff]
  %v115 = vld [vmem:[%s1] sm:$0xf]
  %v116 = vld [vmem:[%s1 + $0x4] sm:$0xf]
  %v117 = vld [vmem:[%s1 + $0x8] sm:$0xf]
  %v118 = vld [vmem:[%s1 + $0xc] sm:$0xf]
  %v119 = vld [vmem:[%s1 + $0x10] sm:$0xf]
  %v120 = vld [vmem:[%s1 + $0x14] sm:$0xf]
  %v121 = vld [vmem:[%s1 + $0x18] sm:$0xf]
  %v122 = vld [vmem:[%s1 + $0x1c] sm:$0xf]
  %v123 = vld [vmem:[%s1 + $0x20] sm:$0xf]
  %v124 = vld [vmem:[%s1 + $0x24] sm:$0xf]
  %v125 = vld [vmem:[%s1 + $0x28] sm:$0xf]
  %v126 = vld [vmem:[%s1 + $0x2c] sm:$0xf]
  %v127 = vld [vmem:[%s1 + $0x30] sm:$0xf]
  %v128 = vld [vmem:[%s1 + $0x34] sm:$0xf]
  %v129 = vld [vmem:[%s1 + $0x38] sm:$0xf]
  %v130 = vld [vmem:[%s1 + $0x3c] sm:$0xf]
  %v131 = vld [vmem:[%s1 + $0x40] sm:$0xf]
  %v132 = vld [vmem:[%s1 + $0x44] sm:$0xf]
  %v133 = vld [vmem:[%s1 + $0x48] sm:$0xf]
  %v134 = vld [vmem:[%s1 + $0x4c] sm:$0xf]
  %v135 = vld [vmem:[%s1 + $0x50] sm:$0xf]
  %v136 = vld [vmem:[%s1 + $0x54] sm:$0xf]
  %v137 = vld [vmem:[%s1 + $0x58] sm:$0xf]
  %v138 = vld [vmem:[%s1 + $0x5c] sm:$0xf]
  %v139 = vld [vmem:[%s1 + $0x60] sm:$0xf]
  %v140 = vld [vmem:[%s1 + $0x64] sm:$0xf]
  %v141 = vld [vmem:[%s1 + $0x68] sm:$0xf]
  %v142 = vld [vmem:[%s1 + $0x6c] sm:$0xf]
  %v143 = vld [vmem:[%s1 + $0x70] sm:$0xf]
  %v144 = vld [vmem:[%s1 + $0x74] sm:$0xf]
  %v145 = vld [vmem:[%s1 + $0x78] sm:$0xf]
  %v146 = vld [vmem:[%s1 + $0x7c] sm:$0xf]
  %v147 = vld [vmem:[%s2] sm:$0x1]
  %v149 = vlaneseq
  %v150 = vshrl.u32 %v149, 7
  %v151 = vsub.s32 0, %v150
  %v152 = vrot.slane %v147, %v151
  %v254 = vunpack.c.l.b16 %v15
  %v255 = vunpack.c.h.b16 %v15
  %v256 = vunpack.c.l.b16 %v16
  %v257 = vunpack.c.h.b16 %v16
  %v258 = vunpack.c.l.b16 %v17
  %v259 = vunpack.c.h.b16 %v17
  %v260 = vunpack.c.l.b16 %v18
  %v261 = vunpack.c.h.b16 %v18
  %v262 = vunpack.c.l.b16 %v19
  %v263 = vunpack.c.h.b16 %v19
  %v264 = vunpack.c.l.b16 %v20
  %v265 = vunpack.c.h.b16 %v20
  %v266 = vunpack.c.l.b16 %v21
  %v267 = vunpack.c.h.b16 %v21
  %v268 = vunpack.c.l.b16 %v22
  %v269 = vunpack.c.h.b16 %v22
  %v270 = vunpack.c.l.b16 %v23
  %v271 = vunpack.c.h.b16 %v23
  %v272 = vunpack.c.l.b16 %v24
  %v273 = vunpack.c.h.b16 %v24
  %v274 = vunpack.c.l.b16 %v25
  %v275 = vunpack.c.h.b16 %v25
  %v276 = vunpack.c.l.b16 %v26
  %v277 = vunpack.c.h.b16 %v26
  %v278 = vunpack.c.l.b16 %v27
  %v279 = vunpack.c.h.b16 %v27
  %v280 = vunpack.c.l.b16 %v28
  %v281 = vunpack.c.h.b16 %v28
  %v282 = vunpack.c.l.b16 %v29
  %v283 = vunpack.c.h.b16 %v29
  %v284 = vunpack.c.l.b16 %v30
  %v285 = vunpack.c.h.b16 %v30
  %v286 = vunpack.c.l.b16 %v31
  %v287 = vunpack.c.h.b16 %v31
  %v288 = vunpack.c.l.b16 %v32
  %v289 = vunpack.c.h.b16 %v32
  %v290 = vunpack.c.l.b16 %v33
  %v291 = vunpack.c.h.b16 %v33
  %v292 = vunpack.c.l.b16 %v34
  %v293 = vunpack.c.h.b16 %v34
  %v294 = vunpack.c.l.b16 %v35
  %v295 = vunpack.c.h.b16 %v35
  %v296 = vunpack.c.l.b16 %v36
  %v297 = vunpack.c.h.b16 %v36
  %v298 = vunpack.c.l.b16 %v37
  %v299 = vunpack.c.h.b16 %v37
  %v300 = vunpack.c.l.b16 %v38
  %v301 = vunpack.c.h.b16 %v38
  %v302 = vunpack.c.l.b16 %v39
  %v303 = vunpack.c.h.b16 %v39
  %v304 = vunpack.c.l.b16 %v40
  %v305 = vunpack.c.h.b16 %v40
  %v306 = vunpack.c.l.b16 %v41
  %v307 = vunpack.c.h.b16 %v41
  %v308 = vunpack.c.l.b16 %v42
  %v309 = vunpack.c.h.b16 %v42
  %v310 = vunpack.c.l.b16 %v43
  %v311 = vunpack.c.h.b16 %v43
  %v312 = vunpack.c.l.b16 %v44
  %v313 = vunpack.c.h.b16 %v44
  %v314 = vunpack.c.l.b16 %v45
  %v315 = vunpack.c.h.b16 %v45
  %v316 = vunpack.c.l.b16 %v46
  %v317 = vunpack.c.h.b16 %v46
  %v318 = vunpack.c.l.b16 %v47
  %v319 = vunpack.c.h.b16 %v47
  %v320 = vunpack.c.l.b16 %v48
  %v321 = vunpack.c.h.b16 %v48
  %v322 = vunpack.c.l.b16 %v49
  %v323 = vunpack.c.h.b16 %v49
  %v324 = vunpack.c.l.b16 %v50
  %v325 = vunpack.c.h.b16 %v50
  %v326 = vunpack.c.l.b16 %v51
  %v327 = vunpack.c.h.b16 %v51
  %v328 = vunpack.c.l.b16 %v52
  %v329 = vunpack.c.h.b16 %v52
  %v330 = vunpack.c.l.b16 %v53
  %v331 = vunpack.c.h.b16 %v53
  %v332 = vunpack.c.l.b16 %v54
  %v333 = vunpack.c.h.b16 %v54
  %v334 = vunpack.c.l.b16 %v55
  %v335 = vunpack.c.h.b16 %v55
  %v336 = vunpack.c.l.b16 %v56
  %v337 = vunpack.c.h.b16 %v56
  %v338 = vunpack.c.l.b16 %v57
  %v339 = vunpack.c.h.b16 %v57
  %v340 = vunpack.c.l.b16 %v58
  %v341 = vunpack.c.h.b16 %v58
  %v342 = vunpack.c.l.b16 %v59
  %v343 = vunpack.c.h.b16 %v59
  %v344 = vunpack.c.l.b16 %v60
  %v345 = vunpack.c.h.b16 %v60
  %v346 = vunpack.c.l.b16 %v61
  %v347 = vunpack.c.h.b16 %v61
  %v348 = vunpack.c.l.b16 %v62
  %v349 = vunpack.c.h.b16 %v62
  %v350 = vunpack.c.l.b16 %v63
  %v351 = vunpack.c.h.b16 %v63
  %v352 = vunpack.c.l.b16 %v64
  %v353 = vunpack.c.h.b16 %v64
  %v354 = vunpack.c.l.b16 %v65
  %v355 = vunpack.c.h.b16 %v65
  %v356 = vunpack.c.l.b16 %v66
  %v357 = vunpack.c.h.b16 %v66
  %v358 = vunpack.c.l.b16 %v67
  %v359 = vunpack.c.h.b16 %v67
  %v360 = vunpack.c.l.b16 %v68
  %v361 = vunpack.c.h.b16 %v68
  %v362 = vunpack.c.l.b16 %v69
  %v363 = vunpack.c.h.b16 %v69
  %v364 = vunpack.c.l.b16 %v70
  %v365 = vunpack.c.h.b16 %v70
  %v366 = vunpack.c.l.b16 %v71
  %v367 = vunpack.c.h.b16 %v71
  %v368 = vunpack.c.l.b16 %v72
  %v369 = vunpack.c.h.b16 %v72
  %v370 = vunpack.c.l.b16 %v73
  %v371 = vunpack.c.h.b16 %v73
  %v372 = vunpack.c.l.b16 %v74
  %v373 = vunpack.c.h.b16 %v74
  %v374 = vunpack.c.l.b16 %v75
  %v375 = vunpack.c.h.b16 %v75
  %v376 = vunpack.c.l.b16 %v76
  %v377 = vunpack.c.h.b16 %v76
  %v378 = vunpack.c.l.b16 %v77
  %v379 = vunpack.c.h.b16 %v77
  %v380 = vunpack.c.l.b16 %v78
  %v381 = vunpack.c.h.b16 %v78
  %v382 = vunpack.c.l.b16 %v79
  %v383 = vunpack.c.h.b16 %v79
  %v384 = vunpack.c.l.b16 %v80
  %v385 = vunpack.c.h.b16 %v80
  %v386 = vunpack.c.l.b16 %v81
  %v387 = vunpack.c.h.b16 %v81
  %v388 = vunpack.c.l.b16 %v82
  %v389 = vunpack.c.h.b16 %v82
  %v390 = vunpack.c.l.b16 %v83
  %v391 = vunpack.c.h.b16 %v83
  %v392 = vunpack.c.l.b16 %v84
  %v393 = vunpack.c.h.b16 %v84
  %v394 = vunpack.c.l.b16 %v85
  %v395 = vunpack.c.h.b16 %v85
  %v396 = vunpack.c.l.b16 %v86
  %v397 = vunpack.c.h.b16 %v86
  %v398 = vunpack.c.l.b16 %v87
  %v399 = vunpack.c.h.b16 %v87
  %v400 = vunpack.c.l.b16 %v88
  %v401 = vunpack.c.h.b16 %v88
  %v402 = vunpack.c.l.b16 %v89
  %v403 = vunpack.c.h.b16 %v89
  %v404 = vunpack.c.l.b16 %v90
  %v405 = vunpack.c.h.b16 %v90
  %v406 = vunpack.c.l.b16 %v91
  %v407 = vunpack.c.h.b16 %v91
  %v408 = vunpack.c.l.b16 %v92
  %v409 = vunpack.c.h.b16 %v92
  %v410 = vunpack.c.l.b16 %v93
  %v411 = vunpack.c.h.b16 %v93
  %v412 = vunpack.c.l.b16 %v94
  %v413 = vunpack.c.h.b16 %v94
  %v414 = vunpack.c.l.b16 %v95
  %v415 = vunpack.c.h.b16 %v95
  %v416 = vunpack.c.l.b16 %v96
  %v417 = vunpack.c.h.b16 %v96
  %v418 = vunpack.c.l.b16 %v97
  %v419 = vunpack.c.h.b16 %v97
  %v420 = vunpack.c.l.b16 %v98
  %v421 = vunpack.c.h.b16 %v98
  %v422 = vunpack.c.l.b16 %v99
  %v423 = vunpack.c.h.b16 %v99
  %v424 = vunpack.c.l.b16 %v100
  %v425 = vunpack.c.h.b16 %v100
  %v426 = vunpack.c.l.b16 %v101
  %v427 = vunpack.c.h.b16 %v101
  %v428 = vunpack.c.l.b16 %v102
  %v429 = vunpack.c.h.b16 %v102
  %v430 = vunpack.c.l.b16 %v103
  %v431 = vunpack.c.h.b16 %v103
  %v432 = vunpack.c.l.b16 %v104
  %v433 = vunpack.c.h.b16 %v104
  %v434 = vunpack.c.l.b16 %v105
  %v435 = vunpack.c.h.b16 %v105
  %v436 = vunpack.c.l.b16 %v106
  %v437 = vunpack.c.h.b16 %v106
  %v438 = vunpack.c.l.b16 %v107
  %v439 = vunpack.c.h.b16 %v107
  %v440 = vunpack.c.l.b16 %v108
  %v441 = vunpack.c.h.b16 %v108
  %v442 = vunpack.c.l.b16 %v109
  %v443 = vunpack.c.h.b16 %v109
  %v444 = vunpack.c.l.b16 %v110
  %v445 = vunpack.c.h.b16 %v110
  %v446 = vunpack.c.l.b16 %v111
  %v447 = vunpack.c.h.b16 %v111
  %v448 = vunpack.c.l.b16 %v112
  %v449 = vunpack.c.h.b16 %v112
  %v450 = vunpack.c.l.b16 %v113
  %v451 = vunpack.c.h.b16 %v113
  %v452 = vunpack.c.l.b16 %v114
  %v453 = vunpack.c.h.b16 %v114
  %v454 = vpack.c.b16 %v256, %v254
  %v455 = vpack.c.b16 %v257, %v255
  %v456 = vpack.c.b16 %v260, %v258
  %v457 = vpack.c.b16 %v261, %v259
  %v458 = vpack.c.b16 %v264, %v262
  %v459 = vpack.c.b16 %v265, %v263
  %v460 = vpack.c.b16 %v268, %v266
  %v461 = vpack.c.b16 %v269, %v267
  %v462 = vpack.c.b16 %v272, %v270
  %v463 = vpack.c.b16 %v273, %v271
  %v464 = vpack.c.b16 %v276, %v274
  %v465 = vpack.c.b16 %v277, %v275
  %v466 = vpack.c.b16 %v280, %v278
  %v467 = vpack.c.b16 %v281, %v279
  %v468 = vpack.c.b16 %v284, %v282
  %v469 = vpack.c.b16 %v285, %v283
  %v470 = vpack.c.b16 %v288, %v286
  %v471 = vpack.c.b16 %v289, %v287
  %v472 = vpack.c.b16 %v292, %v290
  %v473 = vpack.c.b16 %v293, %v291
  %v474 = vpack.c.b16 %v296, %v294
  %v475 = vpack.c.b16 %v297, %v295
  %v476 = vpack.c.b16 %v300, %v298
  %v477 = vpack.c.b16 %v301, %v299
  %v478 = vpack.c.b16 %v304, %v302
  %v479 = vpack.c.b16 %v305, %v303
  %v480 = vpack.c.b16 %v308, %v306
  %v481 = vpack.c.b16 %v309, %v307
  %v482 = vpack.c.b16 %v312, %v310
  %v483 = vpack.c.b16 %v313, %v311
  %v484 = vpack.c.b16 %v316, %v314
  %v485 = vpack.c.b16 %v317, %v315
  %v486 = vpack.c.b16 %v320, %v318
  %v487 = vpack.c.b16 %v321, %v319
  %v488 = vpack.c.b16 %v324, %v322
  %v489 = vpack.c.b16 %v325, %v323
  %v490 = vpack.c.b16 %v328, %v326
  %v491 = vpack.c.b16 %v329, %v327
  %v492 = vpack.c.b16 %v332, %v330
  %v493 = vpack.c.b16 %v333, %v331
  %v494 = vpack.c.b16 %v336, %v334
  %v495 = vpack.c.b16 %v337, %v335
  %v496 = vpack.c.b16 %v340, %v338
  %v497 = vpack.c.b16 %v341, %v339
  %v498 = vpack.c.b16 %v344, %v342
  %v499 = vpack.c.b16 %v345, %v343
  %v500 = vpack.c.b16 %v348, %v346
  %v501 = vpack.c.b16 %v349, %v347
  %v502 = vpack.c.b16 %v352, %v350
  %v503 = vpack.c.b16 %v353, %v351
  %v504 = vpack.c.b16 %v356, %v354
  %v505 = vpack.c.b16 %v357, %v355
  %v506 = vpack.c.b16 %v360, %v358
  %v507 = vpack.c.b16 %v361, %v359
  %v508 = vpack.c.b16 %v364, %v362
  %v509 = vpack.c.b16 %v365, %v363
  %v510 = vpack.c.b16 %v368, %v366
  %v511 = vpack.c.b16 %v369, %v367
  %v512 = vpack.c.b16 %v372, %v370
  %v513 = vpack.c.b16 %v373, %v371
  %v514 = vpack.c.b16 %v376, %v374
  %v515 = vpack.c.b16 %v377, %v375
  %v516 = vpack.c.b16 %v380, %v378
  %v517 = vpack.c.b16 %v381, %v379
  %v518 = vpack.c.b16 %v384, %v382
  %v519 = vpack.c.b16 %v385, %v383
  %v520 = vpack.c.b16 %v388, %v386
  %v521 = vpack.c.b16 %v389, %v387
  %v522 = vpack.c.b16 %v392, %v390
  %v523 = vpack.c.b16 %v393, %v391
  %v524 = vpack.c.b16 %v396, %v394
  %v525 = vpack.c.b16 %v397, %v395
  %v526 = vpack.c.b16 %v400, %v398
  %v527 = vpack.c.b16 %v401, %v399
  %v528 = vpack.c.b16 %v404, %v402
  %v529 = vpack.c.b16 %v405, %v403
  %v530 = vpack.c.b16 %v408, %v406
  %v531 = vpack.c.b16 %v409, %v407
  %v532 = vpack.c.b16 %v412, %v410
  %v533 = vpack.c.b16 %v413, %v411
  %v534 = vpack.c.b16 %v416, %v414
  %v535 = vpack.c.b16 %v417, %v415
  %v536 = vpack.c.b16 %v420, %v418
  %v537 = vpack.c.b16 %v421, %v419
  %v538 = vpack.c.b16 %v424, %v422
  %v539 = vpack.c.b16 %v425, %v423
  %v540 = vpack.c.b16 %v428, %v426
  %v541 = vpack.c.b16 %v429, %v427
  %v542 = vpack.c.b16 %v432, %v430
  %v543 = vpack.c.b16 %v433, %v431
  %v544 = vpack.c.b16 %v436, %v434
  %v545 = vpack.c.b16 %v437, %v435
  %v546 = vpack.c.b16 %v440, %v438
  %v547 = vpack.c.b16 %v441, %v439
  %v548 = vpack.c.b16 %v444, %v442
  %v549 = vpack.c.b16 %v445, %v443
  %v550 = vpack.c.b16 %v448, %v446
  %v551 = vpack.c.b16 %v449, %v447
  %v552 = vpack.c.b16 %v452, %v450
  %v553 = vpack.c.b16 %v453, %v451
  %v686 = vunpack.c.l.b16 %v115
  %v687 = vunpack.c.l.b16 %v116
  %v688 = vunpack.c.l.b16 %v117
  %v689 = vunpack.c.l.b16 %v118
  %v690 = vunpack.c.l.b16 %v119
  %v691 = vunpack.c.l.b16 %v120
  %v692 = vunpack.c.l.b16 %v121
  %v693 = vunpack.c.l.b16 %v122
  %v694 = vunpack.c.l.b16 %v123
  %v695 = vunpack.c.l.b16 %v124
  %v696 = vunpack.c.l.b16 %v125
  %v697 = vunpack.c.l.b16 %v126
  %v698 = vunpack.c.l.b16 %v127
  %v699 = vunpack.c.l.b16 %v128
  %v700 = vunpack.c.l.b16 %v129
  %v701 = vunpack.c.l.b16 %v130
  %v702 = vunpack.c.l.b16 %v131
  %v703 = vunpack.c.l.b16 %v132
  %v704 = vunpack.c.l.b16 %v133
  %v705 = vunpack.c.l.b16 %v134
  %v706 = vunpack.c.l.b16 %v135
  %v707 = vunpack.c.l.b16 %v136
  %v708 = vunpack.c.l.b16 %v137
  %v709 = vunpack.c.l.b16 %v138
  %v710 = vunpack.c.l.b16 %v139
  %v711 = vunpack.c.l.b16 %v140
  %v712 = vunpack.c.l.b16 %v141
  %v713 = vunpack.c.l.b16 %v142
  %v714 = vunpack.c.l.b16 %v143
  %v715 = vunpack.c.l.b16 %v144
  %v716 = vunpack.c.l.b16 %v145
  %v717 = vunpack.c.l.b16 %v146
  %v718 = vpack.c.b16 %v687, %v686
  %v719 = vpack.c.b16 %v689, %v688
  %v720 = vpack.c.b16 %v691, %v690
  %v721 = vpack.c.b16 %v693, %v692
  %v722 = vpack.c.b16 %v695, %v694
  %v723 = vpack.c.b16 %v697, %v696
  %v724 = vpack.c.b16 %v699, %v698
  %v725 = vpack.c.b16 %v701, %v700
  %v726 = vpack.c.b16 %v703, %v702
  %v727 = vpack.c.b16 %v705, %v704
  %v728 = vpack.c.b16 %v707, %v706
  %v729 = vpack.c.b16 %v709, %v708
  %v730 = vpack.c.b16 %v711, %v710
  %v731 = vpack.c.b16 %v713, %v712
  %v732 = vpack.c.b16 %v715, %v714
  %v733 = vpack.c.b16 %v717, %v716
  %750 = vmatprep.subr.bf16.mxu0 0
  %751 = vmatpush1.bf16.msra.mxu0 %v718
  %752 = vmatprep.subr.bf16.mxu0 0
  %753 = vmatpush1.bf16.msra.mxu0 %v719
  %754 = vmatprep.subr.bf16.mxu0 0
  %755 = vmatpush1.bf16.msra.mxu0 %v720
  %756 = vmatprep.subr.bf16.mxu0 0
  %757 = vmatpush1.bf16.msra.mxu0 %v721
  %758 = vmatprep.subr.bf16.mxu0 0
  %759 = vmatpush1.bf16.msra.mxu0 %v722
  %760 = vmatprep.subr.bf16.mxu0 0
  %761 = vmatpush1.bf16.msra.mxu0 %v723
  %762 = vmatprep.subr.bf16.mxu0 0
  %763 = vmatpush1.bf16.msra.mxu0 %v724
  %764 = vmatprep.subr.bf16.mxu0 0
  %765 = vmatpush1.bf16.msra.mxu0 %v725
  %766 = vmatprep.subr.bf16.mxu0 0
  %767 = vmatpush1.bf16.msra.mxu0 %v726
  %768 = vmatprep.subr.bf16.mxu0 0
  %769 = vmatpush1.bf16.msra.mxu0 %v727
  %770 = vmatprep.subr.bf16.mxu0 0
  %771 = vmatpush1.bf16.msra.mxu0 %v728
  %772 = vmatprep.subr.bf16.mxu0 0
  %773 = vmatpush1.bf16.msra.mxu0 %v729
  %774 = vmatprep.subr.bf16.mxu0 0
  %775 = vmatpush1.bf16.msra.mxu0 %v730
  %776 = vmatprep.subr.bf16.mxu0 0
  %777 = vmatpush1.bf16.msra.mxu0 %v731
  %778 = vmatprep.subr.bf16.mxu0 0
  %779 = vmatpush1.bf16.msra.mxu0 %v732
  %780 = vmatprep.subr.bf16.mxu0 0
  %781 = vmatpush1.bf16.msra.mxu0 %v733
  %782 = vmatprep.mubr.bf16.mxu0 %v455
  %783 = vmatmul.mubr.bf16.gmra.mrb[0].mxu0 %v454
  %v784 = vpop.f32.mrb[0].mxu0
  %v785 = vadd.f32 %v152, %v784
  %v786 = vpop.f32.mrb[0].mxu0
  %v787 = vpop.f32.mrb[0].mxu0
  %v788 = vadd.f32 %v152, %v787
  %v789 = vpop.f32.mrb[0].mxu0
  %790 = vmatprep.mubr.bf16.mxu0 %v457
  %791 = vmatmul.mubr.bf16.gmra.mrb[0].mxu0 %v456
  %v792 = vpop.f32.mrb[0].mxu0
  %v793 = vadd.f32 %v152, %v792
  %v794 = vpop.f32.mrb[0].mxu0
  %v795 = vpop.f32.mrb[0].mxu0
  %v796 = vadd.f32 %v152, %v795
  %v797 = vpop.f32.mrb[0].mxu0
  %798 = vmatprep.mubr.bf16.mxu0 %v459
  %799 = vmatmul.mubr.bf16.gmra.mrb[0].mxu0 %v458
  %v800 = vpop.f32.mrb[0].mxu0
  %v801 = vadd.f32 %v152, %v800
  %v802 = vpop.f32.mrb[0].mxu0
  %v803 = vpop.f32.mrb[0].mxu0
  %v804 = vadd.f32 %v152, %v803
  %v805 = vpop.f32.mrb[0].mxu0
  %806 = vmatprep.mubr.bf16.mxu0 %v461
  %807 = vmatmul.mubr.bf16.gmra.mrb[0].mxu0 %v460
  %v808 = vpop.f32.mrb[0].mxu0
  %v809 = vadd.f32 %v152, %v808
  %v810 = vpop.f32.mrb[0].mxu0
  %v811 = vpop.f32.mrb[0].mxu0
  %v812 = vadd.f32 %v152, %v811
  %v813 = vpop.f32.mrb[0].mxu0
  %814 = vmatprep.mubr.bf16.mxu0 %v463
  %815 = vmatmul.mubr.bf16.gmra.mrb[0].mxu0 %v462
  %v816 = vpop.f32.mrb[0].mxu0
  %v817 = vadd.f32 %v152, %v816
  %v818 = vpop.f32.mrb[0].mxu0
  %v819 = vpop.f32.mrb[0].mxu0
  %v820 = vadd.f32 %v152, %v819
  %v821 = vpop.f32.mrb[0].mxu0
  %822 = vmatprep.mubr.bf16.mxu0 %v465
  %823 = vmatmul.mubr.bf16.gmra.mrb[0].mxu0 %v464
  %v824 = vpop.f32.mrb[0].mxu0
  %v825 = vadd.f32 %v152, %v824
  %v826 = vpop.f32.mrb[0].mxu0
  %v827 = vpop.f32.mrb[0].mxu0
  %v828 = vadd.f32 %v152, %v827
  %v829 = vpop.f32.mrb[0].mxu0
  %830 = vmatprep.mubr.bf16.mxu0 %v467
  %831 = vmatmul.mubr.bf16.gmra.mrb[0].mxu0 %v466
  %v832 = vpop.f32.mrb[0].mxu0
  %v833 = vadd.f32 %v152, %v832
  %v834 = vpop.f32.mrb[0].mxu0
  %v835 = vpop.f32.mrb[0].mxu0
  %v836 = vadd.f32 %v152, %v835
  %v837 = vpop.f32.mrb[0].mxu0
  %838 = vmatprep.mubr.bf16.mxu0 %v469
  %839 = vmatmul.mubr.bf16.gmra.mrb[0].mxu0 %v468
  %v840 = vpop.f32.mrb[0].mxu0
  %v841 = vadd.f32 %v152, %v840
  %v842 = vpop.f32.mrb[0].mxu0
  %v843 = vpop.f32.mrb[0].mxu0
  %v844 = vadd.f32 %v152, %v843
  %v845 = vpop.f32.mrb[0].mxu0
  %846 = vmatprep.mubr.bf16.mxu0 %v471
  %847 = vmatmul.mubr.bf16.gmra.mrb[0].mxu0 %v470
  %v848 = vpop.f32.mrb[0].mxu0
  %v849 = vadd.f32 %v152, %v848
  %v850 = vpop.f32.mrb[0].mxu0
  %v851 = vpop.f32.mrb[0].mxu0
  %v852 = vadd.f32 %v152, %v851
  %v853 = vpop.f32.mrb[0].mxu0
  %854 = vmatprep.mubr.bf16.mxu0 %v473
  %855 = vmatmul.mubr.bf16.gmra.mrb[0].mxu0 %v472
  %v856 = vpop.f32.mrb[0].mxu0
  %v857 = vadd.f32 %v152, %v856
  %v858 = vpop.f32.mrb[0].mxu0
  %v859 = vpop.f32.mrb[0].mxu0
  %v860 = vadd.f32 %v152, %v859
  %v861 = vpop.f32.mrb[0].mxu0
  %862 = vmatprep.mubr.bf16.mxu0 %v475
  %863 = vmatmul.mubr.bf16.gmra.mrb[0].mxu0 %v474
  %v864 = vpop.f32.mrb[0].mxu0
  %v865 = vadd.f32 %v152, %v864
  %v866 = vpop.f32.mrb[0].mxu0
  %v867 = vpop.f32.mrb[0].mxu0
  %v868 = vadd.f32 %v152, %v867
  %v869 = vpop.f32.mrb[0].mxu0
  %870 = vmatprep.mubr.bf16.mxu0 %v477
  %871 = vmatmul.mubr.bf16.gmra.mrb[0].mxu0 %v476
  %v872 = vpop.f32.mrb[0].mxu0
  %v873 = vadd.f32 %v152, %v872
  %v874 = vpop.f32.mrb[0].mxu0
  %v875 = vpop.f32.mrb[0].mxu0
  %v876 = vadd.f32 %v152, %v875
  %v877 = vpop.f32.mrb[0].mxu0
  %878 = vmatprep.mubr.bf16.mxu0 %v479
  %879 = vmatmul.mubr.bf16.gmra.mrb[0].mxu0 %v478
  %v880 = vpop.f32.mrb[0].mxu0
  %v881 = vadd.f32 %v152, %v880
  %v882 = vpop.f32.mrb[0].mxu0
  %v883 = vpop.f32.mrb[0].mxu0
  %v884 = vadd.f32 %v152, %v883
  %v885 = vpop.f32.mrb[0].mxu0
  %886 = vmatprep.mubr.bf16.mxu0 %v481
  %887 = vmatmul.mubr.bf16.gmra.mrb[0].mxu0 %v480
  %v888 = vpop.f32.mrb[0].mxu0
  %v889 = vadd.f32 %v152, %v888
  %v890 = vpop.f32.mrb[0].mxu0
  %v891 = vpop.f32.mrb[0].mxu0
  %v892 = vadd.f32 %v152, %v891
  %v893 = vpop.f32.mrb[0].mxu0
  %894 = vmatprep.mubr.bf16.mxu0 %v483
  %895 = vmatmul.mubr.bf16.gmra.mrb[0].mxu0 %v482
  %v896 = vpop.f32.mrb[0].mxu0
  %v897 = vadd.f32 %v152, %v896
  %v898 = vpop.f32.mrb[0].mxu0
  %v899 = vpop.f32.mrb[0].mxu0
  %v900 = vadd.f32 %v152, %v899
  %v901 = vpop.f32.mrb[0].mxu0
  %902 = vmatprep.mubr.bf16.mxu0 %v485
  %903 = vmatmul.mubr.bf16.gmra.mrb[0].mxu0 %v484
  %v904 = vpop.f32.mrb[0].mxu0
  %v905 = vadd.f32 %v152, %v904
  %v906 = vpop.f32.mrb[0].mxu0
  %v907 = vpop.f32.mrb[0].mxu0
  %v908 = vadd.f32 %v152, %v907
  %v909 = vpop.f32.mrb[0].mxu0
  %910 = vmatprep.mubr.bf16.mxu0 %v487
  %911 = vmatmul.mubr.bf16.gmra.mrb[0].mxu0 %v486
  %v912 = vpop.f32.mrb[0].mxu0
  %v913 = vadd.f32 %v152, %v912
  %v914 = vpop.f32.mrb[0].mxu0
  %v915 = vpop.f32.mrb[0].mxu0
  %v916 = vadd.f32 %v152, %v915
  %v917 = vpop.f32.mrb[0].mxu0
  %918 = vmatprep.mubr.bf16.mxu0 %v489
  %919 = vmatmul.mubr.bf16.gmra.mrb[0].mxu0 %v488
  %v920 = vpop.f32.mrb[0].mxu0
  %v921 = vadd.f32 %v152, %v920
  %v922 = vpop.f32.mrb[0].mxu0
  %v923 = vpop.f32.mrb[0].mxu0
  %v924 = vadd.f32 %v152, %v923
  %v925 = vpop.f32.mrb[0].mxu0
  %926 = vmatprep.mubr.bf16.mxu0 %v491
  %927 = vmatmul.mubr.bf16.gmra.mrb[0].mxu0 %v490
  %v928 = vpop.f32.mrb[0].mxu0
  %v929 = vadd.f32 %v152, %v928
  %v930 = vpop.f32.mrb[0].mxu0
  %v931 = vpop.f32.mrb[0].mxu0
  %v932 = vadd.f32 %v152, %v931
  %v933 = vpop.f32.mrb[0].mxu0
  %934 = vmatprep.mubr.bf16.mxu0 %v493
  %935 = vmatmul.mubr.bf16.gmra.mrb[0].mxu0 %v492
  %v936 = vpop.f32.mrb[0].mxu0
  %v937 = vadd.f32 %v152, %v936
  %v938 = vpop.f32.mrb[0].mxu0
  %v939 = vpop.f32.mrb[0].mxu0
  %v940 = vadd.f32 %v152, %v939
  %v941 = vpop.f32.mrb[0].mxu0
  %942 = vmatprep.mubr.bf16.mxu0 %v495
  %943 = vmatmul.mubr.bf16.gmra.mrb[0].mxu0 %v494
  %v944 = vpop.f32.mrb[0].mxu0
  %v945 = vadd.f32 %v152, %v944
  %v946 = vpop.f32.mrb[0].mxu0
  %v947 = vpop.f32.mrb[0].mxu0
  %v948 = vadd.f32 %v152, %v947
  %v949 = vpop.f32.mrb[0].mxu0
  %950 = vmatprep.mubr.bf16.mxu0 %v497
  %951 = vmatmul.mubr.bf16.gmra.mrb[0].mxu0 %v496
  %v952 = vpop.f32.mrb[0].mxu0
  %v953 = vadd.f32 %v152, %v952
  %v954 = vpop.f32.mrb[0].mxu0
  %v955 = vpop.f32.mrb[0].mxu0
  %v956 = vadd.f32 %v152, %v955
  %v957 = vpop.f32.mrb[0].mxu0
  %958 = vmatprep.mubr.bf16.mxu0 %v499
  %959 = vmatmul.mubr.bf16.gmra.mrb[0].mxu0 %v498
  %v960 = vpop.f32.mrb[0].mxu0
  %v961 = vadd.f32 %v152, %v960
  %v962 = vpop.f32.mrb[0].mxu0
  %v963 = vpop.f32.mrb[0].mxu0
  %v964 = vadd.f32 %v152, %v963
  %v965 = vpop.f32.mrb[0].mxu0
  %966 = vmatprep.mubr.bf16.mxu0 %v501
  %967 = vmatmul.mubr.bf16.gmra.mrb[0].mxu0 %v500
  %v968 = vpop.f32.mrb[0].mxu0
  %v969 = vadd.f32 %v152, %v968
  %v970 = vpop.f32.mrb[0].mxu0
  %v971 = vpop.f32.mrb[0].mxu0
  %v972 = vadd.f32 %v152, %v971
  %v973 = vpop.f32.mrb[0].mxu0
  %974 = vmatprep.mubr.bf16.mxu0 %v503
  %975 = vmatmul.mubr.bf16.gmra.mrb[0].mxu0 %v502
  %v976 = vpop.f32.mrb[0].mxu0
  %v977 = vadd.f32 %v152, %v976
  %v978 = vpop.f32.mrb[0].mxu0
  %v979 = vpop.f32.mrb[0].mxu0
  %v980 = vadd.f32 %v152, %v979
  %v981 = vpop.f32.mrb[0].mxu0
  %982 = vmatprep.mubr.bf16.mxu0 %v505
  %983 = vmatmul.mubr.bf16.gmra.mrb[0].mxu0 %v504
  %v984 = vpop.f32.mrb[0].mxu0
  %v985 = vadd.f32 %v152, %v984
  %v986 = vpop.f32.mrb[0].mxu0
  %v987 = vpop.f32.mrb[0].mxu0
  %v988 = vadd.f32 %v152, %v987
  %v989 = vpop.f32.mrb[0].mxu0
  %990 = vmatprep.mubr.bf16.mxu0 %v507
  %991 = vmatmul.mubr.bf16.gmra.mrb[0].mxu0 %v506
  %v992 = vpop.f32.mrb[0].mxu0
  %v993 = vadd.f32 %v152, %v992
  %v994 = vpop.f32.mrb[0].mxu0
  %v995 = vpop.f32.mrb[0].mxu0
  %v996 = vadd.f32 %v152, %v995
  %v997 = vpop.f32.mrb[0].mxu0
  %998 = vmatprep.mubr.bf16.mxu0 %v509
  %999 = vmatmul.mubr.bf16.gmra.mrb[0].mxu0 %v508
  %v1000 = vpop.f32.mrb[0].mxu0
  %v1001 = vadd.f32 %v152, %v1000
  %v1002 = vpop.f32.mrb[0].mxu0
  %v1003 = vpop.f32.mrb[0].mxu0
  %v1004 = vadd.f32 %v152, %v1003
  %v1005 = vpop.f32.mrb[0].mxu0
  %1006 = vmatprep.mubr.bf16.mxu0 %v511
  %1007 = vmatmul.mubr.bf16.gmra.mrb[0].mxu0 %v510
  %v1008 = vpop.f32.mrb[0].mxu0
  %v1009 = vadd.f32 %v152, %v1008
  %v1010 = vpop.f32.mrb[0].mxu0
  %v1011 = vpop.f32.mrb[0].mxu0
  %v1012 = vadd.f32 %v152, %v1011
  %v1013 = vpop.f32.mrb[0].mxu0
  %1014 = vmatprep.mubr.bf16.mxu0 %v513
  %1015 = vmatmul.mubr.bf16.gmra.mrb[0].mxu0 %v512
  %v1016 = vpop.f32.mrb[0].mxu0
  %v1017 = vadd.f32 %v152, %v1016
  %v1018 = vpop.f32.mrb[0].mxu0
  %v1019 = vpop.f32.mrb[0].mxu0
  %v1020 = vadd.f32 %v152, %v1019
  %v1021 = vpop.f32.mrb[0].mxu0
  %1022 = vmatprep.mubr.bf16.mxu0 %v515
  %1023 = vmatmul.mubr.bf16.gmra.mrb[0].mxu0 %v514
  %v1024 = vpop.f32.mrb[0].mxu0
  %v1025 = vadd.f32 %v152, %v1024
  %v1026 = vpop.f32.mrb[0].mxu0
  %v1027 = vpop.f32.mrb[0].mxu0
  %v1028 = vadd.f32 %v152, %v1027
  %v1029 = vpop.f32.mrb[0].mxu0
  %1030 = vmatprep.mubr.bf16.mxu0 %v517
  %1031 = vmatmul.mubr.bf16.gmra.mrb[0].mxu0 %v516
  %v1032 = vpop.f32.mrb[0].mxu0
  %v1033 = vadd.f32 %v152, %v1032
  %v1034 = vpop.f32.mrb[0].mxu0
  %v1035 = vpop.f32.mrb[0].mxu0
  %v1036 = vadd.f32 %v152, %v1035
  %v1037 = vpop.f32.mrb[0].mxu0
  %1038 = vmatprep.mubr.bf16.mxu0 %v519
  %1039 = vmatmul.mubr.bf16.gmra.mrb[0].mxu0 %v518
  %v1040 = vpop.f32.mrb[0].mxu0
  %v1041 = vadd.f32 %v152, %v1040
  %v1042 = vpop.f32.mrb[0].mxu0
  %v1043 = vpop.f32.mrb[0].mxu0
  %v1044 = vadd.f32 %v152, %v1043
  %v1045 = vpop.f32.mrb[0].mxu0
  %1046 = vmatprep.mubr.bf16.mxu0 %v521
  %1047 = vmatmul.mubr.bf16.gmra.mrb[0].mxu0 %v520
  %v1048 = vpop.f32.mrb[0].mxu0
  %v1049 = vadd.f32 %v152, %v1048
  %v1050 = vpop.f32.mrb[0].mxu0
  %v1051 = vpop.f32.mrb[0].mxu0
  %v1052 = vadd.f32 %v152, %v1051
  %v1053 = vpop.f32.mrb[0].mxu0
  %1054 = vmatprep.mubr.bf16.mxu0 %v523
  %1055 = vmatmul.mubr.bf16.gmra.mrb[0].mxu0 %v522
  %v1056 = vpop.f32.mrb[0].mxu0
  %v1057 = vadd.f32 %v152, %v1056
  %v1058 = vpop.f32.mrb[0].mxu0
  %v1059 = vpop.f32.mrb[0].mxu0
  %v1060 = vadd.f32 %v152, %v1059
  %v1061 = vpop.f32.mrb[0].mxu0
  %1062 = vmatprep.mubr.bf16.mxu0 %v525
  %1063 = vmatmul.mubr.bf16.gmra.mrb[0].mxu0 %v524
  %v1064 = vpop.f32.mrb[0].mxu0
  %v1065 = vadd.f32 %v152, %v1064
  %v1066 = vpop.f32.mrb[0].mxu0
  %v1067 = vpop.f32.mrb[0].mxu0
  %v1068 = vadd.f32 %v152, %v1067
  %v1069 = vpop.f32.mrb[0].mxu0
  %1070 = vmatprep.mubr.bf16.mxu0 %v527
  %1071 = vmatmul.mubr.bf16.gmra.mrb[0].mxu0 %v526
  %v1072 = vpop.f32.mrb[0].mxu0
  %v1073 = vadd.f32 %v152, %v1072
  %v1074 = vpop.f32.mrb[0].mxu0
  %v1075 = vpop.f32.mrb[0].mxu0
  %v1076 = vadd.f32 %v152, %v1075
  %v1077 = vpop.f32.mrb[0].mxu0
  %1078 = vmatprep.mubr.bf16.mxu0 %v529
  %1079 = vmatmul.mubr.bf16.gmra.mrb[0].mxu0 %v528
  %v1080 = vpop.f32.mrb[0].mxu0
  %v1081 = vadd.f32 %v152, %v1080
  %v1082 = vpop.f32.mrb[0].mxu0
  %v1083 = vpop.f32.mrb[0].mxu0
  %v1084 = vadd.f32 %v152, %v1083
  %v1085 = vpop.f32.mrb[0].mxu0
  %1086 = vmatprep.mubr.bf16.mxu0 %v531
  %1087 = vmatmul.mubr.bf16.gmra.mrb[0].mxu0 %v530
  %v1088 = vpop.f32.mrb[0].mxu0
  %v1089 = vadd.f32 %v152, %v1088
  %v1090 = vpop.f32.mrb[0].mxu0
  %v1091 = vpop.f32.mrb[0].mxu0
  %v1092 = vadd.f32 %v152, %v1091
  %v1093 = vpop.f32.mrb[0].mxu0
  %1094 = vmatprep.mubr.bf16.mxu0 %v533
  %1095 = vmatmul.mubr.bf16.gmra.mrb[0].mxu0 %v532
  %v1096 = vpop.f32.mrb[0].mxu0
  %v1097 = vadd.f32 %v152, %v1096
  %v1098 = vpop.f32.mrb[0].mxu0
  %v1099 = vpop.f32.mrb[0].mxu0
  %v1100 = vadd.f32 %v152, %v1099
  %v1101 = vpop.f32.mrb[0].mxu0
  %1102 = vmatprep.mubr.bf16.mxu0 %v535
  %1103 = vmatmul.mubr.bf16.gmra.mrb[0].mxu0 %v534
  %v1104 = vpop.f32.mrb[0].mxu0
  %v1105 = vadd.f32 %v152, %v1104
  %v1106 = vpop.f32.mrb[0].mxu0
  %v1107 = vpop.f32.mrb[0].mxu0
  %v1108 = vadd.f32 %v152, %v1107
  %v1109 = vpop.f32.mrb[0].mxu0
  %1110 = vmatprep.mubr.bf16.mxu0 %v537
  %1111 = vmatmul.mubr.bf16.gmra.mrb[0].mxu0 %v536
  %v1112 = vpop.f32.mrb[0].mxu0
  %v1113 = vadd.f32 %v152, %v1112
  %v1114 = vpop.f32.mrb[0].mxu0
  %v1115 = vpop.f32.mrb[0].mxu0
  %v1116 = vadd.f32 %v152, %v1115
  %v1117 = vpop.f32.mrb[0].mxu0
  %1118 = vmatprep.mubr.bf16.mxu0 %v539
  %1119 = vmatmul.mubr.bf16.gmra.mrb[0].mxu0 %v538
  %v1120 = vpop.f32.mrb[0].mxu0
  %v1121 = vadd.f32 %v152, %v1120
  %v1122 = vpop.f32.mrb[0].mxu0
  %v1123 = vpop.f32.mrb[0].mxu0
  %v1124 = vadd.f32 %v152, %v1123
  %v1125 = vpop.f32.mrb[0].mxu0
  %1126 = vmatprep.mubr.bf16.mxu0 %v541
  %1127 = vmatmul.mubr.bf16.gmra.mrb[0].mxu0 %v540
  %v1128 = vpop.f32.mrb[0].mxu0
  %v1129 = vadd.f32 %v152, %v1128
  %v1130 = vpop.f32.mrb[0].mxu0
  %v1131 = vpop.f32.mrb[0].mxu0
  %v1132 = vadd.f32 %v152, %v1131
  %v1133 = vpop.f32.mrb[0].mxu0
  %1134 = vmatprep.mubr.bf16.mxu0 %v543
  %1135 = vmatmul.mubr.bf16.gmra.mrb[0].mxu0 %v542
  %v1136 = vpop.f32.mrb[0].mxu0
  %v1137 = vadd.f32 %v152, %v1136
  %v1138 = vpop.f32.mrb[0].mxu0
  %v1139 = vpop.f32.mrb[0].mxu0
  %v1140 = vadd.f32 %v152, %v1139
  %v1141 = vpop.f32.mrb[0].mxu0
  %1142 = vmatprep.mubr.bf16.mxu0 %v545
  %1143 = vmatmul.mubr.bf16.gmra.mrb[0].mxu0 %v544
  %v1144 = vpop.f32.mrb[0].mxu0
  %v1145 = vadd.f32 %v152, %v1144
  %v1146 = vpop.f32.mrb[0].mxu0
  %v1147 = vpop.f32.mrb[0].mxu0
  %v1148 = vadd.f32 %v152, %v1147
  %v1149 = vpop.f32.mrb[0].mxu0
  %1150 = vmatprep.mubr.bf16.mxu0 %v547
  %1151 = vmatmul.mubr.bf16.gmra.mrb[0].mxu0 %v546
  %v1152 = vpop.f32.mrb[0].mxu0
  %v1153 = vadd.f32 %v152, %v1152
  %v1154 = vpop.f32.mrb[0].mxu0
  %v1155 = vpop.f32.mrb[0].mxu0
  %v1156 = vadd.f32 %v152, %v1155
  %v1157 = vpop.f32.mrb[0].mxu0
  %1158 = vmatprep.mubr.bf16.mxu0 %v549
  %1159 = vmatmul.mubr.bf16.gmra.mrb[0].mxu0 %v548
  %v1160 = vpop.f32.mrb[0].mxu0
  %v1161 = vadd.f32 %v152, %v1160
  %v1162 = vpop.f32.mrb[0].mxu0
  %v1163 = vpop.f32.mrb[0].mxu0
  %v1164 = vadd.f32 %v152, %v1163
  %v1165 = vpop.f32.mrb[0].mxu0
  %1166 = vmatprep.mubr.bf16.mxu0 %v551
  %1167 = vmatmul.mubr.bf16.gmra.mrb[0].mxu0 %v550
  %v1168 = vpop.f32.mrb[0].mxu0
  %v1169 = vadd.f32 %v152, %v1168
  %v1170 = vpop.f32.mrb[0].mxu0
  %v1171 = vpop.f32.mrb[0].mxu0
  %v1172 = vadd.f32 %v152, %v1171
  %v1173 = vpop.f32.mrb[0].mxu0
  %1174 = vmatprep.mubr.bf16.mxu0 %v553
  %1175 = vmatmul.mubr.bf16.gmra.mrb[0].mxu0 %v552
  %v1176 = vpop.f32.mrb[0].mxu0
  %v1177 = vadd.f32 %v152, %v1176
  %v1178 = vpop.f32.mrb[0].mxu0
  %v1179 = vpop.f32.mrb[0].mxu0
  %v1180 = vadd.f32 %v152, %v1179
  %v1181 = vpop.f32.mrb[0].mxu0
  %1182 = vdwg.mxu0
  %v1183 = vmax.f32 %v785, 0.0
  %v1184 = vmax.f32 %v788, 0.0
  %v1185 = vmax.f32 %v793, 0.0
  %v1186 = vmax.f32 %v796, 0.0
  %v1187 = vmax.f32 %v801, 0.0
  %v1188 = vmax.f32 %v804, 0.0
  %v1189 = vmax.f32 %v809, 0.0
  %v1190 = vmax.f32 %v812, 0.0
  %v1191 = vmax.f32 %v817, 0.0
  %v1192 = vmax.f32 %v820, 0.0
  %v1193 = vmax.f32 %v825, 0.0
  %v1194 = vmax.f32 %v828, 0.0
  %v1195 = vmax.f32 %v833, 0.0
  %v1196 = vmax.f32 %v836, 0.0
  %v1197 = vmax.f32 %v841, 0.0
  %v1198 = vmax.f32 %v844, 0.0
  %v1199 = vmax.f32 %v849, 0.0
  %v1200 = vmax.f32 %v852, 0.0
  %v1201 = vmax.f32 %v857, 0.0
  %v1202 = vmax.f32 %v860, 0.0
  %v1203 = vmax.f32 %v865, 0.0
  %v1204 = vmax.f32 %v868, 0.0
  %v1205 = vmax.f32 %v873, 0.0
  %v1206 = vmax.f32 %v876, 0.0
  %v1207 = vmax.f32 %v881, 0.0
  %v1208 = vmax.f32 %v884, 0.0
  %v1209 = vmax.f32 %v889, 0.0
  %v1210 = vmax.f32 %v892, 0.0
  %v1211 = vmax.f32 %v897, 0.0
  %v1212 = vmax.f32 %v900, 0.0
  %v1213 = vmax.f32 %v905, 0.0
  %v1214 = vmax.f32 %v908, 0.0
  %v1215 = vmax.f32 %v913, 0.0
  %v1216 = vmax.f32 %v916, 0.0
  %v1217 = vmax.f32 %v921, 0.0
  %v1218 = vmax.f32 %v924, 0.0
  %v1219 = vmax.f32 %v929, 0.0
  %v1220 = vmax.f32 %v932, 0.0
  %v1221 = vmax.f32 %v937, 0.0
  %v1222 = vmax.f32 %v940, 0.0
  %v1223 = vmax.f32 %v945, 0.0
  %v1224 = vmax.f32 %v948, 0.0
  %v1225 = vmax.f32 %v953, 0.0
  %v1226 = vmax.f32 %v956, 0.0
  %v1227 = vmax.f32 %v961, 0.0
  %v1228 = vmax.f32 %v964, 0.0
  %v1229 = vmax.f32 %v969, 0.0
  %v1230 = vmax.f32 %v972, 0.0
  %v1231 = vmax.f32 %v977, 0.0
  %v1232 = vmax.f32 %v980, 0.0
  %v1233 = vmax.f32 %v985, 0.0
  %v1234 = vmax.f32 %v988, 0.0
  %v1235 = vmax.f32 %v993, 0.0
  %v1236 = vmax.f32 %v996, 0.0
  %v1237 = vmax.f32 %v1001, 0.0
  %v1238 = vmax.f32 %v1004, 0.0
  %v1239 = vmax.f32 %v1009, 0.0
  %v1240 = vmax.f32 %v1012, 0.0
  %v1241 = vmax.f32 %v1017, 0.0
  %v1242 = vmax.f32 %v1020, 0.0
  %v1243 = vmax.f32 %v1025, 0.0
  %v1244 = vmax.f32 %v1028, 0.0
  %v1245 = vmax.f32 %v1033, 0.0
  %v1246 = vmax.f32 %v1036, 0.0
  %v1247 = vmax.f32 %v1041, 0.0
  %v1248 = vmax.f32 %v1044, 0.0
  %v1249 = vmax.f32 %v1049, 0.0
  %v1250 = vmax.f32 %v1052, 0.0
  %v1251 = vmax.f32 %v1057, 0.0
  %v1252 = vmax.f32 %v1060, 0.0
  %v1253 = vmax.f32 %v1065, 0.0
  %v1254 = vmax.f32 %v1068, 0.0
  %v1255 = vmax.f32 %v1073, 0.0
  %v1256 = vmax.f32 %v1076, 0.0
  %v1257 = vmax.f32 %v1081, 0.0
  %v1258 = vmax.f32 %v1084, 0.0
  %v1259 = vmax.f32 %v1089, 0.0
  %v1260 = vmax.f32 %v1092, 0.0
  %v1261 = vmax.f32 %v1097, 0.0
  %v1262 = vmax.f32 %v1100, 0.0
  %v1263 = vmax.f32 %v1105, 0.0
  %v1264 = vmax.f32 %v1108, 0.0
  %v1265 = vmax.f32 %v1113, 0.0
  %v1266 = vmax.f32 %v1116, 0.0
  %v1267 = vmax.f32 %v1121, 0.0
  %v1268 = vmax.f32 %v1124, 0.0
  %v1269 = vmax.f32 %v1129, 0.0
  %v1270 = vmax.f32 %v1132, 0.0
  %v1271 = vmax.f32 %v1137, 0.0
  %v1272 = vmax.f32 %v1140, 0.0
  %v1273 = vmax.f32 %v1145, 0.0
  %v1274 = vmax.f32 %v1148, 0.0
  %v1275 = vmax.f32 %v1153, 0.0
  %v1276 = vmax.f32 %v1156, 0.0
  %v1277 = vmax.f32 %v1161, 0.0
  %v1278 = vmax.f32 %v1164, 0.0
  %v1279 = vmax.f32 %v1169, 0.0
  %v1280 = vmax.f32 %v1172, 0.0
  %v1281 = vmax.f32 %v1177, 0.0
  %v1282 = vmax.f32 %v1180, 0.0
  %v1283 = vpack.c.bf16 %v1184, %v1183
  %v1284 = vpack.c.bf16 %v1186, %v1185
  %v1285 = vpack.c.bf16 %v1188, %v1187
  %v1286 = vpack.c.bf16 %v1190, %v1189
  %v1287 = vpack.c.bf16 %v1192, %v1191
  %v1288 = vpack.c.bf16 %v1194, %v1193
  %v1289 = vpack.c.bf16 %v1196, %v1195
  %v1290 = vpack.c.bf16 %v1198, %v1197
  %v1291 = vpack.c.bf16 %v1200, %v1199
  %v1292 = vpack.c.bf16 %v1202, %v1201
  %v1293 = vpack.c.bf16 %v1204, %v1203
  %v1294 = vpack.c.bf16 %v1206, %v1205
  %v1295 = vpack.c.bf16 %v1208, %v1207
  %v1296 = vpack.c.bf16 %v1210, %v1209
  %v1297 = vpack.c.bf16 %v1212, %v1211
  %v1298 = vpack.c.bf16 %v1214, %v1213
  %v1299 = vpack.c.bf16 %v1216, %v1215
  %v1300 = vpack.c.bf16 %v1218, %v1217
  %v1301 = vpack.c.bf16 %v1220, %v1219
  %v1302 = vpack.c.bf16 %v1222, %v1221
  %v1303 = vpack.c.bf16 %v1224, %v1223
  %v1304 = vpack.c.bf16 %v1226, %v1225
  %v1305 = vpack.c.bf16 %v1228, %v1227
  %v1306 = vpack.c.bf16 %v1230, %v1229
  %v1307 = vpack.c.bf16 %v1232, %v1231
  %v1308 = vpack.c.bf16 %v1234, %v1233
  %v1309 = vpack.c.bf16 %v1236, %v1235
  %v1310 = vpack.c.bf16 %v1238, %v1237
  %v1311 = vpack.c.bf16 %v1240, %v1239
  %v1312 = vpack.c.bf16 %v1242, %v1241
  %v1313 = vpack.c.bf16 %v1244, %v1243
  %v1314 = vpack.c.bf16 %v1246, %v1245
  %v1315 = vpack.c.bf16 %v1248, %v1247
  %v1316 = vpack.c.bf16 %v1250, %v1249
  %v1317 = vpack.c.bf16 %v1252, %v1251
  %v1318 = vpack.c.bf16 %v1254, %v1253
  %v1319 = vpack.c.bf16 %v1256, %v1255
  %v1320 = vpack.c.bf16 %v1258, %v1257
  %v1321 = vpack.c.bf16 %v1260, %v1259
  %v1322 = vpack.c.bf16 %v1262, %v1261
  %v1323 = vpack.c.bf16 %v1264, %v1263
  %v1324 = vpack.c.bf16 %v1266, %v1265
  %v1325 = vpack.c.bf16 %v1268, %v1267
  %v1326 = vpack.c.bf16 %v1270, %v1269
  %v1327 = vpack.c.bf16 %v1272, %v1271
  %v1328 = vpack.c.bf16 %v1274, %v1273
  %v1329 = vpack.c.bf16 %v1276, %v1275
  %v1330 = vpack.c.bf16 %v1278, %v1277
  %v1331 = vpack.c.bf16 %v1280, %v1279
  %v1332 = vpack.c.bf16 %v1282, %v1281
  %v1383 = vunpack.c.l.b16 %v1283
  %v1384 = vunpack.c.h.b16 %v1283
  %v1385 = vunpack.c.l.b16 %v1284
  %v1386 = vunpack.c.h.b16 %v1284
  %v1387 = vunpack.c.l.b16 %v1285
  %v1388 = vunpack.c.h.b16 %v1285
  %v1389 = vunpack.c.l.b16 %v1286
  %v1390 = vunpack.c.h.b16 %v1286
  %v1391 = vunpack.c.l.b16 %v1287
  %v1392 = vunpack.c.h.b16 %v1287
  %v1393 = vunpack.c.l.b16 %v1288
  %v1394 = vunpack.c.h.b16 %v1288
  %v1395 = vunpack.c.l.b16 %v1289
  %v1396 = vunpack.c.h.b16 %v1289
  %v1397 = vunpack.c.l.b16 %v1290
  %v1398 = vunpack.c.h.b16 %v1290
  %v1399 = vunpack.c.l.b16 %v1291
  %v1400 = vunpack.c.h.b16 %v1291
  %v1401 = vunpack.c.l.b16 %v1292
  %v1402 = vunpack.c.h.b16 %v1292
  %v1403 = vunpack.c.l.b16 %v1293
  %v1404 = vunpack.c.h.b16 %v1293
  %v1405 = vunpack.c.l.b16 %v1294
  %v1406 = vunpack.c.h.b16 %v1294
  %v1407 = vunpack.c.l.b16 %v1295
  %v1408 = vunpack.c.h.b16 %v1295
  %v1409 = vunpack.c.l.b16 %v1296
  %v1410 = vunpack.c.h.b16 %v1296
  %v1411 = vunpack.c.l.b16 %v1297
  %v1412 = vunpack.c.h.b16 %v1297
  %v1413 = vunpack.c.l.b16 %v1298
  %v1414 = vunpack.c.h.b16 %v1298
  %v1415 = vunpack.c.l.b16 %v1299
  %v1416 = vunpack.c.h.b16 %v1299
  %v1417 = vunpack.c.l.b16 %v1300
  %v1418 = vunpack.c.h.b16 %v1300
  %v1419 = vunpack.c.l.b16 %v1301
  %v1420 = vunpack.c.h.b16 %v1301
  %v1421 = vunpack.c.l.b16 %v1302
  %v1422 = vunpack.c.h.b16 %v1302
  %v1423 = vunpack.c.l.b16 %v1303
  %v1424 = vunpack.c.h.b16 %v1303
  %v1425 = vunpack.c.l.b16 %v1304
  %v1426 = vunpack.c.h.b16 %v1304
  %v1427 = vunpack.c.l.b16 %v1305
  %v1428 = vunpack.c.h.b16 %v1305
  %v1429 = vunpack.c.l.b16 %v1306
  %v1430 = vunpack.c.h.b16 %v1306
  %v1431 = vunpack.c.l.b16 %v1307
  %v1432 = vunpack.c.h.b16 %v1307
  %v1433 = vunpack.c.l.b16 %v1308
  %v1434 = vunpack.c.h.b16 %v1308
  %v1435 = vunpack.c.l.b16 %v1309
  %v1436 = vunpack.c.h.b16 %v1309
  %v1437 = vunpack.c.l.b16 %v1310
  %v1438 = vunpack.c.h.b16 %v1310
  %v1439 = vunpack.c.l.b16 %v1311
  %v1440 = vunpack.c.h.b16 %v1311
  %v1441 = vunpack.c.l.b16 %v1312
  %v1442 = vunpack.c.h.b16 %v1312
  %v1443 = vunpack.c.l.b16 %v1313
  %v1444 = vunpack.c.h.b16 %v1313
  %v1445 = vunpack.c.l.b16 %v1314
  %v1446 = vunpack.c.h.b16 %v1314
  %v1447 = vunpack.c.l.b16 %v1315
  %v1448 = vunpack.c.h.b16 %v1315
  %v1449 = vunpack.c.l.b16 %v1316
  %v1450 = vunpack.c.h.b16 %v1316
  %v1451 = vunpack.c.l.b16 %v1317
  %v1452 = vunpack.c.h.b16 %v1317
  %v1453 = vunpack.c.l.b16 %v1318
  %v1454 = vunpack.c.h.b16 %v1318
  %v1455 = vunpack.c.l.b16 %v1319
  %v1456 = vunpack.c.h.b16 %v1319
  %v1457 = vunpack.c.l.b16 %v1320
  %v1458 = vunpack.c.h.b16 %v1320
  %v1459 = vunpack.c.l.b16 %v1321
  %v1460 = vunpack.c.h.b16 %v1321
  %v1461 = vunpack.c.l.b16 %v1322
  %v1462 = vunpack.c.h.b16 %v1322
  %v1463 = vunpack.c.l.b16 %v1323
  %v1464 = vunpack.c.h.b16 %v1323
  %v1465 = vunpack.c.l.b16 %v1324
  %v1466 = vunpack.c.h.b16 %v1324
  %v1467 = vunpack.c.l.b16 %v1325
  %v1468 = vunpack.c.h.b16 %v1325
  %v1469 = vunpack.c.l.b16 %v1326
  %v1470 = vunpack.c.h.b16 %v1326
  %v1471 = vunpack.c.l.b16 %v1327
  %v1472 = vunpack.c.h.b16 %v1327
  %v1473 = vunpack.c.l.b16 %v1328
  %v1474 = vunpack.c.h.b16 %v1328
  %v1475 = vunpack.c.l.b16 %v1329
  %v1476 = vunpack.c.h.b16 %v1329
  %v1477 = vunpack.c.l.b16 %v1330
  %v1478 = vunpack.c.h.b16 %v1330
  %v1479 = vunpack.c.l.b16 %v1331
  %v1480 = vunpack.c.h.b16 %v1331
  %v1481 = vunpack.c.l.b16 %v1332
  %v1482 = vunpack.c.h.b16 %v1332
  %v1483 = vpack.c.b16 %v1383, %v1383
  %v1484 = vpack.c.b16 %v1384, %v1384
  %v1485 = vpack.c.b16 %v1385, %v1385
  %v1486 = vpack.c.b16 %v1386, %v1386
  %v1487 = vpack.c.b16 %v1387, %v1387
  %v1488 = vpack.c.b16 %v1388, %v1388
  %v1489 = vpack.c.b16 %v1389, %v1389
  %v1490 = vpack.c.b16 %v1390, %v1390
  %v1491 = vpack.c.b16 %v1391, %v1391
  %v1492 = vpack.c.b16 %v1392, %v1392
  %v1493 = vpack.c.b16 %v1393, %v1393
  %v1494 = vpack.c.b16 %v1394, %v1394
  %v1495 = vpack.c.b16 %v1395, %v1395
  %v1496 = vpack.c.b16 %v1396, %v1396
  %v1497 = vpack.c.b16 %v1397, %v1397
  %v1498 = vpack.c.b16 %v1398, %v1398
  %v1499 = vpack.c.b16 %v1399, %v1399
  %v1500 = vpack.c.b16 %v1400, %v1400
  %v1501 = vpack.c.b16 %v1401, %v1401
  %v1502 = vpack.c.b16 %v1402, %v1402
  %v1503 = vpack.c.b16 %v1403, %v1403
  %v1504 = vpack.c.b16 %v1404, %v1404
  %v1505 = vpack.c.b16 %v1405, %v1405
  %v1506 = vpack.c.b16 %v1406, %v1406
  %v1507 = vpack.c.b16 %v1407, %v1407
  %v1508 = vpack.c.b16 %v1408, %v1408
  %v1509 = vpack.c.b16 %v1409, %v1409
  %v1510 = vpack.c.b16 %v1410, %v1410
  %v1511 = vpack.c.b16 %v1411, %v1411
  %v1512 = vpack.c.b16 %v1412, %v1412
  %v1513 = vpack.c.b16 %v1413, %v1413
  %v1514 = vpack.c.b16 %v1414, %v1414
  %v1515 = vpack.c.b16 %v1415, %v1415
  %v1516 = vpack.c.b16 %v1416, %v1416
  %v1517 = vpack.c.b16 %v1417, %v1417
  %v1518 = vpack.c.b16 %v1418, %v1418
  %v1519 = vpack.c.b16 %v1419, %v1419
  %v1520 = vpack.c.b16 %v1420, %v1420
  %v1521 = vpack.c.b16 %v1421, %v1421
  %v1522 = vpack.c.b16 %v1422, %v1422
  %v1523 = vpack.c.b16 %v1423, %v1423
  %v1524 = vpack.c.b16 %v1424, %v1424
  %v1525 = vpack.c.b16 %v1425, %v1425
  %v1526 = vpack.c.b16 %v1426, %v1426
  %v1527 = vpack.c.b16 %v1427, %v1427
  %v1528 = vpack.c.b16 %v1428, %v1428
  %v1529 = vpack.c.b16 %v1429, %v1429
  %v1530 = vpack.c.b16 %v1430, %v1430
  %v1531 = vpack.c.b16 %v1431, %v1431
  %v1532 = vpack.c.b16 %v1432, %v1432
  %v1533 = vpack.c.b16 %v1433, %v1433
  %v1534 = vpack.c.b16 %v1434, %v1434
  %v1535 = vpack.c.b16 %v1435, %v1435
  %v1536 = vpack.c.b16 %v1436, %v1436
  %v1537 = vpack.c.b16 %v1437, %v1437
  %v1538 = vpack.c.b16 %v1438, %v1438
  %v1539 = vpack.c.b16 %v1439, %v1439
  %v1540 = vpack.c.b16 %v1440, %v1440
  %v1541 = vpack.c.b16 %v1441, %v1441
  %v1542 = vpack.c.b16 %v1442, %v1442
  %v1543 = vpack.c.b16 %v1443, %v1443
  %v1544 = vpack.c.b16 %v1444, %v1444
  %v1545 = vpack.c.b16 %v1445, %v1445
  %v1546 = vpack.c.b16 %v1446, %v1446
  %v1547 = vpack.c.b16 %v1447, %v1447
  %v1548 = vpack.c.b16 %v1448, %v1448
  %v1549 = vpack.c.b16 %v1449, %v1449
  %v1550 = vpack.c.b16 %v1450, %v1450
  %v1551 = vpack.c.b16 %v1451, %v1451
  %v1552 = vpack.c.b16 %v1452, %v1452
  %v1553 = vpack.c.b16 %v1453, %v1453
  %v1554 = vpack.c.b16 %v1454, %v1454
  %v1555 = vpack.c.b16 %v1455, %v1455
  %v1556 = vpack.c.b16 %v1456, %v1456
  %v1557 = vpack.c.b16 %v1457, %v1457
  %v1558 = vpack.c.b16 %v1458, %v1458
  %v1559 = vpack.c.b16 %v1459, %v1459
  %v1560 = vpack.c.b16 %v1460, %v1460
  %v1561 = vpack.c.b16 %v1461, %v1461
  %v1562 = vpack.c.b16 %v1462, %v1462
  %v1563 = vpack.c.b16 %v1463, %v1463
  %v1564 = vpack.c.b16 %v1464, %v1464
  %v1565 = vpack.c.b16 %v1465, %v1465
  %v1566 = vpack.c.b16 %v1466, %v1466
  %v1567 = vpack.c.b16 %v1467, %v1467
  %v1568 = vpack.c.b16 %v1468, %v1468
  %v1569 = vpack.c.b16 %v1469, %v1469
  %v1570 = vpack.c.b16 %v1470, %v1470
  %v1571 = vpack.c.b16 %v1471, %v1471
  %v1572 = vpack.c.b16 %v1472, %v1472
  %v1573 = vpack.c.b16 %v1473, %v1473
  %v1574 = vpack.c.b16 %v1474, %v1474
  %v1575 = vpack.c.b16 %v1475, %v1475
  %v1576 = vpack.c.b16 %v1476, %v1476
  %v1577 = vpack.c.b16 %v1477, %v1477
  %v1578 = vpack.c.b16 %v1478, %v1478
  %v1579 = vpack.c.b16 %v1479, %v1479
  %v1580 = vpack.c.b16 %v1480, %v1480
  %v1581 = vpack.c.b16 %v1481, %v1481
  %v1582 = vpack.c.b16 %v1482, %v1482
  %1683 = vst [vmem:[%s3] sm:$0xf] %v1483
  %1684 = vst [vmem:[%s3 + $0x4] sm:$0xf] %v1484
  %1685 = vst [vmem:[%s3 + $0x8] sm:$0xf] %v1485
  %1686 = vst [vmem:[%s3 + $0xc] sm:$0xf] %v1486
  %1687 = vst [vmem:[%s3 + $0x10] sm:$0xf] %v1487
  %1688 = vst [vmem:[%s3 + $0x14] sm:$0xf] %v1488
  %1689 = vst [vmem:[%s3 + $0x18] sm:$0xf] %v1489
  %1690 = vst [vmem:[%s3 + $0x1c] sm:$0xf] %v1490
  %1691 = vst [vmem:[%s3 + $0x20] sm:$0xf] %v1491
  %1692 = vst [vmem:[%s3 + $0x24] sm:$0xf] %v1492
  %1693 = vst [vmem:[%s3 + $0x28] sm:$0xf] %v1493
  %1694 = vst [vmem:[%s3 + $0x2c] sm:$0xf] %v1494
  %1695 = vst [vmem:[%s3 + $0x30] sm:$0xf] %v1495
  %1696 = vst [vmem:[%s3 + $0x34] sm:$0xf] %v1496
  %1697 = vst [vmem:[%s3 + $0x38] sm:$0xf] %v1497
  %1698 = vst [vmem:[%s3 + $0x3c] sm:$0xf] %v1498
  %1699 = vst [vmem:[%s3 + $0x40] sm:$0xf] %v1499
  %1700 = vst [vmem:[%s3 + $0x44] sm:$0xf] %v1500
  %1701 = vst [vmem:[%s3 + $0x48] sm:$0xf] %v1501
  %1702 = vst [vmem:[%s3 + $0x4c] sm:$0xf] %v1502
  %1703 = vst [vmem:[%s3 + $0x50] sm:$0xf] %v1503
  %1704 = vst [vmem:[%s3 + $0x54] sm:$0xf] %v1504
  %1705 = vst [vmem:[%s3 + $0x58] sm:$0xf] %v1505
  %1706 = vst [vmem:[%s3 + $0x5c] sm:$0xf] %v1506
  %1707 = vst [vmem:[%s3 + $0x60] sm:$0xf] %v1507
  %1708 = vst [vmem:[%s3 + $0x64] sm:$0xf] %v1508
  %1709 = vst [vmem:[%s3 + $0x68] sm:$0xf] %v1509
  %1710 = vst [vmem:[%s3 + $0x6c] sm:$0xf] %v1510
  %1711 = vst [vmem:[%s3 + $0x70] sm:$0xf] %v1511
  %1712 = vst [vmem:[%s3 + $0x74] sm:$0xf] %v1512
  %1713 = vst [vmem:[%s3 + $0x78] sm:$0xf] %v1513
  %1714 = vst [vmem:[%s3 + $0x7c] sm:$0xf] %v1514
  %1715 = vst [vmem:[%s3 + $0x80] sm:$0xf] %v1515
  %1716 = vst [vmem:[%s3 + $0x84] sm:$0xf] %v1516
  %1717 = vst [vmem:[%s3 + $0x88] sm:$0xf] %v1517
  %1718 = vst [vmem:[%s3 + $0x8c] sm:$0xf] %v1518
  %1719 = vst [vmem:[%s3 + $0x90] sm:$0xf] %v1519
  %1720 = vst [vmem:[%s3 + $0x94] sm:$0xf] %v1520
  %1721 = vst [vmem:[%s3 + $0x98] sm:$0xf] %v1521
  %1722 = vst [vmem:[%s3 + $0x9c] sm:$0xf] %v1522
  %1723 = vst [vmem:[%s3 + $0xa0] sm:$0xf] %v1523
  %1724 = vst [vmem:[%s3 + $0xa4] sm:$0xf] %v1524
  %1725 = vst [vmem:[%s3 + $0xa8] sm:$0xf] %v1525
  %1726 = vst [vmem:[%s3 + $0xac] sm:$0xf] %v1526
  %1727 = vst [vmem:[%s3 + $0xb0] sm:$0xf] %v1527
  %1728 = vst [vmem:[%s3 + $0xb4] sm:$0xf] %v1528
  %1729 = vst [vmem:[%s3 + $0xb8] sm:$0xf] %v1529
  %1730 = vst [vmem:[%s3 + $0xbc] sm:$0xf] %v1530
  %1731 = vst [vmem:[%s3 + $0xc0] sm:$0xf] %v1531
  %1732 = vst [vmem:[%s3 + $0xc4] sm:$0xf] %v1532
  %1733 = vst [vmem:[%s3 + $0xc8] sm:$0xf] %v1533
  %1734 = vst [vmem:[%s3 + $0xcc] sm:$0xf] %v1534
  %1735 = vst [vmem:[%s3 + $0xd0] sm:$0xf] %v1535
  %1736 = vst [vmem:[%s3 + $0xd4] sm:$0xf] %v1536
  %1737 = vst [vmem:[%s3 + $0xd8] sm:$0xf] %v1537
  %1738 = vst [vmem:[%s3 + $0xdc] sm:$0xf] %v1538
  %1739 = vst [vmem:[%s3 + $0xe0] sm:$0xf] %v1539
  %1740 = vst [vmem:[%s3 + $0xe4] sm:$0xf] %v1540
  %1741 = vst [vmem:[%s3 + $0xe8] sm:$0xf] %v1541
  %1742 = vst [vmem:[%s3 + $0xec] sm:$0xf] %v1542
  %1743 = vst [vmem:[%s3 + $0xf0] sm:$0xf] %v1543
  %1744 = vst [vmem:[%s3 + $0xf4] sm:$0xf] %v1544
  %1745 = vst [vmem:[%s3 + $0xf8] sm:$0xf] %v1545
  %1746 = vst [vmem:[%s3 + $0xfc] sm:$0xf] %v1546
  %1747 = vst [vmem:[%s3 + $0x100] sm:$0xf] %v1547
  %1748 = vst [vmem:[%s3 + $0x104] sm:$0xf] %v1548
  %1749 = vst [vmem:[%s3 + $0x108] sm:$0xf] %v1549
  %1750 = vst [vmem:[%s3 + $0x10c] sm:$0xf] %v1550
  %1751 = vst [vmem:[%s3 + $0x110] sm:$0xf] %v1551
  %1752 = vst [vmem:[%s3 + $0x114] sm:$0xf] %v1552
  %1753 = vst [vmem:[%s3 + $0x118] sm:$0xf] %v1553
  %1754 = vst [vmem:[%s3 + $0x11c] sm:$0xf] %v1554
  %1755 = vst [vmem:[%s3 + $0x120] sm:$0xf] %v1555
  %1756 = vst [vmem:[%s3 + $0x124] sm:$0xf] %v1556
  %1757 = vst [vmem:[%s3 + $0x128] sm:$0xf] %v1557
  %1758 = vst [vmem:[%s3 + $0x12c] sm:$0xf] %v1558
  %1759 = vst [vmem:[%s3 + $0x130] sm:$0xf] %v1559
  %1760 = vst [vmem:[%s3 + $0x134] sm:$0xf] %v1560
  %1761 = vst [vmem:[%s3 + $0x138] sm:$0xf] %v1561
  %1762 = vst [vmem:[%s3 + $0x13c] sm:$0xf] %v1562
  %1763 = vst [vmem:[%s3 + $0x140] sm:$0xf] %v1563
  %1764 = vst [vmem:[%s3 + $0x144] sm:$0xf] %v1564
  %1765 = vst [vmem:[%s3 + $0x148] sm:$0xf] %v1565
  %1766 = vst [vmem:[%s3 + $0x14c] sm:$0xf] %v1566
  %1767 = vst [vmem:[%s3 + $0x150] sm:$0xf] %v1567
  %1768 = vst [vmem:[%s3 + $0x154] sm:$0xf] %v1568
  %1769 = vst [vmem:[%s3 + $0x158] sm:$0xf] %v1569
  %1770 = vst [vmem:[%s3 + $0x15c] sm:$0xf] %v1570
  %1771 = vst [vmem:[%s3 + $0x160] sm:$0xf] %v1571
  %1772 = vst [vmem:[%s3 + $0x164] sm:$0xf] %v1572
  %1773 = vst [vmem:[%s3 + $0x168] sm:$0xf] %v1573
  %1774 = vst [vmem:[%s3 + $0x16c] sm:$0xf] %v1574
  %1775 = vst [vmem:[%s3 + $0x170] sm:$0xf] %v1575
  %1776 = vst [vmem:[%s3 + $0x174] sm:$0xf] %v1576
  %1777 = vst [vmem:[%s3 + $0x178] sm:$0xf] %v1577
  %1778 = vst [vmem:[%s3 + $0x17c] sm:$0xf] %v1578
  %1779 = vst [vmem:[%s3 + $0x180] sm:$0xf] %v1579
  %1780 = vst [vmem:[%s3 + $0x184] sm:$0xf] %v1580
  %1781 = vst [vmem:[%s3 + $0x188] sm:$0xf] %v1581
  %1782 = vst [vmem:[%s3 + $0x18c] sm:$0xf] %v1582
  // Predicated region
  $region14: #{dueling_dqn_forward.4} parent=0 // pred_check
    _
  $region15: #{dueling_dqn_forward.4} parent=0 // pred_check_branch
    %1784 = sbr.rel (0) target = $region17
  $region16: #{dueling_dqn_forward.4} parent=0 // pred_region
    _
  $region17: #{dueling_dqn_forward.4} parent=0 // pred_fallthru
    _
  // Predicated region
  $region18: #{dueling_dqn_forward.4} parent=0 // pred_check
    _
  $region19: #{dueling_dqn_forward.4} parent=0 // pred_check_branch
    %1786 = sbr.rel (0) target = $region21
  $region20: #{dueling_dqn_forward.4} parent=0 // pred_region
    _
  $region21: #{dueling_dqn_forward.4} parent=0 // pred_fallthru
    _

// kernel: dueling_dqn_forward.5
$region0: #{dueling_dqn_forward.5}
  #allocation0 [shape = 'u32[]', space=smem, size = 0x4, offset = 0x4, fixed_abs, tag = 'smem constant byte address 0x4 - core index']
  #allocation1 [shape = 'u32[144,128]{1,0:T(1,128)}', space=vmem, size = 0x12000, scoped, tag = 'internal scratch']
  %s0 = inlined_call_operand.vmem [shape: bf16[168,512], index: 0, kind: input, shape index: {}]
  %s1 = inlined_call_operand.vmem [shape: bf16[512,128], index: 1, kind: input, shape index: {}]
  %s2 = inlined_call_operand.vmem [shape: f32[1,128], index: 2, kind: input, shape index: {}]
  %s3 = inlined_call_operand.vmem [shape: bf16[168,128], index: 3, kind: output, shape index: {}]
  %s4 = sld [smem:[#allocation0]]
  $region22: #{dueling_dqn_forward.5} parent=0
    _
  %s6 = ssub.s32 1, %s4
  %s7 = scalar_select 0, %s6, %s4
  // Predicated region
  $region2: #{dueling_dqn_forward.5} parent=0 // pred_check
    _
  $region3: #{dueling_dqn_forward.5} parent=0 // pred_check_branch
    %9 = sbr.rel (0) target = $region5
  $region4: #{dueling_dqn_forward.5} parent=0 // pred_region
    _
  $region5: #{dueling_dqn_forward.5} parent=0 // pred_fallthru
    _
  // Predicated region
  $region6: #{dueling_dqn_forward.5} parent=0 // pred_check
    _
  $region7: #{dueling_dqn_forward.5} parent=0 // pred_check_branch
    %11 = sbr.rel (0) target = $region9
  $region8: #{dueling_dqn_forward.5} parent=0 // pred_region
    _
  $region9: #{dueling_dqn_forward.5} parent=0 // pred_fallthru
    _
  // Predicated region
  $region10: #{dueling_dqn_forward.5} parent=0 // pred_check
    _
  $region11: #{dueling_dqn_forward.5} parent=0 // pred_check_branch
    %13 = sbr.rel (0) target = $region13
  $region12: #{dueling_dqn_forward.5} parent=0 // pred_region
    _
  $region13: #{dueling_dqn_forward.5} parent=0 // pred_fallthru
    _
  %v15 = vld [vmem:[%s0] sm:$0xff]
  %v16 = vld [vmem:[%s0 + $0x8] sm:$0xff]
  %v17 = vld [vmem:[%s0 + $0x10] sm:$0xff]
  %v18 = vld [vmem:[%s0 + $0x18] sm:$0xff]
  %v19 = vld [vmem:[%s0 + $0x20] sm:$0xff]
  %v20 = vld [vmem:[%s0 + $0x28] sm:$0xff]
  %v21 = vld [vmem:[%s0 + $0x30] sm:$0xff]
  %v22 = vld [vmem:[%s0 + $0x38] sm:$0xff]
  %v23 = vld [vmem:[%s0 + $0x40] sm:$0xff]
  %v24 = vld [vmem:[%s0 + $0x48] sm:$0xff]
  %v25 = vld [vmem:[%s0 + $0x50] sm:$0xff]
  %v26 = vld [vmem:[%s0 + $0x58] sm:$0xff]
  %v27 = vld [vmem:[%s0 + $0x60] sm:$0xff]
  %v28 = vld [vmem:[%s0 + $0x68] sm:$0xff]
  %v29 = vld [vmem:[%s0 + $0x70] sm:$0xff]
  %v30 = vld [vmem:[%s0 + $0x78] sm:$0xff]
  %v31 = vld [vmem:[%s0 + $0x80] sm:$0xff]
  %v32 = vld [vmem:[%s0 + $0x88] sm:$0xff]
  %v33 = vld [vmem:[%s0 + $0x90] sm:$0xff]
  %v34 = vld [vmem:[%s0 + $0x98] sm:$0xff]
  %v35 = vld [vmem:[%s0 + $0xa0] sm:$0xff]
  %v36 = vld [vmem:[%s0 + $0xa8] sm:$0xff]
  %v37 = vld [vmem:[%s0 + $0xb0] sm:$0xff]
  %v38 = vld [vmem:[%s0 + $0xb8] sm:$0xff]
  %v39 = vld [vmem:[%s0 + $0xc0] sm:$0xff]
  %v40 = vld [vmem:[%s0 + $0xc8] sm:$0xff]
  %v41 = vld [vmem:[%s0 + $0xd0] sm:$0xff]
  %v42 = vld [vmem:[%s0 + $0xd8] sm:$0xff]
  %v43 = vld [vmem:[%s0 + $0xe0] sm:$0xff]
  %v44 = vld [vmem:[%s0 + $0xe8] sm:$0xff]
  %v45 = vld [vmem:[%s0 + $0xf0] sm:$0xff]
  %v46 = vld [vmem:[%s0 + $0xf8] sm:$0xff]
  %v47 = vld [vmem:[%s0 + $0x100] sm:$0xff]
  %v48 = vld [vmem:[%s0 + $0x108] sm:$0xff]
  %v49 = vld [vmem:[%s0 + $0x110] sm:$0xff]
  %v50 = vld [vmem:[%s0 + $0x118] sm:$0xff]
  %v51 = vld [vmem:[%s0 + $0x120] sm:$0xff]
  %v52 = vld [vmem:[%s0 + $0x128] sm:$0xff]
  %v53 = vld [vmem:[%s0 + $0x130] sm:$0xff]
  %v54 = vld [vmem:[%s0 + $0x138] sm:$0xff]
  %v55 = vld [vmem:[%s0 + $0x140] sm:$0xff]
  %v56 = vld [vmem:[%s0 + $0x148] sm:$0xff]
  %v57 = vld [vmem:[%s1] sm:$0xf]
  %v58 = vld [vmem:[%s1 + $0x4] sm:$0xf]
  %v59 = vld [vmem:[%s1 + $0x8] sm:$0xf]
  %v60 = vld [vmem:[%s1 + $0xc] sm:$0xf]
  %v61 = vld [vmem:[%s1 + $0x10] sm:$0xf]
  %v62 = vld [vmem:[%s1 + $0x14] sm:$0xf]
  %v63 = vld [vmem:[%s1 + $0x18] sm:$0xf]
  %v64 = vld [vmem:[%s1 + $0x1c] sm:$0xf]
  %v65 = vld [vmem:[%s1 + $0x20] sm:$0xf]
  %v66 = vld [vmem:[%s1 + $0x24] sm:$0xf]
  %v67 = vld [vmem:[%s1 + $0x28] sm:$0xf]
  %v68 = vld [vmem:[%s1 + $0x2c] sm:$0xf]
  %v69 = vld [vmem:[%s1 + $0x30] sm:$0xf]
  %v70 = vld [vmem:[%s1 + $0x34] sm:$0xf]
  %v71 = vld [vmem:[%s1 + $0x38] sm:$0xf]
  %v72 = vld [vmem:[%s1 + $0x3c] sm:$0xf]
  %v73 = vld [vmem:[%s1 + $0x40] sm:$0xf]
  %v74 = vld [vmem:[%s1 + $0x44] sm:$0xf]
  %v75 = vld [vmem:[%s1 + $0x48] sm:$0xf]
  %v76 = vld [vmem:[%s1 + $0x4c] sm:$0xf]
  %v77 = vld [vmem:[%s1 + $0x50] sm:$0xf]
  %v78 = vld [vmem:[%s1 + $0x54] sm:$0xf]
  %v79 = vld [vmem:[%s1 + $0x58] sm:$0xf]
  %v80 = vld [vmem:[%s1 + $0x5c] sm:$0xf]
  %v81 = vld [vmem:[%s1 + $0x60] sm:$0xf]
  %v82 = vld [vmem:[%s1 + $0x64] sm:$0xf]
  %v83 = vld [vmem:[%s1 + $0x68] sm:$0xf]
  %v84 = vld [vmem:[%s1 + $0x6c] sm:$0xf]
  %v85 = vld [vmem:[%s1 + $0x70] sm:$0xf]
  %v86 = vld [vmem:[%s1 + $0x74] sm:$0xf]
  %v87 = vld [vmem:[%s1 + $0x78] sm:$0xf]
  %v88 = vld [vmem:[%s1 + $0x7c] sm:$0xf]
  %v89 = vld [vmem:[%s1 + $0x80] sm:$0xf]
  %v90 = vld [vmem:[%s1 + $0x84] sm:$0xf]
  %v91 = vld [vmem:[%s1 + $0x88] sm:$0xf]
  %v92 = vld [vmem:[%s1 + $0x8c] sm:$0xf]
  %v93 = vld [vmem:[%s1 + $0x90] sm:$0xf]
  %v94 = vld [vmem:[%s1 + $0x94] sm:$0xf]
  %v95 = vld [vmem:[%s1 + $0x98] sm:$0xf]
  %v96 = vld [vmem:[%s1 + $0x9c] sm:$0xf]
  %v97 = vld [vmem:[%s1 + $0xa0] sm:$0xf]
  %v98 = vld [vmem:[%s1 + $0xa4] sm:$0xf]
  %v99 = vld [vmem:[%s1 + $0xa8] sm:$0xf]
  %v100 = vld [vmem:[%s1 + $0xac] sm:$0xf]
  %v101 = vld [vmem:[%s1 + $0xb0] sm:$0xf]
  %v102 = vld [vmem:[%s1 + $0xb4] sm:$0xf]
  %v103 = vld [vmem:[%s1 + $0xb8] sm:$0xf]
  %v104 = vld [vmem:[%s1 + $0xbc] sm:$0xf]
  %v105 = vld [vmem:[%s1 + $0xc0] sm:$0xf]
  %v106 = vld [vmem:[%s1 + $0xc4] sm:$0xf]
  %v107 = vld [vmem:[%s1 + $0xc8] sm:$0xf]
  %v108 = vld [vmem:[%s1 + $0xcc] sm:$0xf]
  %v109 = vld [vmem:[%s1 + $0xd0] sm:$0xf]
  %v110 = vld [vmem:[%s1 + $0xd4] sm:$0xf]
  %v111 = vld [vmem:[%s1 + $0xd8] sm:$0xf]
  %v112 = vld [vmem:[%s1 + $0xdc] sm:$0xf]
  %v113 = vld [vmem:[%s1 + $0xe0] sm:$0xf]
  %v114 = vld [vmem:[%s1 + $0xe4] sm:$0xf]
  %v115 = vld [vmem:[%s1 + $0xe8] sm:$0xf]
  %v116 = vld [vmem:[%s1 + $0xec] sm:$0xf]
  %v117 = vld [vmem:[%s1 + $0xf0] sm:$0xf]
  %v118 = vld [vmem:[%s1 + $0xf4] sm:$0xf]
  %v119 = vld [vmem:[%s1 + $0xf8] sm:$0xf]
  %v120 = vld [vmem:[%s1 + $0xfc] sm:$0xf]
  %v121 = vld [vmem:[%s2] sm:$0x1]
  %v123 = vlaneseq
  %v124 = vshrl.u32 %v123, 7
  %v125 = vsub.s32 0, %v124
  %v126 = vrot.slane %v121, %v125
  %v170 = vunpack.c.l.b16 %v15
  %v171 = vunpack.c.h.b16 %v15
  %v172 = vunpack.c.l.b16 %v16
  %v173 = vunpack.c.h.b16 %v16
  %v174 = vunpack.c.l.b16 %v17
  %v175 = vunpack.c.h.b16 %v17
  %v176 = vunpack.c.l.b16 %v18
  %v177 = vunpack.c.h.b16 %v18
  %v178 = vunpack.c.l.b16 %v19
  %v179 = vunpack.c.h.b16 %v19
  %v180 = vunpack.c.l.b16 %v20
  %v181 = vunpack.c.h.b16 %v20
  %v182 = vunpack.c.l.b16 %v21
  %v183 = vunpack.c.h.b16 %v21
  %v184 = vunpack.c.l.b16 %v22
  %v185 = vunpack.c.h.b16 %v22
  %v186 = vunpack.c.l.b16 %v23
  %v187 = vunpack.c.h.b16 %v23
  %v188 = vunpack.c.l.b16 %v24
  %v189 = vunpack.c.h.b16 %v24
  %v190 = vunpack.c.l.b16 %v25
  %v191 = vunpack.c.h.b16 %v25
  %v192 = vunpack.c.l.b16 %v26
  %v193 = vunpack.c.h.b16 %v26
  %v194 = vunpack.c.l.b16 %v27
  %v195 = vunpack.c.h.b16 %v27
  %v196 = vunpack.c.l.b16 %v28
  %v197 = vunpack.c.h.b16 %v28
  %v198 = vunpack.c.l.b16 %v29
  %v199 = vunpack.c.h.b16 %v29
  %v200 = vunpack.c.l.b16 %v30
  %v201 = vunpack.c.h.b16 %v30
  %v202 = vunpack.c.l.b16 %v31
  %v203 = vunpack.c.h.b16 %v31
  %v204 = vunpack.c.l.b16 %v32
  %v205 = vunpack.c.h.b16 %v32
  %v206 = vunpack.c.l.b16 %v33
  %v207 = vunpack.c.h.b16 %v33
  %v208 = vunpack.c.l.b16 %v34
  %v209 = vunpack.c.h.b16 %v34
  %v210 = vunpack.c.l.b16 %v35
  %v211 = vunpack.c.h.b16 %v35
  %v212 = vunpack.c.l.b16 %v36
  %v213 = vunpack.c.h.b16 %v36
  %v214 = vunpack.c.l.b16 %v37
  %v215 = vunpack.c.h.b16 %v37
  %v216 = vunpack.c.l.b16 %v38
  %v217 = vunpack.c.h.b16 %v38
  %v218 = vunpack.c.l.b16 %v39
  %v219 = vunpack.c.h.b16 %v39
  %v220 = vunpack.c.l.b16 %v40
  %v221 = vunpack.c.h.b16 %v40
  %v222 = vunpack.c.l.b16 %v41
  %v223 = vunpack.c.h.b16 %v41
  %v224 = vunpack.c.l.b16 %v42
  %v225 = vunpack.c.h.b16 %v42
  %v226 = vunpack.c.l.b16 %v43
  %v227 = vunpack.c.h.b16 %v43
  %v228 = vunpack.c.l.b16 %v44
  %v229 = vunpack.c.h.b16 %v44
  %v230 = vunpack.c.l.b16 %v45
  %v231 = vunpack.c.h.b16 %v45
  %v232 = vunpack.c.l.b16 %v46
  %v233 = vunpack.c.h.b16 %v46
  %v234 = vunpack.c.l.b16 %v47
  %v235 = vunpack.c.h.b16 %v47
  %v236 = vunpack.c.l.b16 %v48
  %v237 = vunpack.c.h.b16 %v48
  %v238 = vunpack.c.l.b16 %v49
  %v239 = vunpack.c.h.b16 %v49
  %v240 = vunpack.c.l.b16 %v50
  %v241 = vunpack.c.h.b16 %v50
  %v242 = vunpack.c.l.b16 %v51
  %v243 = vunpack.c.h.b16 %v51
  %v244 = vunpack.c.l.b16 %v52
  %v245 = vunpack.c.h.b16 %v52
  %v246 = vunpack.c.l.b16 %v53
  %v247 = vunpack.c.h.b16 %v53
  %v248 = vunpack.c.l.b16 %v54
  %v249 = vunpack.c.h.b16 %v54
  %v250 = vunpack.c.l.b16 %v55
  %v251 = vunpack.c.h.b16 %v55
  %v252 = vunpack.c.l.b16 %v56
  %v253 = vunpack.c.h.b16 %v56
  %v254 = vpack.c.b16 %v174, %v170
  %v255 = vpack.c.b16 %v175, %v171
  %v256 = vpack.c.b16 %v176, %v172
  %v257 = vpack.c.b16 %v177, %v173
  %v258 = vpack.c.b16 %v182, %v178
  %v259 = vpack.c.b16 %v183, %v179
  %v260 = vpack.c.b16 %v184, %v180
  %v261 = vpack.c.b16 %v185, %v181
  %v262 = vpack.c.b16 %v190, %v186
  %v263 = vpack.c.b16 %v191, %v187
  %v264 = vpack.c.b16 %v192, %v188
  %v265 = vpack.c.b16 %v193, %v189
  %v266 = vpack.c.b16 %v198, %v194
  %v267 = vpack.c.b16 %v199, %v195
  %v268 = vpack.c.b16 %v200, %v196
  %v269 = vpack.c.b16 %v201, %v197
  %v270 = vpack.c.b16 %v206, %v202
  %v271 = vpack.c.b16 %v207, %v203
  %v272 = vpack.c.b16 %v208, %v204
  %v273 = vpack.c.b16 %v209, %v205
  %v274 = vpack.c.b16 %v214, %v210
  %v275 = vpack.c.b16 %v215, %v211
  %v276 = vpack.c.b16 %v216, %v212
  %v277 = vpack.c.b16 %v217, %v213
  %v278 = vpack.c.b16 %v222, %v218
  %v279 = vpack.c.b16 %v223, %v219
  %v280 = vpack.c.b16 %v224, %v220
  %v281 = vpack.c.b16 %v225, %v221
  %v282 = vpack.c.b16 %v230, %v226
  %v283 = vpack.c.b16 %v231, %v227
  %v284 = vpack.c.b16 %v232, %v228
  %v285 = vpack.c.b16 %v233, %v229
  %v286 = vpack.c.b16 %v238, %v234
  %v287 = vpack.c.b16 %v239, %v235
  %v288 = vpack.c.b16 %v240, %v236
  %v289 = vpack.c.b16 %v241, %v237
  %v290 = vpack.c.b16 %v246, %v242
  %v291 = vpack.c.b16 %v247, %v243
  %v292 = vpack.c.b16 %v248, %v244
  %v293 = vpack.c.b16 %v249, %v245
  %v294 = vpack.c.b16 %v250, %v250
  %v295 = vpack.c.b16 %v251, %v251
  %v296 = vpack.c.b16 %v252, %v252
  %v297 = vpack.c.b16 %v253, %v253
  %v406 = vunpack.c.l.b16 %v57
  %v407 = vunpack.c.l.b16 %v58
  %v408 = vunpack.c.l.b16 %v59
  %v409 = vunpack.c.l.b16 %v60
  %v410 = vunpack.c.l.b16 %v61
  %v411 = vunpack.c.l.b16 %v62
  %v412 = vunpack.c.l.b16 %v63
  %v413 = vunpack.c.l.b16 %v64
  %v414 = vunpack.c.l.b16 %v65
  %v415 = vunpack.c.l.b16 %v66
  %v416 = vunpack.c.l.b16 %v67
  %v417 = vunpack.c.l.b16 %v68
  %v418 = vunpack.c.l.b16 %v69
  %v419 = vunpack.c.l.b16 %v70
  %v420 = vunpack.c.l.b16 %v71
  %v421 = vunpack.c.l.b16 %v72
  %v422 = vunpack.c.l.b16 %v73
  %v423 = vunpack.c.l.b16 %v74
  %v424 = vunpack.c.l.b16 %v75
  %v425 = vunpack.c.l.b16 %v76
  %v426 = vunpack.c.l.b16 %v77
  %v427 = vunpack.c.l.b16 %v78
  %v428 = vunpack.c.l.b16 %v79
  %v429 = vunpack.c.l.b16 %v80
  %v430 = vunpack.c.l.b16 %v81
  %v431 = vunpack.c.l.b16 %v82
  %v432 = vunpack.c.l.b16 %v83
  %v433 = vunpack.c.l.b16 %v84
  %v434 = vunpack.c.l.b16 %v85
  %v435 = vunpack.c.l.b16 %v86
  %v436 = vunpack.c.l.b16 %v87
  %v437 = vunpack.c.l.b16 %v88
  %v438 = vunpack.c.l.b16 %v89
  %v439 = vunpack.c.l.b16 %v90
  %v440 = vunpack.c.l.b16 %v91
  %v441 = vunpack.c.l.b16 %v92
  %v442 = vunpack.c.l.b16 %v93
  %v443 = vunpack.c.l.b16 %v94
  %v444 = vunpack.c.l.b16 %v95
  %v445 = vunpack.c.l.b16 %v96
  %v446 = vunpack.c.l.b16 %v97
  %v447 = vunpack.c.l.b16 %v98
  %v448 = vunpack.c.l.b16 %v99
  %v449 = vunpack.c.l.b16 %v100
  %v450 = vunpack.c.l.b16 %v101
  %v451 = vunpack.c.l.b16 %v102
  %v452 = vunpack.c.l.b16 %v103
  %v453 = vunpack.c.l.b16 %v104
  %v454 = vunpack.c.l.b16 %v105
  %v455 = vunpack.c.l.b16 %v106
  %v456 = vunpack.c.l.b16 %v107
  %v457 = vunpack.c.l.b16 %v108
  %v458 = vunpack.c.l.b16 %v109
  %v459 = vunpack.c.l.b16 %v110
  %v460 = vunpack.c.l.b16 %v111
  %v461 = vunpack.c.l.b16 %v112
  %v462 = vunpack.c.l.b16 %v113
  %v463 = vunpack.c.l.b16 %v114
  %v464 = vunpack.c.l.b16 %v115
  %v465 = vunpack.c.l.b16 %v116
  %v466 = vunpack.c.l.b16 %v117
  %v467 = vunpack.c.l.b16 %v118
  %v468 = vunpack.c.l.b16 %v119
  %v469 = vunpack.c.l.b16 %v120
  %v470 = vpack.c.b16 %v407, %v406
  %v471 = vpack.c.b16 %v409, %v408
  %v472 = vpack.c.b16 %v411, %v410
  %v473 = vpack.c.b16 %v413, %v412
  %v474 = vpack.c.b16 %v415, %v414
  %v475 = vpack.c.b16 %v417, %v416
  %v476 = vpack.c.b16 %v419, %v418
  %v477 = vpack.c.b16 %v421, %v420
  %v478 = vpack.c.b16 %v423, %v422
  %v479 = vpack.c.b16 %v425, %v424
  %v480 = vpack.c.b16 %v427, %v426
  %v481 = vpack.c.b16 %v429, %v428
  %v482 = vpack.c.b16 %v431, %v430
  %v483 = vpack.c.b16 %v433, %v432
  %v484 = vpack.c.b16 %v435, %v434
  %v485 = vpack.c.b16 %v437, %v436
  %v486 = vpack.c.b16 %v439, %v438
  %v487 = vpack.c.b16 %v441, %v440
  %v488 = vpack.c.b16 %v443, %v442
  %v489 = vpack.c.b16 %v445, %v444
  %v490 = vpack.c.b16 %v447, %v446
  %v491 = vpack.c.b16 %v449, %v448
  %v492 = vpack.c.b16 %v451, %v450
  %v493 = vpack.c.b16 %v453, %v452
  %v494 = vpack.c.b16 %v455, %v454
  %v495 = vpack.c.b16 %v457, %v456
  %v496 = vpack.c.b16 %v459, %v458
  %v497 = vpack.c.b16 %v461, %v460
  %v498 = vpack.c.b16 %v463, %v462
  %v499 = vpack.c.b16 %v465, %v464
  %v500 = vpack.c.b16 %v467, %v466
  %v501 = vpack.c.b16 %v469, %v468
  %534 = vmatprep.subr.bf16.mxu0 0
  %535 = vmatpush1.bf16.msra.mxu0 %v470
  %536 = vmatprep.subr.bf16.mxu0 0
  %537 = vmatpush1.bf16.msra.mxu0 %v471
  %538 = vmatprep.subr.bf16.mxu0 0
  %539 = vmatpush1.bf16.msra.mxu0 %v472
  %540 = vmatprep.subr.bf16.mxu0 0
  %541 = vmatpush1.bf16.msra.mxu0 %v473
  %542 = vmatprep.subr.bf16.mxu0 0
  %543 = vmatpush1.bf16.msra.mxu0 %v474
  %544 = vmatprep.subr.bf16.mxu0 0
  %545 = vmatpush1.bf16.msra.mxu0 %v475
  %546 = vmatprep.subr.bf16.mxu0 0
  %547 = vmatpush1.bf16.msra.mxu0 %v476
  %548 = vmatprep.subr.bf16.mxu0 0
  %549 = vmatpush1.bf16.msra.mxu0 %v477
  %550 = vmatprep.subr.bf16.mxu0 0
  %551 = vmatpush1.bf16.msra.mxu0 %v478
  %552 = vmatprep.subr.bf16.mxu0 0
  %553 = vmatpush1.bf16.msra.mxu0 %v479
  %554 = vmatprep.subr.bf16.mxu0 0
  %555 = vmatpush1.bf16.msra.mxu0 %v480
  %556 = vmatprep.subr.bf16.mxu0 0
  %557 = vmatpush1.bf16.msra.mxu0 %v481
  %558 = vmatprep.subr.bf16.mxu0 0
  %559 = vmatpush1.bf16.msra.mxu0 %v482
  %560 = vmatprep.subr.bf16.mxu0 0
  %561 = vmatpush1.bf16.msra.mxu0 %v483
  %562 = vmatprep.subr.bf16.mxu0 0
  %563 = vmatpush1.bf16.msra.mxu0 %v484
  %564 = vmatprep.subr.bf16.mxu0 0
  %565 = vmatpush1.bf16.msra.mxu0 %v485
  %566 = vmatprep.mubr.bf16.mxu0 %v255
  %567 = vmatmul.mubr.bf16.gmra.mrb[0].mxu0 %v254
  %v568 = vpop.f32.mrb[0].mxu0
  %v569 = vadd.f32 %v126, %v568
  %v570 = vpop.f32.mrb[0].mxu0
  %v571 = vpop.f32.mrb[0].mxu0
  %v572 = vadd.f32 %v126, %v571
  %v573 = vpop.f32.mrb[0].mxu0
  %574 = vmatprep.mubr.bf16.mxu0 %v259
  %575 = vmatmul.mubr.bf16.gmra.mrb[0].mxu0 %v258
  %v576 = vpop.f32.mrb[0].mxu0
  %v577 = vadd.f32 %v126, %v576
  %v578 = vpop.f32.mrb[0].mxu0
  %v579 = vpop.f32.mrb[0].mxu0
  %v580 = vadd.f32 %v126, %v579
  %v581 = vpop.f32.mrb[0].mxu0
  %582 = vmatprep.mubr.bf16.mxu0 %v263
  %583 = vmatmul.mubr.bf16.gmra.mrb[0].mxu0 %v262
  %v584 = vpop.f32.mrb[0].mxu0
  %v585 = vadd.f32 %v126, %v584
  %v586 = vpop.f32.mrb[0].mxu0
  %v587 = vpop.f32.mrb[0].mxu0
  %v588 = vadd.f32 %v126, %v587
  %v589 = vpop.f32.mrb[0].mxu0
  %590 = vmatprep.mubr.bf16.mxu0 %v267
  %591 = vmatmul.mubr.bf16.gmra.mrb[0].mxu0 %v266
  %v592 = vpop.f32.mrb[0].mxu0
  %v593 = vadd.f32 %v126, %v592
  %v594 = vpop.f32.mrb[0].mxu0
  %v595 = vpop.f32.mrb[0].mxu0
  %v596 = vadd.f32 %v126, %v595
  %v597 = vpop.f32.mrb[0].mxu0
  %598 = vmatprep.mubr.bf16.mxu0 %v271
  %599 = vmatmul.mubr.bf16.gmra.mrb[0].mxu0 %v270
  %v600 = vpop.f32.mrb[0].mxu0
  %v601 = vadd.f32 %v126, %v600
  %v602 = vpop.f32.mrb[0].mxu0
  %v603 = vpop.f32.mrb[0].mxu0
  %v604 = vadd.f32 %v126, %v603
  %v605 = vpop.f32.mrb[0].mxu0
  %606 = vmatprep.mubr.bf16.mxu0 %v275
  %607 = vmatmul.mubr.bf16.gmra.mrb[0].mxu0 %v274
  %v608 = vpop.f32.mrb[0].mxu0
  %v609 = vadd.f32 %v126, %v608
  %v610 = vpop.f32.mrb[0].mxu0
  %v611 = vpop.f32.mrb[0].mxu0
  %v612 = vadd.f32 %v126, %v611
  %v613 = vpop.f32.mrb[0].mxu0
  %614 = vmatprep.mubr.bf16.mxu0 %v279
  %615 = vmatmul.mubr.bf16.gmra.mrb[0].mxu0 %v278
  %v616 = vpop.f32.mrb[0].mxu0
  %v617 = vadd.f32 %v126, %v616
  %v618 = vpop.f32.mrb[0].mxu0
  %v619 = vpop.f32.mrb[0].mxu0
  %v620 = vadd.f32 %v126, %v619
  %v621 = vpop.f32.mrb[0].mxu0
  %622 = vmatprep.mubr.bf16.mxu0 %v283
  %623 = vmatmul.mubr.bf16.gmra.mrb[0].mxu0 %v282
  %v624 = vpop.f32.mrb[0].mxu0
  %v625 = vadd.f32 %v126, %v624
  %v626 = vpop.f32.mrb[0].mxu0
  %v627 = vpop.f32.mrb[0].mxu0
  %v628 = vadd.f32 %v126, %v627
  %v629 = vpop.f32.mrb[0].mxu0
  %630 = vmatprep.mubr.bf16.mxu0 %v287
  %631 = vmatmul.mubr.bf16.gmra.mrb[0].mxu0 %v286
  %v632 = vpop.f32.mrb[0].mxu0
  %v633 = vadd.f32 %v126, %v632
  %v634 = vpop.f32.mrb[0].mxu0
  %v635 = vpop.f32.mrb[0].mxu0
  %v636 = vadd.f32 %v126, %v635
  %v637 = vpop.f32.mrb[0].mxu0
  %638 = vmatprep.mubr.bf16.mxu0 %v291
  %639 = vmatmul.mubr.bf16.gmra.mrb[0].mxu0 %v290
  %v640 = vpop.f32.mrb[0].mxu0
  %v641 = vadd.f32 %v126, %v640
  %v642 = vpop.f32.mrb[0].mxu0
  %v643 = vpop.f32.mrb[0].mxu0
  %v644 = vadd.f32 %v126, %v643
  %v645 = vpop.f32.mrb[0].mxu0
  %646 = vmatprep.mubr.bf16.mxu0 %v295
  %647 = vmatmul.mubr.bf16.gmra.mrb[0].mxu0 %v294
  %v648 = vpop.f32.mrb[0].mxu0
  %v649 = vadd.f32 %v126, %v648
  %v650 = vpop.f32.mrb[0].mxu0
  %v651 = vpop.f32.mrb[0].mxu0
  %v652 = vpop.f32.mrb[0].mxu0
  %653 = vdwg.mxu0
  %654 = vmatprep.subr.bf16.mxu0 0
  %655 = vmatpush1.bf16.msra.mxu0 %v486
  %656 = vmatprep.subr.bf16.mxu0 0
  %657 = vmatpush1.bf16.msra.mxu0 %v487
  %658 = vmatprep.subr.bf16.mxu0 0
  %659 = vmatpush1.bf16.msra.mxu0 %v488
  %660 = vmatprep.subr.bf16.mxu0 0
  %661 = vmatpush1.bf16.msra.mxu0 %v489
  %662 = vmatprep.subr.bf16.mxu0 0
  %663 = vmatpush1.bf16.msra.mxu0 %v490
  %664 = vmatprep.subr.bf16.mxu0 0
  %665 = vmatpush1.bf16.msra.mxu0 %v491
  %666 = vmatprep.subr.bf16.mxu0 0
  %667 = vmatpush1.bf16.msra.mxu0 %v492
  %668 = vmatprep.subr.bf16.mxu0 0
  %669 = vmatpush1.bf16.msra.mxu0 %v493
  %670 = vmatprep.subr.bf16.mxu0 0
  %671 = vmatpush1.bf16.msra.mxu0 %v494
  %672 = vmatprep.subr.bf16.mxu0 0
  %673 = vmatpush1.bf16.msra.mxu0 %v495
  %674 = vmatprep.subr.bf16.mxu0 0
  %675 = vmatpush1.bf16.msra.mxu0 %v496
  %676 = vmatprep.subr.bf16.mxu0 0
  %677 = vmatpush1.bf16.msra.mxu0 %v497
  %678 = vmatprep.subr.bf16.mxu0 0
  %679 = vmatpush1.bf16.msra.mxu0 %v498
  %680 = vmatprep.subr.bf16.mxu0 0
  %681 = vmatpush1.bf16.msra.mxu0 %v499
  %682 = vmatprep.subr.bf16.mxu0 0
  %683 = vmatpush1.bf16.msra.mxu0 %v500
  %684 = vmatprep.subr.bf16.mxu0 0
  %685 = vmatpush1.bf16.msra.mxu0 %v501
  %686 = vmatprep.mubr.bf16.mxu0 %v257
  %687 = vmatmul.mubr.bf16.gmra.mrb[0].mxu0 %v256
  %v688 = vpop.f32.mrb[0].mxu0
  %v689 = vadd.f32 %v569, %v688
  %v690 = vpop.f32.mrb[0].mxu0
  %v691 = vpop.f32.mrb[0].mxu0
  %v692 = vadd.f32 %v572, %v691
  %v693 = vpop.f32.mrb[0].mxu0
  %694 = vmatprep.mubr.bf16.mxu0 %v261
  %695 = vmatmul.mubr.bf16.gmra.mrb[0].mxu0 %v260
  %v696 = vpop.f32.mrb[0].mxu0
  %v697 = vadd.f32 %v577, %v696
  %v698 = vpop.f32.mrb[0].mxu0
  %v699 = vpop.f32.mrb[0].mxu0
  %v700 = vadd.f32 %v580, %v699
  %v701 = vpop.f32.mrb[0].mxu0
  %702 = vmatprep.mubr.bf16.mxu0 %v265
  %703 = vmatmul.mubr.bf16.gmra.mrb[0].mxu0 %v264
  %v704 = vpop.f32.mrb[0].mxu0
  %v705 = vadd.f32 %v585, %v704
  %v706 = vpop.f32.mrb[0].mxu0
  %v707 = vpop.f32.mrb[0].mxu0
  %v708 = vadd.f32 %v588, %v707
  %v709 = vpop.f32.mrb[0].mxu0
  %710 = vmatprep.mubr.bf16.mxu0 %v269
  %711 = vmatmul.mubr.bf16.gmra.mrb[0].mxu0 %v268
  %v712 = vpop.f32.mrb[0].mxu0
  %v713 = vadd.f32 %v593, %v712
  %v714 = vpop.f32.mrb[0].mxu0
  %v715 = vpop.f32.mrb[0].mxu0
  %v716 = vadd.f32 %v596, %v715
  %v717 = vpop.f32.mrb[0].mxu0
  %718 = vmatprep.mubr.bf16.mxu0 %v273
  %719 = vmatmul.mubr.bf16.gmra.mrb[0].mxu0 %v272
  %v720 = vpop.f32.mrb[0].mxu0
  %v721 = vadd.f32 %v601, %v720
  %v722 = vpop.f32.mrb[0].mxu0
  %v723 = vpop.f32.mrb[0].mxu0
  %v724 = vadd.f32 %v604, %v723
  %v725 = vpop.f32.mrb[0].mxu0
  %726 = vmatprep.mubr.bf16.mxu0 %v277
  %727 = vmatmul.mubr.bf16.gmra.mrb[0].mxu0 %v276
  %v728 = vpop.f32.mrb[0].mxu0
  %v729 = vadd.f32 %v609, %v728
  %v730 = vpop.f32.mrb[0].mxu0
  %v731 = vpop.f32.mrb[0].mxu0
  %v732 = vadd.f32 %v612, %v731
  %v733 = vpop.f32.mrb[0].mxu0
  %734 = vmatprep.mubr.bf16.mxu0 %v281
  %735 = vmatmul.mubr.bf16.gmra.mrb[0].mxu0 %v280
  %v736 = vpop.f32.mrb[0].mxu0
  %v737 = vadd.f32 %v617, %v736
  %v738 = vpop.f32.mrb[0].mxu0
  %v739 = vpop.f32.mrb[0].mxu0
  %v740 = vadd.f32 %v620, %v739
  %v741 = vpop.f32.mrb[0].mxu0
  %742 = vmatprep.mubr.bf16.mxu0 %v285
  %743 = vmatmul.mubr.bf16.gmra.mrb[0].mxu0 %v284
  %v744 = vpop.f32.mrb[0].mxu0
  %v745 = vadd.f32 %v625, %v744
  %v746 = vpop.f32.mrb[0].mxu0
  %v747 = vpop.f32.mrb[0].mxu0
  %v748 = vadd.f32 %v628, %v747
  %v749 = vpop.f32.mrb[0].mxu0
  %750 = vmatprep.mubr.bf16.mxu0 %v289
  %751 = vmatmul.mubr.bf16.gmra.mrb[0].mxu0 %v288
  %v752 = vpop.f32.mrb[0].mxu0
  %v753 = vadd.f32 %v633, %v752
  %v754 = vpop.f32.mrb[0].mxu0
  %v755 = vpop.f32.mrb[0].mxu0
  %v756 = vadd.f32 %v636, %v755
  %v757 = vpop.f32.mrb[0].mxu0
  %758 = vmatprep.mubr.bf16.mxu0 %v293
  %759 = vmatmul.mubr.bf16.gmra.mrb[0].mxu0 %v292
  %v760 = vpop.f32.mrb[0].mxu0
  %v761 = vadd.f32 %v641, %v760
  %v762 = vpop.f32.mrb[0].mxu0
  %v763 = vpop.f32.mrb[0].mxu0
  %v764 = vadd.f32 %v644, %v763
  %v765 = vpop.f32.mrb[0].mxu0
  %766 = vmatprep.mubr.bf16.mxu0 %v297
  %767 = vmatmul.mubr.bf16.gmra.mrb[0].mxu0 %v296
  %v768 = vpop.f32.mrb[0].mxu0
  %v769 = vadd.f32 %v649, %v768
  %v770 = vpop.f32.mrb[0].mxu0
  %v771 = vpop.f32.mrb[0].mxu0
  %v772 = vpop.f32.mrb[0].mxu0
  %773 = vdwg.mxu0
  %v774 = vmax.f32 %v689, 0.0
  %v775 = vmax.f32 %v692, 0.0
  %v776 = vmax.f32 %v697, 0.0
  %v777 = vmax.f32 %v700, 0.0
  %v778 = vmax.f32 %v705, 0.0
  %v779 = vmax.f32 %v708, 0.0
  %v780 = vmax.f32 %v713, 0.0
  %v781 = vmax.f32 %v716, 0.0
  %v782 = vmax.f32 %v721, 0.0
  %v783 = vmax.f32 %v724, 0.0
  %v784 = vmax.f32 %v729, 0.0
  %v785 = vmax.f32 %v732, 0.0
  %v786 = vmax.f32 %v737, 0.0
  %v787 = vmax.f32 %v740, 0.0
  %v788 = vmax.f32 %v745, 0.0
  %v789 = vmax.f32 %v748, 0.0
  %v790 = vmax.f32 %v753, 0.0
  %v791 = vmax.f32 %v756, 0.0
  %v792 = vmax.f32 %v761, 0.0
  %v793 = vmax.f32 %v764, 0.0
  %v794 = vmax.f32 %v769, 0.0
  %v795 = vpack.c.bf16 %v775, %v774
  %v796 = vpack.c.bf16 %v777, %v776
  %v797 = vpack.c.bf16 %v779, %v778
  %v798 = vpack.c.bf16 %v781, %v780
  %v799 = vpack.c.bf16 %v783, %v782
  %v800 = vpack.c.bf16 %v785, %v784
  %v801 = vpack.c.bf16 %v787, %v786
  %v802 = vpack.c.bf16 %v789, %v788
  %v803 = vpack.c.bf16 %v791, %v790
  %v804 = vpack.c.bf16 %v793, %v792
  %v805 = vpack.c.bf16 %v794, %v794
  %v817 = vunpack.c.l.b16 %v795
  %v818 = vunpack.c.h.b16 %v795
  %v819 = vunpack.c.l.b16 %v796
  %v820 = vunpack.c.h.b16 %v796
  %v821 = vunpack.c.l.b16 %v797
  %v822 = vunpack.c.h.b16 %v797
  %v823 = vunpack.c.l.b16 %v798
  %v824 = vunpack.c.h.b16 %v798
  %v825 = vunpack.c.l.b16 %v799
  %v826 = vunpack.c.h.b16 %v799
  %v827 = vunpack.c.l.b16 %v800
  %v828 = vunpack.c.h.b16 %v800
  %v829 = vunpack.c.l.b16 %v801
  %v830 = vunpack.c.h.b16 %v801
  %v831 = vunpack.c.l.b16 %v802
  %v832 = vunpack.c.h.b16 %v802
  %v833 = vunpack.c.l.b16 %v803
  %v834 = vunpack.c.h.b16 %v803
  %v835 = vunpack.c.l.b16 %v804
  %v836 = vunpack.c.h.b16 %v804
  %v837 = vunpack.c.l.b16 %v805
  %v838 = vpack.c.b16 %v817, %v817
  %v839 = vpack.c.b16 %v818, %v818
  %v840 = vpack.c.b16 %v819, %v819
  %v841 = vpack.c.b16 %v820, %v820
  %v842 = vpack.c.b16 %v821, %v821
  %v843 = vpack.c.b16 %v822, %v822
  %v844 = vpack.c.b16 %v823, %v823
  %v845 = vpack.c.b16 %v824, %v824
  %v846 = vpack.c.b16 %v825, %v825
  %v847 = vpack.c.b16 %v826, %v826
  %v848 = vpack.c.b16 %v827, %v827
  %v849 = vpack.c.b16 %v828, %v828
  %v850 = vpack.c.b16 %v829, %v829
  %v851 = vpack.c.b16 %v830, %v830
  %v852 = vpack.c.b16 %v831, %v831
  %v853 = vpack.c.b16 %v832, %v832
  %v854 = vpack.c.b16 %v833, %v833
  %v855 = vpack.c.b16 %v834, %v834
  %v856 = vpack.c.b16 %v835, %v835
  %v857 = vpack.c.b16 %v836, %v836
  %v858 = vpack.c.b16 %v837, %v837
  %880 = vst [vmem:[%s3] sm:$0xf] %v838
  %881 = vst [vmem:[%s3 + $0x4] sm:$0xf] %v839
  %882 = vst [vmem:[%s3 + $0x8] sm:$0xf] %v840
  %883 = vst [vmem:[%s3 + $0xc] sm:$0xf] %v841
  %884 = vst [vmem:[%s3 + $0x10] sm:$0xf] %v842
  %885 = vst [vmem:[%s3 + $0x14] sm:$0xf] %v843
  %886 = vst [vmem:[%s3 + $0x18] sm:$0xf] %v844
  %887 = vst [vmem:[%s3 + $0x1c] sm:$0xf] %v845
  %888 = vst [vmem:[%s3 + $0x20] sm:$0xf] %v846
  %889 = vst [vmem:[%s3 + $0x24] sm:$0xf] %v847
  %890 = vst [vmem:[%s3 + $0x28] sm:$0xf] %v848
  %891 = vst [vmem:[%s3 + $0x2c] sm:$0xf] %v849
  %892 = vst [vmem:[%s3 + $0x30] sm:$0xf] %v850
  %893 = vst [vmem:[%s3 + $0x34] sm:$0xf] %v851
  %894 = vst [vmem:[%s3 + $0x38] sm:$0xf] %v852
  %895 = vst [vmem:[%s3 + $0x3c] sm:$0xf] %v853
  %896 = vst [vmem:[%s3 + $0x40] sm:$0xf] %v854
  %897 = vst [vmem:[%s3 + $0x44] sm:$0xf] %v855
  %898 = vst [vmem:[%s3 + $0x48] sm:$0xf] %v856
  %899 = vst [vmem:[%s3 + $0x4c] sm:$0xf] %v857
  %900 = vst [vmem:[%s3 + $0x50] sm:$0xf] %v858
  // Predicated region
  $region14: #{dueling_dqn_forward.5} parent=0 // pred_check
    _
  $region15: #{dueling_dqn_forward.5} parent=0 // pred_check_branch
    %902 = sbr.rel (0) target = $region17
  $region16: #{dueling_dqn_forward.5} parent=0 // pred_region
    _
  $region17: #{dueling_dqn_forward.5} parent=0 // pred_fallthru
    _
  // Predicated region
  $region18: #{dueling_dqn_forward.5} parent=0 // pred_check
    _
  $region19: #{dueling_dqn_forward.5} parent=0 // pred_check_branch
    %904 = sbr.rel (0) target = $region21
  $region20: #{dueling_dqn_forward.5} parent=0 // pred_region
    _
  $region21: #{dueling_dqn_forward.5} parent=0 // pred_fallthru
    _

// kernel: dueling_dqn_forward.6
$region0: #{dueling_dqn_forward.6}
  #allocation0 [shape = 'u32[]', space=smem, size = 0x4, offset = 0x4, fixed_abs, tag = 'smem constant byte address 0x4 - core index']
  #allocation1 [shape = 'u32[144,128]{1,0:T(1,128)}', space=vmem, size = 0x12000, scoped, tag = 'internal scratch']
  %s0 = inlined_call_operand.vmem [shape: bf16[104,576], index: 0, kind: input, shape index: {}]
  %s1 = inlined_call_operand.vmem [shape: bf16[576,128], index: 1, kind: input, shape index: {}]
  %s2 = inlined_call_operand.vmem [shape: f32[1,128], index: 2, kind: input, shape index: {}]
  %s3 = inlined_call_operand.vmem [shape: bf16[104,128], index: 3, kind: output, shape index: {}]
  %s4 = sld [smem:[#allocation0]]
  $region22: #{dueling_dqn_forward.6} parent=0
    _
  %s6 = ssub.s32 1, %s4
  %s7 = scalar_select 0, %s6, %s4
  // Predicated region
  $region2: #{dueling_dqn_forward.6} parent=0 // pred_check
    _
  $region3: #{dueling_dqn_forward.6} parent=0 // pred_check_branch
    %9 = sbr.rel (0) target = $region5
  $region4: #{dueling_dqn_forward.6} parent=0 // pred_region
    _
  $region5: #{dueling_dqn_forward.6} parent=0 // pred_fallthru
    _
  // Predicated region
  $region6: #{dueling_dqn_forward.6} parent=0 // pred_check
    _
  $region7: #{dueling_dqn_forward.6} parent=0 // pred_check_branch
    %11 = sbr.rel (0) target = $region9
  $region8: #{dueling_dqn_forward.6} parent=0 // pred_region
    _
  $region9: #{dueling_dqn_forward.6} parent=0 // pred_fallthru
    _
  // Predicated region
  $region10: #{dueling_dqn_forward.6} parent=0 // pred_check
    _
  $region11: #{dueling_dqn_forward.6} parent=0 // pred_check_branch
    %13 = sbr.rel (0) target = $region13
  $region12: #{dueling_dqn_forward.6} parent=0 // pred_region
    _
  $region13: #{dueling_dqn_forward.6} parent=0 // pred_fallthru
    _
  %v15 = vld [vmem:[%s0] sm:$0xff]
  %v16 = vld [vmem:[%s0 + $0x8] sm:$0xff]
  %v17 = vld [vmem:[%s0 + $0x10] sm:$0xf]
  %v18 = vld [vmem:[%s0 + $0x14] sm:$0xff]
  %v19 = vld [vmem:[%s0 + $0x1c] sm:$0xff]
  %v20 = vld [vmem:[%s0 + $0x24] sm:$0xf]
  %v21 = vld [vmem:[%s0 + $0x28] sm:$0xff]
  %v22 = vld [vmem:[%s0 + $0x30] sm:$0xff]
  %v23 = vld [vmem:[%s0 + $0x38] sm:$0xf]
  %v24 = vld [vmem:[%s0 + $0x3c] sm:$0xff]
  %v25 = vld [vmem:[%s0 + $0x44] sm:$0xff]
  %v26 = vld [vmem:[%s0 + $0x4c] sm:$0xf]
  %v27 = vld [vmem:[%s0 + $0x50] sm:$0xff]
  %v28 = vld [vmem:[%s0 + $0x58] sm:$0xff]
  %v29 = vld [vmem:[%s0 + $0x60] sm:$0xf]
  %v30 = vld [vmem:[%s0 + $0x64] sm:$0xff]
  %v31 = vld [vmem:[%s0 + $0x6c] sm:$0xff]
  %v32 = vld [vmem:[%s0 + $0x74] sm:$0xf]
  %v33 = vld [vmem:[%s0 + $0x78] sm:$0xff]
  %v34 = vld [vmem:[%s0 + $0x80] sm:$0xff]
  %v35 = vld [vmem:[%s0 + $0x88] sm:$0xf]
  %v36 = vld [vmem:[%s0 + $0x8c] sm:$0xff]
  %v37 = vld [vmem:[%s0 + $0x94] sm:$0xff]
  %v38 = vld [vmem:[%s0 + $0x9c] sm:$0xf]
  %v39 = vld [vmem:[%s0 + $0xa0] sm:$0xff]
  %v40 = vld [vmem:[%s0 + $0xa8] sm:$0xff]
  %v41 = vld [vmem:[%s0 + $0xb0] sm:$0xf]
  %v42 = vld [vmem:[%s0 + $0xb4] sm:$0xff]
  %v43 = vld [vmem:[%s0 + $0xbc] sm:$0xff]
  %v44 = vld [vmem:[%s0 + $0xc4] sm:$0xf]
  %v45 = vld [vmem:[%s0 + $0xc8] sm:$0xff]
  %v46 = vld [vmem:[%s0 + $0xd0] sm:$0xff]
  %v47 = vld [vmem:[%s0 + $0xd8] sm:$0xf]
  %v48 = vld [vmem:[%s0 + $0xdc] sm:$0xff]
  %v49 = vld [vmem:[%s0 + $0xe4] sm:$0xff]
  %v50 = vld [vmem:[%s0 + $0xec] sm:$0xf]
  %v51 = vld [vmem:[%s0 + $0xf0] sm:$0xff]
  %v52 = vld [vmem:[%s0 + $0xf8] sm:$0xff]
  %v53 = vld [vmem:[%s0 + $0x100] sm:$0xf]
  %v54 = vld [vmem:[%s1] sm:$0xf]
  %v55 = vld [vmem:[%s1 + $0x4] sm:$0xf]
  %v56 = vld [vmem:[%s1 + $0x8] sm:$0xf]
  %v57 = vld [vmem:[%s1 + $0xc] sm:$0xf]
  %v58 = vld [vmem:[%s1 + $0x10] sm:$0xf]
  %v59 = vld [vmem:[%s1 + $0x14] sm:$0xf]
  %v60 = vld [vmem:[%s1 + $0x18] sm:$0xf]
  %v61 = vld [vmem:[%s1 + $0x1c] sm:$0xf]
  %v62 = vld [vmem:[%s1 + $0x20] sm:$0xf]
  %v63 = vld [vmem:[%s1 + $0x24] sm:$0xf]
  %v64 = vld [vmem:[%s1 + $0x28] sm:$0xf]
  %v65 = vld [vmem:[%s1 + $0x2c] sm:$0xf]
  %v66 = vld [vmem:[%s1 + $0x30] sm:$0xf]
  %v67 = vld [vmem:[%s1 + $0x34] sm:$0xf]
  %v68 = vld [vmem:[%s1 + $0x38] sm:$0xf]
  %v69 = vld [vmem:[%s1 + $0x3c] sm:$0xf]
  %v70 = vld [vmem:[%s1 + $0x40] sm:$0xf]
  %v71 = vld [vmem:[%s1 + $0x44] sm:$0xf]
  %v72 = vld [vmem:[%s1 + $0x48] sm:$0xf]
  %v73 = vld [vmem:[%s1 + $0x4c] sm:$0xf]
  %v74 = vld [vmem:[%s1 + $0x50] sm:$0xf]
  %v75 = vld [vmem:[%s1 + $0x54] sm:$0xf]
  %v76 = vld [vmem:[%s1 + $0x58] sm:$0xf]
  %v77 = vld [vmem:[%s1 + $0x5c] sm:$0xf]
  %v78 = vld [vmem:[%s1 + $0x60] sm:$0xf]
  %v79 = vld [vmem:[%s1 + $0x64] sm:$0xf]
  %v80 = vld [vmem:[%s1 + $0x68] sm:$0xf]
  %v81 = vld [vmem:[%s1 + $0x6c] sm:$0xf]
  %v82 = vld [vmem:[%s1 + $0x70] sm:$0xf]
  %v83 = vld [vmem:[%s1 + $0x74] sm:$0xf]
  %v84 = vld [vmem:[%s1 + $0x78] sm:$0xf]
  %v85 = vld [vmem:[%s1 + $0x7c] sm:$0xf]
  %v86 = vld [vmem:[%s1 + $0x80] sm:$0xf]
  %v87 = vld [vmem:[%s1 + $0x84] sm:$0xf]
  %v88 = vld [vmem:[%s1 + $0x88] sm:$0xf]
  %v89 = vld [vmem:[%s1 + $0x8c] sm:$0xf]
  %v90 = vld [vmem:[%s1 + $0x90] sm:$0xf]
  %v91 = vld [vmem:[%s1 + $0x94] sm:$0xf]
  %v92 = vld [vmem:[%s1 + $0x98] sm:$0xf]
  %v93 = vld [vmem:[%s1 + $0x9c] sm:$0xf]
  %v94 = vld [vmem:[%s1 + $0xa0] sm:$0xf]
  %v95 = vld [vmem:[%s1 + $0xa4] sm:$0xf]
  %v96 = vld [vmem:[%s1 + $0xa8] sm:$0xf]
  %v97 = vld [vmem:[%s1 + $0xac] sm:$0xf]
  %v98 = vld [vmem:[%s1 + $0xb0] sm:$0xf]
  %v99 = vld [vmem:[%s1 + $0xb4] sm:$0xf]
  %v100 = vld [vmem:[%s1 + $0xb8] sm:$0xf]
  %v101 = vld [vmem:[%s1 + $0xbc] sm:$0xf]
  %v102 = vld [vmem:[%s1 + $0xc0] sm:$0xf]
  %v103 = vld [vmem:[%s1 + $0xc4] sm:$0xf]
  %v104 = vld [vmem:[%s1 + $0xc8] sm:$0xf]
  %v105 = vld [vmem:[%s1 + $0xcc] sm:$0xf]
  %v106 = vld [vmem:[%s1 + $0xd0] sm:$0xf]
  %v107 = vld [vmem:[%s1 + $0xd4] sm:$0xf]
  %v108 = vld [vmem:[%s1 + $0xd8] sm:$0xf]
  %v109 = vld [vmem:[%s1 + $0xdc] sm:$0xf]
  %v110 = vld [vmem:[%s1 + $0xe0] sm:$0xf]
  %v111 = vld [vmem:[%s1 + $0xe4] sm:$0xf]
  %v112 = vld [vmem:[%s1 + $0xe8] sm:$0xf]
  %v113 = vld [vmem:[%s1 + $0xec] sm:$0xf]
  %v114 = vld [vmem:[%s1 + $0xf0] sm:$0xf]
  %v115 = vld [vmem:[%s1 + $0xf4] sm:$0xf]
  %v116 = vld [vmem:[%s1 + $0xf8] sm:$0xf]
  %v117 = vld [vmem:[%s1 + $0xfc] sm:$0xf]
  %v118 = vld [vmem:[%s1 + $0x100] sm:$0xf]
  %v119 = vld [vmem:[%s1 + $0x104] sm:$0xf]
  %v120 = vld [vmem:[%s1 + $0x108] sm:$0xf]
  %v121 = vld [vmem:[%s1 + $0x10c] sm:$0xf]
  %v122 = vld [vmem:[%s1 + $0x110] sm:$0xf]
  %v123 = vld [vmem:[%s1 + $0x114] sm:$0xf]
  %v124 = vld [vmem:[%s1 + $0x118] sm:$0xf]
  %v125 = vld [vmem:[%s1 + $0x11c] sm:$0xf]
  %v126 = vld [vmem:[%s2] sm:$0x1]
  %v128 = vlaneseq
  %v129 = vshrl.u32 %v128, 7
  %v130 = vsub.s32 0, %v129
  %v131 = vrot.slane %v126, %v130
  %v172 = vunpack.c.l.b16 %v15
  %v173 = vunpack.c.h.b16 %v15
  %v174 = vunpack.c.l.b16 %v16
  %v175 = vunpack.c.h.b16 %v16
  %v176 = vunpack.c.l.b16 %v17
  %v177 = vunpack.c.l.b16 %v18
  %v178 = vunpack.c.h.b16 %v18
  %v179 = vunpack.c.l.b16 %v19
  %v180 = vunpack.c.h.b16 %v19
  %v181 = vunpack.c.l.b16 %v20
  %v182 = vunpack.c.l.b16 %v21
  %v183 = vunpack.c.h.b16 %v21
  %v184 = vunpack.c.l.b16 %v22
  %v185 = vunpack.c.h.b16 %v22
  %v186 = vunpack.c.l.b16 %v23
  %v187 = vunpack.c.l.b16 %v24
  %v188 = vunpack.c.h.b16 %v24
  %v189 = vunpack.c.l.b16 %v25
  %v190 = vunpack.c.h.b16 %v25
  %v191 = vunpack.c.l.b16 %v26
  %v192 = vunpack.c.l.b16 %v27
  %v193 = vunpack.c.h.b16 %v27
  %v194 = vunpack.c.l.b16 %v28
  %v195 = vunpack.c.h.b16 %v28
  %v196 = vunpack.c.l.b16 %v29
  %v197 = vunpack.c.l.b16 %v30
  %v198 = vunpack.c.h.b16 %v30
  %v199 = vunpack.c.l.b16 %v31
  %v200 = vunpack.c.h.b16 %v31
  %v201 = vunpack.c.l.b16 %v32
  %v202 = vunpack.c.l.b16 %v33
  %v203 = vunpack.c.h.b16 %v33
  %v204 = vunpack.c.l.b16 %v34
  %v205 = vunpack.c.h.b16 %v34
  %v206 = vunpack.c.l.b16 %v35
  %v207 = vunpack.c.l.b16 %v36
  %v208 = vunpack.c.h.b16 %v36
  %v209 = vunpack.c.l.b16 %v37
  %v210 = vunpack.c.h.b16 %v37
  %v211 = vunpack.c.l.b16 %v38
  %v212 = vunpack.c.l.b16 %v39
  %v213 = vunpack.c.h.b16 %v39
  %v214 = vunpack.c.l.b16 %v40
  %v215 = vunpack.c.h.b16 %v40
  %v216 = vunpack.c.l.b16 %v41
  %v217 = vunpack.c.l.b16 %v42
  %v218 = vunpack.c.h.b16 %v42
  %v219 = vunpack.c.l.b16 %v43
  %v220 = vunpack.c.h.b16 %v43
  %v221 = vunpack.c.l.b16 %v44
  %v222 = vunpack.c.l.b16 %v45
  %v223 = vunpack.c.h.b16 %v45
  %v224 = vunpack.c.l.b16 %v46
  %v225 = vunpack.c.h.b16 %v46
  %v226 = vunpack.c.l.b16 %v47
  %v227 = vunpack.c.l.b16 %v48
  %v228 = vunpack.c.h.b16 %v48
  %v229 = vunpack.c.l.b16 %v49
  %v230 = vunpack.c.h.b16 %v49
  %v231 = vunpack.c.l.b16 %v50
  %v232 = vunpack.c.l.b16 %v51
  %v233 = vunpack.c.h.b16 %v51
  %v234 = vunpack.c.l.b16 %v52
  %v235 = vunpack.c.h.b16 %v52
  %v236 = vunpack.c.l.b16 %v53
  %v237 = vpack.c.b16 %v177, %v172
  %v238 = vpack.c.b16 %v178, %v173
  %v239 = vpack.c.b16 %v179, %v174
  %v240 = vpack.c.b16 %v180, %v175
  %v241 = vpack.c.b16 %v181, %v176
  %v242 = vpack.c.b16 %v187, %v182
  %v243 = vpack.c.b16 %v188, %v183
  %v244 = vpack.c.b16 %v189, %v184
  %v245 = vpack.c.b16 %v190, %v185
  %v246 = vpack.c.b16 %v191, %v186
  %v247 = vpack.c.b16 %v197, %v192
  %v248 = vpack.c.b16 %v198, %v193
  %v249 = vpack.c.b16 %v199, %v194
  %v250 = vpack.c.b16 %v200, %v195
  %v251 = vpack.c.b16 %v201, %v196
  %v252 = vpack.c.b16 %v207, %v202
  %v253 = vpack.c.b16 %v208, %v203
  %v254 = vpack.c.b16 %v209, %v204
  %v255 = vpack.c.b16 %v210, %v205
  %v256 = vpack.c.b16 %v211, %v206
  %v257 = vpack.c.b16 %v217, %v212
  %v258 = vpack.c.b16 %v218, %v213
  %v259 = vpack.c.b16 %v219, %v214
  %v260 = vpack.c.b16 %v220, %v215
  %v261 = vpack.c.b16 %v221, %v216
  %v262 = vpack.c.b16 %v227, %v222
  %v263 = vpack.c.b16 %v228, %v223
  %v264 = vpack.c.b16 %v229, %v224
  %v265 = vpack.c.b16 %v230, %v225
  %v266 = vpack.c.b16 %v231, %v226
  %v267 = vpack.c.b16 %v232, %v232
  %v268 = vpack.c.b16 %v233, %v233
  %v269 = vpack.c.b16 %v234, %v234
  %v270 = vpack.c.b16 %v235, %v235
  %v271 = vpack.c.b16 %v236, %v236
  %v372 = vunpack.c.l.b16 %v54
  %v373 = vunpack.c.l.b16 %v55
  %v374 = vunpack.c.l.b16 %v56
  %v375 = vunpack.c.l.b16 %v57
  %v376 = vunpack.c.l.b16 %v58
  %v377 = vunpack.c.l.b16 %v59
  %v378 = vunpack.c.l.b16 %v60
  %v379 = vunpack.c.l.b16 %v61
  %v380 = vunpack.c.l.b16 %v62
  %v381 = vunpack.c.l.b16 %v63
  %v382 = vunpack.c.l.b16 %v64
  %v383 = vunpack.c.l.b16 %v65
  %v384 = vunpack.c.l.b16 %v66
  %v385 = vunpack.c.l.b16 %v67
  %v386 = vunpack.c.l.b16 %v68
  %v387 = vunpack.c.l.b16 %v69
  %v388 = vunpack.c.l.b16 %v70
  %v389 = vunpack.c.l.b16 %v71
  %v390 = vunpack.c.l.b16 %v72
  %v391 = vunpack.c.l.b16 %v73
  %v392 = vunpack.c.l.b16 %v74
  %v393 = vunpack.c.l.b16 %v75
  %v394 = vunpack.c.l.b16 %v76
  %v395 = vunpack.c.l.b16 %v77
  %v396 = vunpack.c.l.b16 %v78
  %v397 = vunpack.c.l.b16 %v79
  %v398 = vunpack.c.l.b16 %v80
  %v399 = vunpack.c.l.b16 %v81
  %v400 = vunpack.c.l.b16 %v82
  %v401 = vunpack.c.l.b16 %v83
  %v402 = vunpack.c.l.b16 %v84
  %v403 = vunpack.c.l.b16 %v85
  %v404 = vunpack.c.l.b16 %v86
  %v405 = vunpack.c.l.b16 %v87
  %v406 = vunpack.c.l.b16 %v88
  %v407 = vunpack.c.l.b16 %v89
  %v408 = vunpack.c.l.b16 %v90
  %v409 = vunpack.c.l.b16 %v91
  %v410 = vunpack.c.l.b16 %v92
  %v411 = vunpack.c.l.b16 %v93
  %v412 = vunpack.c.l.b16 %v94
  %v413 = vunpack.c.l.b16 %v95
  %v414 = vunpack.c.l.b16 %v96
  %v415 = vunpack.c.l.b16 %v97
  %v416 = vunpack.c.l.b16 %v98
  %v417 = vunpack.c.l.b16 %v99
  %v418 = vunpack.c.l.b16 %v100
  %v419 = vunpack.c.l.b16 %v101
  %v420 = vunpack.c.l.b16 %v102
  %v421 = vunpack.c.l.b16 %v103
  %v422 = vunpack.c.l.b16 %v104
  %v423 = vunpack.c.l.b16 %v105
  %v424 = vunpack.c.l.b16 %v106
  %v425 = vunpack.c.l.b16 %v107
  %v426 = vunpack.c.l.b16 %v108
  %v427 = vunpack.c.l.b16 %v109
  %v428 = vunpack.c.l.b16 %v110
  %v429 = vunpack.c.l.b16 %v111
  %v430 = vunpack.c.l.b16 %v112
  %v431 = vunpack.c.l.b16 %v113
  %v432 = vunpack.c.l.b16 %v114
  %v433 = vunpack.c.l.b16 %v115
  %v434 = vunpack.c.l.b16 %v116
  %v435 = vunpack.c.l.b16 %v117
  %v436 = vunpack.c.l.b16 %v118
  %v437 = vunpack.c.l.b16 %v119
  %v438 = vunpack.c.l.b16 %v120
  %v439 = vunpack.c.l.b16 %v121
  %v440 = vunpack.c.l.b16 %v122
  %v441 = vunpack.c.l.b16 %v123
  %v442 = vunpack.c.l.b16 %v124
  %v443 = vunpack.c.l.b16 %v125
  %v444 = vpack.c.b16 %v373, %v372
  %v445 = vpack.c.b16 %v375, %v374
  %v446 = vpack.c.b16 %v377, %v376
  %v447 = vpack.c.b16 %v379, %v378
  %v448 = vpack.c.b16 %v381, %v380
  %v449 = vpack.c.b16 %v383, %v382
  %v450 = vpack.c.b16 %v385, %v384
  %v451 = vpack.c.b16 %v387, %v386
  %v452 = vpack.c.b16 %v389, %v388
  %v453 = vpack.c.b16 %v391, %v390
  %v454 = vpack.c.b16 %v393, %v392
  %v455 = vpack.c.b16 %v395, %v394
  %v456 = vpack.c.b16 %v397, %v396
  %v457 = vpack.c.b16 %v399, %v398
  %v458 = vpack.c.b16 %v401, %v400
  %v459 = vpack.c.b16 %v403, %v402
  %v460 = vpack.c.b16 %v405, %v404
  %v461 = vpack.c.b16 %v407, %v406
  %v462 = vpack.c.b16 %v409, %v408
  %v463 = vpack.c.b16 %v411, %v410
  %v464 = vpack.c.b16 %v413, %v412
  %v465 = vpack.c.b16 %v415, %v414
  %v466 = vpack.c.b16 %v417, %v416
  %v467 = vpack.c.b16 %v419, %v418
  %v468 = vpack.c.b16 %v421, %v420
  %v469 = vpack.c.b16 %v423, %v422
  %v470 = vpack.c.b16 %v425, %v424
  %v471 = vpack.c.b16 %v427, %v426
  %v472 = vpack.c.b16 %v429, %v428
  %v473 = vpack.c.b16 %v431, %v430
  %v474 = vpack.c.b16 %v433, %v432
  %v475 = vpack.c.b16 %v435, %v434
  %v476 = vpack.c.b16 %v437, %v436
  %v477 = vpack.c.b16 %v439, %v438
  %v478 = vpack.c.b16 %v441, %v440
  %v479 = vpack.c.b16 %v443, %v442
  %vm516 = vcmask 523264
  %v518 = vsel %vm516, %v241, 0
  %v521 = vsel %vm516, %v246, 0
  %v524 = vsel %vm516, %v251, 0
  %v527 = vsel %vm516, %v256, 0
  %v530 = vsel %vm516, %v261, 0
  %v533 = vsel %vm516, %v266, 0
  %v536 = vsel %vm516, %v271, 0
  %538 = vmatprep.subr.bf16.mxu0 0
  %539 = vmatpush1.bf16.msra.mxu0 %v444
  %540 = vmatprep.subr.bf16.mxu0 0
  %541 = vmatpush1.bf16.msra.mxu0 %v445
  %542 = vmatprep.subr.bf16.mxu0 0
  %543 = vmatpush1.bf16.msra.mxu0 %v446
  %544 = vmatprep.subr.bf16.mxu0 0
  %545 = vmatpush1.bf16.msra.mxu0 %v447
  %546 = vmatprep.subr.bf16.mxu0 0
  %547 = vmatpush1.bf16.msra.mxu0 %v448
  %548 = vmatprep.subr.bf16.mxu0 0
  %549 = vmatpush1.bf16.msra.mxu0 %v449
  %550 = vmatprep.subr.bf16.mxu0 0
  %551 = vmatpush1.bf16.msra.mxu0 %v450
  %552 = vmatprep.subr.bf16.mxu0 0
  %553 = vmatpush1.bf16.msra.mxu0 %v451
  %554 = vmatprep.subr.bf16.mxu0 0
  %555 = vmatpush1.bf16.msra.mxu0 %v452
  %556 = vmatprep.subr.bf16.mxu0 0
  %557 = vmatpush1.bf16.msra.mxu0 %v453
  %558 = vmatprep.subr.bf16.mxu0 0
  %559 = vmatpush1.bf16.msra.mxu0 %v454
  %560 = vmatprep.subr.bf16.mxu0 0
  %561 = vmatpush1.bf16.msra.mxu0 %v455
  %562 = vmatprep.subr.bf16.mxu0 0
  %563 = vmatpush1.bf16.msra.mxu0 %v456
  %564 = vmatprep.subr.bf16.mxu0 0
  %565 = vmatpush1.bf16.msra.mxu0 %v457
  %566 = vmatprep.subr.bf16.mxu0 0
  %567 = vmatpush1.bf16.msra.mxu0 %v458
  %568 = vmatprep.subr.bf16.mxu0 0
  %569 = vmatpush1.bf16.msra.mxu0 %v459
  %570 = vmatprep.mubr.bf16.mxu0 %v238
  %571 = vmatmul.mubr.bf16.gmra.mrb[0].mxu0 %v237
  %v572 = vpop.f32.mrb[0].mxu0
  %v573 = vadd.f32 %v131, %v572
  %v574 = vpop.f32.mrb[0].mxu0
  %v575 = vpop.f32.mrb[0].mxu0
  %v576 = vadd.f32 %v131, %v575
  %v577 = vpop.f32.mrb[0].mxu0
  %578 = vmatprep.mubr.bf16.mxu0 %v243
  %579 = vmatmul.mubr.bf16.gmra.mrb[0].mxu0 %v242
  %v580 = vpop.f32.mrb[0].mxu0
  %v581 = vadd.f32 %v131, %v580
  %v582 = vpop.f32.mrb[0].mxu0
  %v583 = vpop.f32.mrb[0].mxu0
  %v584 = vadd.f32 %v131, %v583
  %v585 = vpop.f32.mrb[0].mxu0
  %586 = vmatprep.mubr.bf16.mxu0 %v248
  %587 = vmatmul.mubr.bf16.gmra.mrb[0].mxu0 %v247
  %v588 = vpop.f32.mrb[0].mxu0
  %v589 = vadd.f32 %v131, %v588
  %v590 = vpop.f32.mrb[0].mxu0
  %v591 = vpop.f32.mrb[0].mxu0
  %v592 = vadd.f32 %v131, %v591
  %v593 = vpop.f32.mrb[0].mxu0
  %594 = vmatprep.mubr.bf16.mxu0 %v253
  %595 = vmatmul.mubr.bf16.gmra.mrb[0].mxu0 %v252
  %v596 = vpop.f32.mrb[0].mxu0
  %v597 = vadd.f32 %v131, %v596
  %v598 = vpop.f32.mrb[0].mxu0
  %v599 = vpop.f32.mrb[0].mxu0
  %v600 = vadd.f32 %v131, %v599
  %v601 = vpop.f32.mrb[0].mxu0
  %602 = vmatprep.mubr.bf16.mxu0 %v258
  %603 = vmatmul.mubr.bf16.gmra.mrb[0].mxu0 %v257
  %v604 = vpop.f32.mrb[0].mxu0
  %v605 = vadd.f32 %v131, %v604
  %v606 = vpop.f32.mrb[0].mxu0
  %v607 = vpop.f32.mrb[0].mxu0
  %v608 = vadd.f32 %v131, %v607
  %v609 = vpop.f32.mrb[0].mxu0
  %610 = vmatprep.mubr.bf16.mxu0 %v263
  %611 = vmatmul.mubr.bf16.gmra.mrb[0].mxu0 %v262
  %v612 = vpop.f32.mrb[0].mxu0
  %v613 = vadd.f32 %v131, %v612
  %v614 = vpop.f32.mrb[0].mxu0
  %v615 = vpop.f32.mrb[0].mxu0
  %v616 = vadd.f32 %v131, %v615
  %v617 = vpop.f32.mrb[0].mxu0
  %618 = vmatprep.mubr.bf16.mxu0 %v268
  %619 = vmatmul.mubr.bf16.gmra.mrb[0].mxu0 %v267
  %v620 = vpop.f32.mrb[0].mxu0
  %v621 = vadd.f32 %v131, %v620
  %v622 = vpop.f32.mrb[0].mxu0
  %v623 = vpop.f32.mrb[0].mxu0
  %v624 = vpop.f32.mrb[0].mxu0
  %625 = vdwg.mxu0
  %626 = vmatprep.subr.bf16.mxu0 0
  %627 = vmatpush1.bf16.msra.mxu0 %v460
  %628 = vmatprep.subr.bf16.mxu0 0
  %629 = vmatpush1.bf16.msra.mxu0 %v461
  %630 = vmatprep.subr.bf16.mxu0 0
  %631 = vmatpush1.bf16.msra.mxu0 %v462
  %632 = vmatprep.subr.bf16.mxu0 0
  %633 = vmatpush1.bf16.msra.mxu0 %v463
  %634 = vmatprep.subr.bf16.mxu0 0
  %635 = vmatpush1.bf16.msra.mxu0 %v464
  %636 = vmatprep.subr.bf16.mxu0 0
  %637 = vmatpush1.bf16.msra.mxu0 %v465
  %638 = vmatprep.subr.bf16.mxu0 0
  %639 = vmatpush1.bf16.msra.mxu0 %v466
  %640 = vmatprep.subr.bf16.mxu0 0
  %641 = vmatpush1.bf16.msra.mxu0 %v467
  %642 = vmatprep.subr.bf16.mxu0 0
  %643 = vmatpush1.bf16.msra.mxu0 %v468
  %644 = vmatprep.subr.bf16.mxu0 0
  %645 = vmatpush1.bf16.msra.mxu0 %v469
  %646 = vmatprep.subr.bf16.mxu0 0
  %647 = vmatpush1.bf16.msra.mxu0 %v470
  %648 = vmatprep.subr.bf16.mxu0 0
  %649 = vmatpush1.bf16.msra.mxu0 %v471
  %650 = vmatprep.subr.bf16.mxu0 0
  %651 = vmatpush1.bf16.msra.mxu0 %v472
  %652 = vmatprep.subr.bf16.mxu0 0
  %653 = vmatpush1.bf16.msra.mxu0 %v473
  %654 = vmatprep.subr.bf16.mxu0 0
  %655 = vmatpush1.bf16.msra.mxu0 %v474
  %656 = vmatprep.subr.bf16.mxu0 0
  %657 = vmatpush1.bf16.msra.mxu0 %v475
  %658 = vmatprep.mubr.bf16.mxu0 %v240
  %659 = vmatmul.mubr.bf16.gmra.mrb[0].mxu0 %v239
  %v660 = vpop.f32.mrb[0].mxu0
  %v661 = vadd.f32 %v573, %v660
  %v662 = vpop.f32.mrb[0].mxu0
  %v663 = vpop.f32.mrb[0].mxu0
  %v664 = vadd.f32 %v576, %v663
  %v665 = vpop.f32.mrb[0].mxu0
  %666 = vmatprep.mubr.bf16.mxu0 %v245
  %667 = vmatmul.mubr.bf16.gmra.mrb[0].mxu0 %v244
  %v668 = vpop.f32.mrb[0].mxu0
  %v669 = vadd.f32 %v581, %v668
  %v670 = vpop.f32.mrb[0].mxu0
  %v671 = vpop.f32.mrb[0].mxu0
  %v672 = vadd.f32 %v584, %v671
  %v673 = vpop.f32.mrb[0].mxu0
  %674 = vmatprep.mubr.bf16.mxu0 %v250
  %675 = vmatmul.mubr.bf16.gmra.mrb[0].mxu0 %v249
  %v676 = vpop.f32.mrb[0].mxu0
  %v677 = vadd.f32 %v589, %v676
  %v678 = vpop.f32.mrb[0].mxu0
  %v679 = vpop.f32.mrb[0].mxu0
  %v680 = vadd.f32 %v592, %v679
  %v681 = vpop.f32.mrb[0].mxu0
  %682 = vmatprep.mubr.bf16.mxu0 %v255
  %683 = vmatmul.mubr.bf16.gmra.mrb[0].mxu0 %v254
  %v684 = vpop.f32.mrb[0].mxu0
  %v685 = vadd.f32 %v597, %v684
  %v686 = vpop.f32.mrb[0].mxu0
  %v687 = vpop.f32.mrb[0].mxu0
  %v688 = vadd.f32 %v600, %v687
  %v689 = vpop.f32.mrb[0].mxu0
  %690 = vmatprep.mubr.bf16.mxu0 %v260
  %691 = vmatmul.mubr.bf16.gmra.mrb[0].mxu0 %v259
  %v692 = vpop.f32.mrb[0].mxu0
  %v693 = vadd.f32 %v605, %v692
  %v694 = vpop.f32.mrb[0].mxu0
  %v695 = vpop.f32.mrb[0].mxu0
  %v696 = vadd.f32 %v608, %v695
  %v697 = vpop.f32.mrb[0].mxu0
  %698 = vmatprep.mubr.bf16.mxu0 %v265
  %699 = vmatmul.mubr.bf16.gmra.mrb[0].mxu0 %v264
  %v700 = vpop.f32.mrb[0].mxu0
  %v701 = vadd.f32 %v613, %v700
  %v702 = vpop.f32.mrb[0].mxu0
  %v703 = vpop.f32.mrb[0].mxu0
  %v704 = vadd.f32 %v616, %v703
  %v705 = vpop.f32.mrb[0].mxu0
  %706 = vmatprep.mubr.bf16.mxu0 %v270
  %707 = vmatmul.mubr.bf16.gmra.mrb[0].mxu0 %v269
  %v708 = vpop.f32.mrb[0].mxu0
  %v709 = vadd.f32 %v621, %v708
  %v710 = vpop.f32.mrb[0].mxu0
  %v711 = vpop.f32.mrb[0].mxu0
  %v712 = vpop.f32.mrb[0].mxu0
  %713 = vdwg.mxu0
  %714 = vmatprep.subr.bf16.mxu0 0
  %715 = vmatpush1.bf16.msra.mxu0 %v476
  %716 = vmatprep.subr.bf16.mxu0 0
  %717 = vmatpush1.bf16.msra.mxu0 %v477
  %718 = vmatprep.subr.bf16.mxu0 0
  %719 = vmatpush1.bf16.msra.mxu0 %v478
  %720 = vmatprep.subr.bf16.mxu0 0
  %721 = vmatpush1.bf16.msra.mxu0 %v479
  %722 = vmatprep.subr.bf16.mxu0 0
  %723 = vmatpush1.bf16.msra.mxu0 0
  %724 = vmatprep.subr.bf16.mxu0 0
  %725 = vmatpush1.bf16.msra.mxu0 0
  %726 = vmatprep.subr.bf16.mxu0 0
  %727 = vmatpush1.bf16.msra.mxu0 0
  %728 = vmatprep.subr.bf16.mxu0 0
  %729 = vmatpush1.bf16.msra.mxu0 0
  %730 = vmatprep.subr.bf16.mxu0 0
  %731 = vmatpush1.bf16.msra.mxu0 0
  %732 = vmatprep.subr.bf16.mxu0 0
  %733 = vmatpush1.bf16.msra.mxu0 0
  %734 = vmatprep.subr.bf16.mxu0 0
  %735 = vmatpush1.bf16.msra.mxu0 0
  %736 = vmatprep.subr.bf16.mxu0 0
  %737 = vmatpush1.bf16.msra.mxu0 0
  %738 = vmatprep.subr.bf16.mxu0 0
  %739 = vmatpush1.bf16.msra.mxu0 0
  %740 = vmatprep.subr.bf16.mxu0 0
  %741 = vmatpush1.bf16.msra.mxu0 0
  %742 = vmatprep.subr.bf16.mxu0 0
  %743 = vmatpush1.bf16.msra.mxu0 0
  %744 = vmatprep.subr.bf16.mxu0 0
  %745 = vmatpush1.bf16.msra.mxu0 0
  %746 = vmatprep.mubr.bf16.mxu0 0
  %747 = vmatmul.mubr.bf16.gmra.mrb[0].mxu0 %v518
  %v748 = vpop.f32.mrb[0].mxu0
  %v749 = vadd.f32 %v661, %v748
  %v750 = vpop.f32.mrb[0].mxu0
  %v751 = vpop.f32.mrb[0].mxu0
  %v752 = vadd.f32 %v664, %v751
  %v753 = vpop.f32.mrb[0].mxu0
  %754 = vmatprep.mubr.bf16.mxu0 0
  %755 = vmatmul.mubr.bf16.gmra.mrb[0].mxu0 %v521
  %v756 = vpop.f32.mrb[0].mxu0
  %v757 = vadd.f32 %v669, %v756
  %v758 = vpop.f32.mrb[0].mxu0
  %v759 = vpop.f32.mrb[0].mxu0
  %v760 = vadd.f32 %v672, %v759
  %v761 = vpop.f32.mrb[0].mxu0
  %762 = vmatprep.mubr.bf16.mxu0 0
  %763 = vmatmul.mubr.bf16.gmra.mrb[0].mxu0 %v524
  %v764 = vpop.f32.mrb[0].mxu0
  %v765 = vadd.f32 %v677, %v764
  %v766 = vpop.f32.mrb[0].mxu0
  %v767 = vpop.f32.mrb[0].mxu0
  %v768 = vadd.f32 %v680, %v767
  %v769 = vpop.f32.mrb[0].mxu0
  %770 = vmatprep.mubr.bf16.mxu0 0
  %771 = vmatmul.mubr.bf16.gmra.mrb[0].mxu0 %v527
  %v772 = vpop.f32.mrb[0].mxu0
  %v773 = vadd.f32 %v685, %v772
  %v774 = vpop.f32.mrb[0].mxu0
  %v775 = vpop.f32.mrb[0].mxu0
  %v776 = vadd.f32 %v688, %v775
  %v777 = vpop.f32.mrb[0].mxu0
  %778 = vmatprep.mubr.bf16.mxu0 0
  %779 = vmatmul.mubr.bf16.gmra.mrb[0].mxu0 %v530
  %v780 = vpop.f32.mrb[0].mxu0
  %v781 = vadd.f32 %v693, %v780
  %v782 = vpop.f32.mrb[0].mxu0
  %v783 = vpop.f32.mrb[0].mxu0
  %v784 = vadd.f32 %v696, %v783
  %v785 = vpop.f32.mrb[0].mxu0
  %786 = vmatprep.mubr.bf16.mxu0 0
  %787 = vmatmul.mubr.bf16.gmra.mrb[0].mxu0 %v533
  %v788 = vpop.f32.mrb[0].mxu0
  %v789 = vadd.f32 %v701, %v788
  %v790 = vpop.f32.mrb[0].mxu0
  %v791 = vpop.f32.mrb[0].mxu0
  %v792 = vadd.f32 %v704, %v791
  %v793 = vpop.f32.mrb[0].mxu0
  %794 = vmatprep.mubr.bf16.mxu0 0
  %795 = vmatmul.mubr.bf16.gmra.mrb[0].mxu0 %v536
  %v796 = vpop.f32.mrb[0].mxu0
  %v797 = vadd.f32 %v709, %v796
  %v798 = vpop.f32.mrb[0].mxu0
  %v799 = vpop.f32.mrb[0].mxu0
  %v800 = vpop.f32.mrb[0].mxu0
  %801 = vdwg.mxu0
  %v802 = vmax.f32 %v749, 0.0
  %v803 = vmax.f32 %v752, 0.0
  %v804 = vmax.f32 %v757, 0.0
  %v805 = vmax.f32 %v760, 0.0
  %v806 = vmax.f32 %v765, 0.0
  %v807 = vmax.f32 %v768, 0.0
  %v808 = vmax.f32 %v773, 0.0
  %v809 = vmax.f32 %v776, 0.0
  %v810 = vmax.f32 %v781, 0.0
  %v811 = vmax.f32 %v784, 0.0
  %v812 = vmax.f32 %v789, 0.0
  %v813 = vmax.f32 %v792, 0.0
  %v814 = vmax.f32 %v797, 0.0
  %v815 = vpack.c.bf16 %v803, %v802
  %v816 = vpack.c.bf16 %v805, %v804
  %v817 = vpack.c.bf16 %v807, %v806
  %v818 = vpack.c.bf16 %v809, %v808
  %v819 = vpack.c.bf16 %v811, %v810
  %v820 = vpack.c.bf16 %v813, %v812
  %v821 = vpack.c.bf16 %v814, %v814
  %v829 = vunpack.c.l.b16 %v815
  %v830 = vunpack.c.h.b16 %v815
  %v831 = vunpack.c.l.b16 %v816
  %v832 = vunpack.c.h.b16 %v816
  %v833 = vunpack.c.l.b16 %v817
  %v834 = vunpack.c.h.b16 %v817
  %v835 = vunpack.c.l.b16 %v818
  %v836 = vunpack.c.h.b16 %v818
  %v837 = vunpack.c.l.b16 %v819
  %v838 = vunpack.c.h.b16 %v819
  %v839 = vunpack.c.l.b16 %v820
  %v840 = vunpack.c.h.b16 %v820
  %v841 = vunpack.c.l.b16 %v821
  %v842 = vpack.c.b16 %v829, %v829
  %v843 = vpack.c.b16 %v830, %v830
  %v844 = vpack.c.b16 %v831, %v831
  %v845 = vpack.c.b16 %v832, %v832
  %v846 = vpack.c.b16 %v833, %v833
  %v847 = vpack.c.b16 %v834, %v834
  %v848 = vpack.c.b16 %v835, %v835
  %v849 = vpack.c.b16 %v836, %v836
  %v850 = vpack.c.b16 %v837, %v837
  %v851 = vpack.c.b16 %v838, %v838
  %v852 = vpack.c.b16 %v839, %v839
  %v853 = vpack.c.b16 %v840, %v840
  %v854 = vpack.c.b16 %v841, %v841
  %868 = vst [vmem:[%s3] sm:$0xf] %v842
  %869 = vst [vmem:[%s3 + $0x4] sm:$0xf] %v843
  %870 = vst [vmem:[%s3 + $0x8] sm:$0xf] %v844
  %871 = vst [vmem:[%s3 + $0xc] sm:$0xf] %v845
  %872 = vst [vmem:[%s3 + $0x10] sm:$0xf] %v846
  %873 = vst [vmem:[%s3 + $0x14] sm:$0xf] %v847
  %874 = vst [vmem:[%s3 + $0x18] sm:$0xf] %v848
  %875 = vst [vmem:[%s3 + $0x1c] sm:$0xf] %v849
  %876 = vst [vmem:[%s3 + $0x20] sm:$0xf] %v850
  %877 = vst [vmem:[%s3 + $0x24] sm:$0xf] %v851
  %878 = vst [vmem:[%s3 + $0x28] sm:$0xf] %v852
  %879 = vst [vmem:[%s3 + $0x2c] sm:$0xf] %v853
  %880 = vst [vmem:[%s3 + $0x30] sm:$0xf] %v854
  // Predicated region
  $region14: #{dueling_dqn_forward.6} parent=0 // pred_check
    _
  $region15: #{dueling_dqn_forward.6} parent=0 // pred_check_branch
    %882 = sbr.rel (0) target = $region17
  $region16: #{dueling_dqn_forward.6} parent=0 // pred_region
    _
  $region17: #{dueling_dqn_forward.6} parent=0 // pred_fallthru
    _
  // Predicated region
  $region18: #{dueling_dqn_forward.6} parent=0 // pred_check
    _
  $region19: #{dueling_dqn_forward.6} parent=0 // pred_check_branch
    %884 = sbr.rel (0) target = $region21
  $region20: #{dueling_dqn_forward.6} parent=0 // pred_region
    _
  $region21: #{dueling_dqn_forward.6} parent=0 // pred_fallthru
    _

// kernel: dueling_dqn_forward.7
$region0: #{dueling_dqn_forward.7}
  #allocation0 [shape = 'u32[]', space=smem, size = 0x4, offset = 0x4, fixed_abs, tag = 'smem constant byte address 0x4 - core index']
  #allocation1 [shape = 'u32[144,128]{1,0:T(1,128)}', space=vmem, size = 0x12000, scoped, tag = 'internal scratch']
  #allocation2 [shape = 'f32[2,1024]{1,0:T(2,128)}', space=vmem, size = 0x2000, scoped, tag = 'scratch operand']
  %s0 = inlined_call_operand.vmem [shape: bf16[2,3200], index: 0, kind: input, shape index: {}]
  %s1 = inlined_call_operand.vmem [shape: bf16[3200,1024], index: 1, kind: input, shape index: {}]
  %s2 = inlined_call_operand.vmem [shape: f32[1,1024], index: 2, kind: input, shape index: {}]
  %s3 = inlined_call_operand.vmem [shape: bf16[1024,128], index: 3, kind: input, shape index: {}]
  %s4 = inlined_call_operand.vmem [shape: f32[1,128], index: 4, kind: input, shape index: {}]
  %s5 = inlined_call_operand.hbm [shape: f32[2,128], index: 5, kind: output, shape index: {}]
  %s6 = sld [smem:[#allocation0]]
  $region61: #{dueling_dqn_forward.7} parent=0
    _
  %s8 = ssub.s32 1, %s6
  %s9 = scalar_select 0, %s8, %s6
  $region1: #{dueling_dqn_forward.7} parent=0
    #allocation3 [shape = 'u8[1024]{0}', space=vmem, size = 0x400, scoped, tag = 'output window, operand 0, single buffered']
    #allocation4 [shape = 's32[2]{0}', space=sflag, size = 0x8, scoped, tag = 'scoped memory for dueling_dqn_forward.7']
    %10 = vsyncpa [#allocation4], 0
    loop: start=0, step=1, limit=7
    $region2: #{dueling_dqn_forward.7} parent=1 // loop_pre_header
      _
    $region3: #{dueling_dqn_forward.7} parent=1 // loop_header
      %s12 = sphi 0, %s16
      %p13 = scmp.ge.s32.totalorder %s12, 7
      %s22 = sphi 0, %s24
      %s25 = sphi 0, %s22
      %s26 = sphi 0, %s25
      %s42 = sphi 0, %s26
      %s48 = sphi 0, %s50
      %s51 = sphi 0, %s48
      %s52 = sphi 0, %s51
      %s68 = sphi 0, %s52
      %s72 = sphi 0, %s72
      %s74 = sphi 0, %s72
      %s75 = sphi 0, %s74
      %s89 = sphi 0, %s75
      %s93 = sphi 0, %s93
      %s95 = sphi 0, %s93
      %s96 = sphi 0, %s95
      %s110 = sphi 0, %s96
      %s114 = sphi 0, %s114
      %s116 = sphi 0, %s114
      %s117 = sphi 0, %s116
      %s131 = sphi 0, %s117
      %s135 = sphi 0, %s135
      %s137 = sphi 0, %s135
      %s138 = sphi 0, %s137
      %s152 = sphi 0, %s138
    $region4: #{dueling_dqn_forward.7} parent=1 // loop_header_branch
      %15 = sbr.rel (%p13) target = $region8
    $region5: #{dueling_dqn_forward.7} parent=1 // loop_body
      %s17 = ssub.s32 %s12, 1
      %s18 = ssub.s32 %s12, 2
      %s19 = sadd.s32 %s12, 1
      %s20 = ssub.s32 %s12, %s19
      %p21 = scmp.eq.s32.totalorder %s20, 0
      %s23 = sadd.s32 %s22, 1
      %s24 = scalar_select %p21, %s22, %s23
      %p27 = pneg %p21
      %p28 = scmp.eq.s32.totalorder %s12, 4
      %p29 = por %p27, %p28
      %p30 = scmp.ne.s32.totalorder %s22, %s25
      %p31 = scmp.eq.s32.totalorder %s12, 0
      %p32 = por %p30, %p31
      %p33 = scmp.ne.s32.totalorder %s22, %s25
      %p34 = scmp.eq.s32.totalorder %s17, 4
      %p35 = por %p33, %p34
      %p36 = scmp.ne.s32.totalorder %s25, %s26
      %p37 = scmp.eq.s32.totalorder %s17, 0
      %p38 = por %p36, %p37
      %p39 = scmp.ne.s32.totalorder %s25, %s26
      %p40 = scmp.eq.s32.totalorder %s18, 4
      %p41 = por %p39, %p40
      %p43 = scmp.ne.s32.totalorder %s26, %s42
      %p44 = scmp.eq.s32.totalorder %s18, 0
      %p45 = por %p43, %p44
      %s46 = ssub.s32 %s12, %s19
      %p47 = scmp.eq.s32.totalorder %s46, 0
      %s49 = sadd.s32 %s48, 1
      %s50 = scalar_select %p47, %s48, %s49
      %p53 = pneg %p47
      %p54 = scmp.eq.s32.totalorder %s12, 4
      %p55 = por %p53, %p54
      %p56 = scmp.ne.s32.totalorder %s48, %s51
      %p57 = scmp.eq.s32.totalorder %s12, 0
      %p58 = por %p56, %p57
      %p59 = scmp.ne.s32.totalorder %s48, %s51
      %p60 = scmp.eq.s32.totalorder %s17, 4
      %p61 = por %p59, %p60
      %p62 = scmp.ne.s32.totalorder %s51, %s52
      %p63 = scmp.eq.s32.totalorder %s17, 0
      %p64 = por %p62, %p63
      %p65 = scmp.ne.s32.totalorder %s51, %s52
      %p66 = scmp.eq.s32.totalorder %s18, 4
      %p67 = por %p65, %p66
      %p69 = scmp.ne.s32.totalorder %s52, %s68
      %p70 = scmp.eq.s32.totalorder %s18, 0
      %p71 = por %p69, %p70
      %s73 = sadd.s32 %s72, 1
      %p76 = scmp.eq.s32.totalorder %s12, 4
      %p77 = scmp.ne.s32.totalorder %s72, %s74
      %p78 = scmp.eq.s32.totalorder %s12, 0
      %p79 = por %p77, %p78
      %p80 = scmp.ne.s32.totalorder %s72, %s74
      %p81 = scmp.eq.s32.totalorder %s17, 4
      %p82 = por %p80, %p81
      %p83 = scmp.ne.s32.totalorder %s74, %s75
      %p84 = scmp.eq.s32.totalorder %s17, 0
      %p85 = por %p83, %p84
      %p86 = scmp.ne.s32.totalorder %s74, %s75
      %p87 = scmp.eq.s32.totalorder %s18, 4
      %p88 = por %p86, %p87
      %p90 = scmp.ne.s32.totalorder %s75, %s89
      %p91 = scmp.eq.s32.totalorder %s18, 0
      %p92 = por %p90, %p91
      %s94 = sadd.s32 %s93, 1
      %p97 = scmp.eq.s32.totalorder %s12, 4
      %p98 = scmp.ne.s32.totalorder %s93, %s95
      %p99 = scmp.eq.s32.totalorder %s12, 0
      %p100 = por %p98, %p99
      %p101 = scmp.ne.s32.totalorder %s93, %s95
      %p102 = scmp.eq.s32.totalorder %s17, 4
      %p103 = por %p101, %p102
      %p104 = scmp.ne.s32.totalorder %s95, %s96
      %p105 = scmp.eq.s32.totalorder %s17, 0
      %p106 = por %p104, %p105
      %p107 = scmp.ne.s32.totalorder %s95, %s96
      %p108 = scmp.eq.s32.totalorder %s18, 4
      %p109 = por %p107, %p108
      %p111 = scmp.ne.s32.totalorder %s96, %s110
      %p112 = scmp.eq.s32.totalorder %s18, 0
      %p113 = por %p111, %p112
      %s115 = sadd.s32 %s114, 1
      %p118 = scmp.eq.s32.totalorder %s12, 4
      %p119 = scmp.ne.s32.totalorder %s114, %s116
      %p120 = scmp.eq.s32.totalorder %s12, 0
      %p121 = por %p119, %p120
      %p122 = scmp.ne.s32.totalorder %s114, %s116
      %p123 = scmp.eq.s32.totalorder %s17, 4
      %p124 = por %p122, %p123
      %p125 = scmp.ne.s32.totalorder %s116, %s117
      %p126 = scmp.eq.s32.totalorder %s17, 0
      %p127 = por %p125, %p126
      %p128 = scmp.ne.s32.totalorder %s116, %s117
      %p129 = scmp.eq.s32.totalorder %s18, 4
      %p130 = por %p128, %p129
      %p132 = scmp.ne.s32.totalorder %s117, %s131
      %p133 = scmp.eq.s32.totalorder %s18, 0
      %p134 = por %p132, %p133
      %s136 = sadd.s32 %s135, 1
      %p139 = scmp.eq.s32.totalorder %s12, 4
      %p140 = scmp.ne.s32.totalorder %s135, %s137
      %p141 = scmp.eq.s32.totalorder %s12, 0
      %p142 = por %p140, %p141
      %p143 = scmp.ne.s32.totalorder %s135, %s137
      %p144 = scmp.eq.s32.totalorder %s17, 4
      %p145 = por %p143, %p144
      %p146 = scmp.ne.s32.totalorder %s137, %s138
      %p147 = scmp.eq.s32.totalorder %s17, 0
      %p148 = por %p146, %p147
      %p149 = scmp.ne.s32.totalorder %s137, %s138
      %p150 = scmp.eq.s32.totalorder %s18, 4
      %p151 = por %p149, %p150
      %p153 = scmp.ne.s32.totalorder %s138, %s152
      %p154 = scmp.eq.s32.totalorder %s18, 0
      %p155 = por %p153, %p154
      %p156 = scmp.le.s32.totalorder 1, %s12
      %p157 = scmp.lt.s32.totalorder %s12, 6
      %p158 = pnand %p156, %p157
      %p159 = pneg %p158
      // Predicated region
      $region9: #{dueling_dqn_forward.7} parent=5 // pred_check
        _
      $region10: #{dueling_dqn_forward.7} parent=5 // pred_check_branch
        %161 = sbr.rel (%p158) target = $region12
      $region11: #{dueling_dqn_forward.7} parent=5 // pred_region
        %s162 = ssub.s32 %s12, 1
        // Predicated region
        $region13: #{dueling_dqn_forward.7} parent=11 // pred_check
          %p163 = pneg %p85
        $region14: #{dueling_dqn_forward.7} parent=11 // pred_check_branch
          %165 = sbr.rel (%p163) target = $region16
        $region15: #{dueling_dqn_forward.7} parent=11 // pred_region
          _
        $region16: #{dueling_dqn_forward.7} parent=11 // pred_fallthru
          _
        // Predicated region
        $region17: #{dueling_dqn_forward.7} parent=11 // pred_check
          %p166 = pneg %p106
        $region18: #{dueling_dqn_forward.7} parent=11 // pred_check_branch
          %168 = sbr.rel (%p166) target = $region20
        $region19: #{dueling_dqn_forward.7} parent=11 // pred_region
          _
        $region20: #{dueling_dqn_forward.7} parent=11 // pred_fallthru
          _
        // Predicated region
        $region21: #{dueling_dqn_forward.7} parent=11 // pred_check
          %p169 = pneg %p127
        $region22: #{dueling_dqn_forward.7} parent=11 // pred_check_branch
          %171 = sbr.rel (%p169) target = $region24
        $region23: #{dueling_dqn_forward.7} parent=11 // pred_region
          _
        $region24: #{dueling_dqn_forward.7} parent=11 // pred_fallthru
          _
      $region12: #{dueling_dqn_forward.7} parent=5 // pred_fallthru
        _
      %p172 = scmp.lt.s32.totalorder %s12, 5
      // Predicated region
      $region25: #{dueling_dqn_forward.7} parent=5 // pred_check
        %p173 = pneg %p172
      $region26: #{dueling_dqn_forward.7} parent=5 // pred_check_branch
        %175 = sbr.rel (%p173) target = $region28
      $region27: #{dueling_dqn_forward.7} parent=5 // pred_region
        // Predicated region
        $region29: #{dueling_dqn_forward.7} parent=27 // pred_check
          %p176 = pneg %p32
        $region30: #{dueling_dqn_forward.7} parent=27 // pred_check_branch
          %178 = sbr.rel (%p176) target = $region32
        $region31: #{dueling_dqn_forward.7} parent=27 // pred_region
          %s179 = smul.u32 5, %s12
          %p180 = scmp.lt.s32.totalorder %s179, 24
          %s181 = scalar_select %p180, %s179, 24
          %s182 = scalar_lea.vmem %s0, %s181
          %s183 = smul.u32 5, %s12
        $region32: #{dueling_dqn_forward.7} parent=27 // pred_fallthru
          _
        // Predicated region
        $region33: #{dueling_dqn_forward.7} parent=27 // pred_check
          %p184 = pneg %p58
        $region34: #{dueling_dqn_forward.7} parent=27 // pred_check_branch
          %186 = sbr.rel (%p184) target = $region36
        $region35: #{dueling_dqn_forward.7} parent=27 // pred_region
          %s187 = smul.u32 80, %s12
          %p188 = scmp.lt.s32.totalorder %s187, 399
          %s189 = scalar_select %p188, %s187, 399
          %s190 = smul.addr %s189, 8
          %s191 = smul.addr %s190, 4
          %s192 = scalar_lea.vmem %s1, %s191
          %s193 = smul.u32 80, %s12
        $region36: #{dueling_dqn_forward.7} parent=27 // pred_fallthru
          _
      $region28: #{dueling_dqn_forward.7} parent=5 // pred_fallthru
        _
      %p194 = scmp.le.s32.totalorder 1, %s12
      %p195 = scmp.lt.s32.totalorder %s12, 6
      %p196 = pnand %p194, %p195
      %p197 = pneg %p196
      // Predicated region
      $region37: #{dueling_dqn_forward.7} parent=5 // pred_check
        _
      $region38: #{dueling_dqn_forward.7} parent=5 // pred_check_branch
        %199 = sbr.rel (%p196) target = $region40
      $region39: #{dueling_dqn_forward.7} parent=5 // pred_region
        %s200 = ssub.s32 %s12, 1
        %s201 = smul.u32 5, %s17
        %p202 = scmp.lt.s32.totalorder %s201, 24
        %s203 = scalar_select %p202, %s201, 24
        %s204 = scalar_lea.vmem %s0, %s203
        %p205 = pneg %p38
        %p206 = pneg %p35
        %s207 = smul.u32 80, %s17
        %p208 = scmp.lt.s32.totalorder %s207, 399
        %s209 = scalar_select %p208, %s207, 399
        %s210 = smul.addr %s209, 8
        %s211 = smul.addr %s210, 4
        %s212 = scalar_lea.vmem %s1, %s211
        %p213 = pneg %p64
        %p214 = pneg %p61
        %p215 = pneg %p85
        %p216 = pneg %p82
        %p217 = pneg %p106
        %p218 = pneg %p103
        %p219 = pneg %p127
        %p220 = pneg %p124
        %p221 = pneg %p148
        %p222 = pneg %p145
        %s223 = smul.u32 5, %s17
        %p224 = scmp.lt.s32.totalorder %s223, 24
        %s225 = scalar_select %p224, %s223, 24
        %s226 = scalar_lea.vmem %s0, %s225
        %s227 = smul.u32 5, %s17
        %s228 = smul.u32 80, %s17
        %p229 = scmp.lt.s32.totalorder %s228, 399
        %s230 = scalar_select %p229, %s228, 399
        %s231 = smul.addr %s230, 8
        %s232 = smul.addr %s231, 4
        %s233 = scalar_lea.vmem %s1, %s232
        %s234 = smul.u32 80, %s17
        %p236 = scmp.eq.s32.totalorder %s17, 0
        // Predicated region
        $region41: #{dueling_dqn_forward.7} parent=39 // pred_check
          %p237 = pneg %p236
        $region42: #{dueling_dqn_forward.7} parent=39 // pred_check_branch
          %239 = sbr.rel (%p237) target = $region44
        $region43: #{dueling_dqn_forward.7} parent=39 // pred_region
          %240 = vst [vmem:[#allocation2] sm:$0xff] 0.0
          %241 = vst [vmem:[#allocation2 + $0x8] sm:$0xff] 0.0
        $region44: #{dueling_dqn_forward.7} parent=39 // pred_fallthru
          _
        %v242 = vld [vmem:[#allocation2] sm:$0xff]
        %v243 = vld [vmem:[#allocation2 + $0x8] sm:$0xff]
        %v244 = vld [vmem:[%s226] sm:$0x1f]
        %v245 = vld [vmem:[%s233] sm:$0xff]
        %v246 = vld [vmem:[%s233 + $0x8] sm:$0xff]
        %v247 = vld [vmem:[%s233 + $0x10] sm:$0xff]
        %v248 = vld [vmem:[%s233 + $0x18] sm:$0xff]
        %v249 = vld [vmem:[%s233 + $0x20] sm:$0xff]
        %v250 = vld [vmem:[%s233 + $0x28] sm:$0xff]
        %v251 = vld [vmem:[%s233 + $0x30] sm:$0xff]
        %v252 = vld [vmem:[%s233 + $0x38] sm:$0xff]
        %v253 = vld [vmem:[%s233 + $0x40] sm:$0xff]
        %v254 = vld [vmem:[%s233 + $0x48] sm:$0xff]
        %v255 = vld [vmem:[%s233 + $0x50] sm:$0xff]
        %v256 = vld [vmem:[%s233 + $0x58] sm:$0xff]
        %v257 = vld [vmem:[%s233 + $0x60] sm:$0xff]
        %v258 = vld [vmem:[%s233 + $0x68] sm:$0xff]
        %v259 = vld [vmem:[%s233 + $0x70] sm:$0xff]
        %v260 = vld [vmem:[%s233 + $0x78] sm:$0xff]
        %v261 = vld [vmem:[%s233 + $0x80] sm:$0xff]
        %v262 = vld [vmem:[%s233 + $0x88] sm:$0xff]
        %v263 = vld [vmem:[%s233 + $0x90] sm:$0xff]
        %v264 = vld [vmem:[%s233 + $0x98] sm:$0xff]
        %v265 = vld [vmem:[%s233 + $0xa0] sm:$0xff]
        %v266 = vld [vmem:[%s233 + $0xa8] sm:$0xff]
        %v267 = vld [vmem:[%s233 + $0xb0] sm:$0xff]
        %v268 = vld [vmem:[%s233 + $0xb8] sm:$0xff]
        %v269 = vld [vmem:[%s233 + $0xc0] sm:$0xff]
        %v270 = vld [vmem:[%s233 + $0xc8] sm:$0xff]
        %v271 = vld [vmem:[%s233 + $0xd0] sm:$0xff]
        %v272 = vld [vmem:[%s233 + $0xd8] sm:$0xff]
        %v273 = vld [vmem:[%s233 + $0xe0] sm:$0xff]
        %v274 = vld [vmem:[%s233 + $0xe8] sm:$0xff]
        %v275 = vld [vmem:[%s233 + $0xf0] sm:$0xff]
        %v276 = vld [vmem:[%s233 + $0xf8] sm:$0xff]
        %v277 = vld [vmem:[%s233 + $0x100] sm:$0xff]
        %v278 = vld [vmem:[%s233 + $0x108] sm:$0xff]
        %v279 = vld [vmem:[%s233 + $0x110] sm:$0xff]
        %v280 = vld [vmem:[%s233 + $0x118] sm:$0xff]
        %v281 = vld [vmem:[%s233 + $0x120] sm:$0xff]
        %v282 = vld [vmem:[%s233 + $0x128] sm:$0xff]
        %v283 = vld [vmem:[%s233 + $0x130] sm:$0xff]
        %v284 = vld [vmem:[%s233 + $0x138] sm:$0xff]
        %v285 = vld [vmem:[%s233 + $0x140] sm:$0xff]
        %v286 = vld [vmem:[%s233 + $0x148] sm:$0xff]
        %v287 = vld [vmem:[%s233 + $0x150] sm:$0xff]
        %v288 = vld [vmem:[%s233 + $0x158] sm:$0xff]
        %v289 = vld [vmem:[%s233 + $0x160] sm:$0xff]
        %v290 = vld [vmem:[%s233 + $0x168] sm:$0xff]
        %v291 = vld [vmem:[%s233 + $0x170] sm:$0xff]
        %v292 = vld [vmem:[%s233 + $0x178] sm:$0xff]
        %v293 = vld [vmem:[%s233 + $0x180] sm:$0xff]
        %v294 = vld [vmem:[%s233 + $0x188] sm:$0xff]
        %v295 = vld [vmem:[%s233 + $0x190] sm:$0xff]
        %v296 = vld [vmem:[%s233 + $0x198] sm:$0xff]
        %v297 = vld [vmem:[%s233 + $0x1a0] sm:$0xff]
        %v298 = vld [vmem:[%s233 + $0x1a8] sm:$0xff]
        %v299 = vld [vmem:[%s233 + $0x1b0] sm:$0xff]
        %v300 = vld [vmem:[%s233 + $0x1b8] sm:$0xff]
        %v301 = vld [vmem:[%s233 + $0x1c0] sm:$0xff]
        %v302 = vld [vmem:[%s233 + $0x1c8] sm:$0xff]
        %v303 = vld [vmem:[%s233 + $0x1d0] sm:$0xff]
        %v304 = vld [vmem:[%s233 + $0x1d8] sm:$0xff]
        %v305 = vld [vmem:[%s233 + $0x1e0] sm:$0xff]
        %v306 = vld [vmem:[%s233 + $0x1e8] sm:$0xff]
        %v307 = vld [vmem:[%s233 + $0x1f0] sm:$0xff]
        %v308 = vld [vmem:[%s233 + $0x1f8] sm:$0xff]
        %v309 = vld [vmem:[%s233 + $0x200] sm:$0xff]
        %v310 = vld [vmem:[%s233 + $0x208] sm:$0xff]
        %v311 = vld [vmem:[%s233 + $0x210] sm:$0xff]
        %v312 = vld [vmem:[%s233 + $0x218] sm:$0xff]
        %v313 = vld [vmem:[%s233 + $0x220] sm:$0xff]
        %v314 = vld [vmem:[%s233 + $0x228] sm:$0xff]
        %v315 = vld [vmem:[%s233 + $0x230] sm:$0xff]
        %v316 = vld [vmem:[%s233 + $0x238] sm:$0xff]
        %v317 = vld [vmem:[%s233 + $0x240] sm:$0xff]
        %v318 = vld [vmem:[%s233 + $0x248] sm:$0xff]
        %v319 = vld [vmem:[%s233 + $0x250] sm:$0xff]
        %v320 = vld [vmem:[%s233 + $0x258] sm:$0xff]
        %v321 = vld [vmem:[%s233 + $0x260] sm:$0xff]
        %v322 = vld [vmem:[%s233 + $0x268] sm:$0xff]
        %v323 = vld [vmem:[%s233 + $0x270] sm:$0xff]
        %v324 = vld [vmem:[%s233 + $0x278] sm:$0xff]
        %v325 = vld [vmem:[%s233 + $0x280] sm:$0xff]
        %v326 = vld [vmem:[%s233 + $0x288] sm:$0xff]
        %v327 = vld [vmem:[%s233 + $0x290] sm:$0xff]
        %v328 = vld [vmem:[%s233 + $0x298] sm:$0xff]
        %v329 = vld [vmem:[%s233 + $0x2a0] sm:$0xff]
        %v330 = vld [vmem:[%s233 + $0x2a8] sm:$0xff]
        %v331 = vld [vmem:[%s233 + $0x2b0] sm:$0xff]
        %v332 = vld [vmem:[%s233 + $0x2b8] sm:$0xff]
        %v333 = vld [vmem:[%s233 + $0x2c0] sm:$0xff]
        %v334 = vld [vmem:[%s233 + $0x2c8] sm:$0xff]
        %v335 = vld [vmem:[%s233 + $0x2d0] sm:$0xff]
        %v336 = vld [vmem:[%s233 + $0x2d8] sm:$0xff]
        %v337 = vld [vmem:[%s233 + $0x2e0] sm:$0xff]
        %v338 = vld [vmem:[%s233 + $0x2e8] sm:$0xff]
        %v339 = vld [vmem:[%s233 + $0x2f0] sm:$0xff]
        %v340 = vld [vmem:[%s233 + $0x2f8] sm:$0xff]
        %v341 = vld [vmem:[%s233 + $0x300] sm:$0xff]
        %v342 = vld [vmem:[%s233 + $0x308] sm:$0xff]
        %v343 = vld [vmem:[%s233 + $0x310] sm:$0xff]
        %v344 = vld [vmem:[%s233 + $0x318] sm:$0xff]
        %v345 = vld [vmem:[%s233 + $0x320] sm:$0xff]
        %v346 = vld [vmem:[%s233 + $0x328] sm:$0xff]
        %v347 = vld [vmem:[%s233 + $0x330] sm:$0xff]
        %v348 = vld [vmem:[%s233 + $0x338] sm:$0xff]
        %v349 = vld [vmem:[%s233 + $0x340] sm:$0xff]
        %v350 = vld [vmem:[%s233 + $0x348] sm:$0xff]
        %v351 = vld [vmem:[%s233 + $0x350] sm:$0xff]
        %v352 = vld [vmem:[%s233 + $0x358] sm:$0xff]
        %v353 = vld [vmem:[%s233 + $0x360] sm:$0xff]
        %v354 = vld [vmem:[%s233 + $0x368] sm:$0xff]
        %v355 = vld [vmem:[%s233 + $0x370] sm:$0xff]
        %v356 = vld [vmem:[%s233 + $0x378] sm:$0xff]
        %v357 = vld [vmem:[%s233 + $0x380] sm:$0xff]
        %v358 = vld [vmem:[%s233 + $0x388] sm:$0xff]
        %v359 = vld [vmem:[%s233 + $0x390] sm:$0xff]
        %v360 = vld [vmem:[%s233 + $0x398] sm:$0xff]
        %v361 = vld [vmem:[%s233 + $0x3a0] sm:$0xff]
        %v362 = vld [vmem:[%s233 + $0x3a8] sm:$0xff]
        %v363 = vld [vmem:[%s233 + $0x3b0] sm:$0xff]
        %v364 = vld [vmem:[%s233 + $0x3b8] sm:$0xff]
        %v365 = vld [vmem:[%s233 + $0x3c0] sm:$0xff]
        %v366 = vld [vmem:[%s233 + $0x3c8] sm:$0xff]
        %v367 = vld [vmem:[%s233 + $0x3d0] sm:$0xff]
        %v368 = vld [vmem:[%s233 + $0x3d8] sm:$0xff]
        %v369 = vld [vmem:[%s233 + $0x3e0] sm:$0xff]
        %v370 = vld [vmem:[%s233 + $0x3e8] sm:$0xff]
        %v371 = vld [vmem:[%s233 + $0x3f0] sm:$0xff]
        %v372 = vld [vmem:[%s233 + $0x3f8] sm:$0xff]
        %v373 = vld [vmem:[%s233 + $0x400] sm:$0xff]
        %v374 = vld [vmem:[%s233 + $0x408] sm:$0xff]
        %v375 = vld [vmem:[%s233 + $0x410] sm:$0xff]
        %v376 = vld [vmem:[%s233 + $0x418] sm:$0xff]
        %v377 = vld [vmem:[%s233 + $0x420] sm:$0xff]
        %v378 = vld [vmem:[%s233 + $0x428] sm:$0xff]
        %v379 = vld [vmem:[%s233 + $0x430] sm:$0xff]
        %v380 = vld [vmem:[%s233 + $0x438] sm:$0xff]
        %v381 = vld [vmem:[%s233 + $0x440] sm:$0xff]
        %v382 = vld [vmem:[%s233 + $0x448] sm:$0xff]
        %v383 = vld [vmem:[%s233 + $0x450] sm:$0xff]
        %v384 = vld [vmem:[%s233 + $0x458] sm:$0xff]
        %v385 = vld [vmem:[%s233 + $0x460] sm:$0xff]
        %v386 = vld [vmem:[%s233 + $0x468] sm:$0xff]
        %v387 = vld [vmem:[%s233 + $0x470] sm:$0xff]
        %v388 = vld [vmem:[%s233 + $0x478] sm:$0xff]
        %v389 = vld [vmem:[%s233 + $0x480] sm:$0xff]
        %v390 = vld [vmem:[%s233 + $0x488] sm:$0xff]
        %v391 = vld [vmem:[%s233 + $0x490] sm:$0xff]
        %v392 = vld [vmem:[%s233 + $0x498] sm:$0xff]
        %v393 = vld [vmem:[%s233 + $0x4a0] sm:$0xff]
        %v394 = vld [vmem:[%s233 + $0x4a8] sm:$0xff]
        %v395 = vld [vmem:[%s233 + $0x4b0] sm:$0xff]
        %v396 = vld [vmem:[%s233 + $0x4b8] sm:$0xff]
        %v397 = vld [vmem:[%s233 + $0x4c0] sm:$0xff]
        %v398 = vld [vmem:[%s233 + $0x4c8] sm:$0xff]
        %v399 = vld [vmem:[%s233 + $0x4d0] sm:$0xff]
        %v400 = vld [vmem:[%s233 + $0x4d8] sm:$0xff]
        %v401 = vld [vmem:[%s233 + $0x4e0] sm:$0xff]
        %v402 = vld [vmem:[%s233 + $0x4e8] sm:$0xff]
        %v403 = vld [vmem:[%s233 + $0x4f0] sm:$0xff]
        %v404 = vld [vmem:[%s233 + $0x4f8] sm:$0xff]
        %v405 = vld [vmem:[%s233 + $0x500] sm:$0xff]
        %v406 = vld [vmem:[%s233 + $0x508] sm:$0xff]
        %v407 = vld [vmem:[%s233 + $0x510] sm:$0xff]
        %v408 = vld [vmem:[%s233 + $0x518] sm:$0xff]
        %v409 = vld [vmem:[%s233 + $0x520] sm:$0xff]
        %v410 = vld [vmem:[%s233 + $0x528] sm:$0xff]
        %v411 = vld [vmem:[%s233 + $0x530] sm:$0xff]
        %v412 = vld [vmem:[%s233 + $0x538] sm:$0xff]
        %v413 = vld [vmem:[%s233 + $0x540] sm:$0xff]
        %v414 = vld [vmem:[%s233 + $0x548] sm:$0xff]
        %v415 = vld [vmem:[%s233 + $0x550] sm:$0xff]
        %v416 = vld [vmem:[%s233 + $0x558] sm:$0xff]
        %v417 = vld [vmem:[%s233 + $0x560] sm:$0xff]
        %v418 = vld [vmem:[%s233 + $0x568] sm:$0xff]
        %v419 = vld [vmem:[%s233 + $0x570] sm:$0xff]
        %v420 = vld [vmem:[%s233 + $0x578] sm:$0xff]
        %v421 = vld [vmem:[%s233 + $0x580] sm:$0xff]
        %v422 = vld [vmem:[%s233 + $0x588] sm:$0xff]
        %v423 = vld [vmem:[%s233 + $0x590] sm:$0xff]
        %v424 = vld [vmem:[%s233 + $0x598] sm:$0xff]
        %v425 = vld [vmem:[%s233 + $0x5a0] sm:$0xff]
        %v426 = vld [vmem:[%s233 + $0x5a8] sm:$0xff]
        %v427 = vld [vmem:[%s233 + $0x5b0] sm:$0xff]
        %v428 = vld [vmem:[%s233 + $0x5b8] sm:$0xff]
        %v429 = vld [vmem:[%s233 + $0x5c0] sm:$0xff]
        %v430 = vld [vmem:[%s233 + $0x5c8] sm:$0xff]
        %v431 = vld [vmem:[%s233 + $0x5d0] sm:$0xff]
        %v432 = vld [vmem:[%s233 + $0x5d8] sm:$0xff]
        %v433 = vld [vmem:[%s233 + $0x5e0] sm:$0xff]
        %v434 = vld [vmem:[%s233 + $0x5e8] sm:$0xff]
        %v435 = vld [vmem:[%s233 + $0x5f0] sm:$0xff]
        %v436 = vld [vmem:[%s233 + $0x5f8] sm:$0xff]
        %v437 = vld [vmem:[%s233 + $0x600] sm:$0xff]
        %v438 = vld [vmem:[%s233 + $0x608] sm:$0xff]
        %v439 = vld [vmem:[%s233 + $0x610] sm:$0xff]
        %v440 = vld [vmem:[%s233 + $0x618] sm:$0xff]
        %v441 = vld [vmem:[%s233 + $0x620] sm:$0xff]
        %v442 = vld [vmem:[%s233 + $0x628] sm:$0xff]
        %v443 = vld [vmem:[%s233 + $0x630] sm:$0xff]
        %v444 = vld [vmem:[%s233 + $0x638] sm:$0xff]
        %v445 = vld [vmem:[%s233 + $0x640] sm:$0xff]
        %v446 = vld [vmem:[%s233 + $0x648] sm:$0xff]
        %v447 = vld [vmem:[%s233 + $0x650] sm:$0xff]
        %v448 = vld [vmem:[%s233 + $0x658] sm:$0xff]
        %v449 = vld [vmem:[%s233 + $0x660] sm:$0xff]
        %v450 = vld [vmem:[%s233 + $0x668] sm:$0xff]
        %v451 = vld [vmem:[%s233 + $0x670] sm:$0xff]
        %v452 = vld [vmem:[%s233 + $0x678] sm:$0xff]
        %v453 = vld [vmem:[%s233 + $0x680] sm:$0xff]
        %v454 = vld [vmem:[%s233 + $0x688] sm:$0xff]
        %v455 = vld [vmem:[%s233 + $0x690] sm:$0xff]
        %v456 = vld [vmem:[%s233 + $0x698] sm:$0xff]
        %v457 = vld [vmem:[%s233 + $0x6a0] sm:$0xff]
        %v458 = vld [vmem:[%s233 + $0x6a8] sm:$0xff]
        %v459 = vld [vmem:[%s233 + $0x6b0] sm:$0xff]
        %v460 = vld [vmem:[%s233 + $0x6b8] sm:$0xff]
        %v461 = vld [vmem:[%s233 + $0x6c0] sm:$0xff]
        %v462 = vld [vmem:[%s233 + $0x6c8] sm:$0xff]
        %v463 = vld [vmem:[%s233 + $0x6d0] sm:$0xff]
        %v464 = vld [vmem:[%s233 + $0x6d8] sm:$0xff]
        %v465 = vld [vmem:[%s233 + $0x6e0] sm:$0xff]
        %v466 = vld [vmem:[%s233 + $0x6e8] sm:$0xff]
        %v467 = vld [vmem:[%s233 + $0x6f0] sm:$0xff]
        %v468 = vld [vmem:[%s233 + $0x6f8] sm:$0xff]
        %v469 = vld [vmem:[%s233 + $0x700] sm:$0xff]
        %v470 = vld [vmem:[%s233 + $0x708] sm:$0xff]
        %v471 = vld [vmem:[%s233 + $0x710] sm:$0xff]
        %v472 = vld [vmem:[%s233 + $0x718] sm:$0xff]
        %v473 = vld [vmem:[%s233 + $0x720] sm:$0xff]
        %v474 = vld [vmem:[%s233 + $0x728] sm:$0xff]
        %v475 = vld [vmem:[%s233 + $0x730] sm:$0xff]
        %v476 = vld [vmem:[%s233 + $0x738] sm:$0xff]
        %v477 = vld [vmem:[%s233 + $0x740] sm:$0xff]
        %v478 = vld [vmem:[%s233 + $0x748] sm:$0xff]
        %v479 = vld [vmem:[%s233 + $0x750] sm:$0xff]
        %v480 = vld [vmem:[%s233 + $0x758] sm:$0xff]
        %v481 = vld [vmem:[%s233 + $0x760] sm:$0xff]
        %v482 = vld [vmem:[%s233 + $0x768] sm:$0xff]
        %v483 = vld [vmem:[%s233 + $0x770] sm:$0xff]
        %v484 = vld [vmem:[%s233 + $0x778] sm:$0xff]
        %v485 = vld [vmem:[%s233 + $0x780] sm:$0xff]
        %v486 = vld [vmem:[%s233 + $0x788] sm:$0xff]
        %v487 = vld [vmem:[%s233 + $0x790] sm:$0xff]
        %v488 = vld [vmem:[%s233 + $0x798] sm:$0xff]
        %v489 = vld [vmem:[%s233 + $0x7a0] sm:$0xff]
        %v490 = vld [vmem:[%s233 + $0x7a8] sm:$0xff]
        %v491 = vld [vmem:[%s233 + $0x7b0] sm:$0xff]
        %v492 = vld [vmem:[%s233 + $0x7b8] sm:$0xff]
        %v493 = vld [vmem:[%s233 + $0x7c0] sm:$0xff]
        %v494 = vld [vmem:[%s233 + $0x7c8] sm:$0xff]
        %v495 = vld [vmem:[%s233 + $0x7d0] sm:$0xff]
        %v496 = vld [vmem:[%s233 + $0x7d8] sm:$0xff]
        %v497 = vld [vmem:[%s233 + $0x7e0] sm:$0xff]
        %v498 = vld [vmem:[%s233 + $0x7e8] sm:$0xff]
        %v499 = vld [vmem:[%s233 + $0x7f0] sm:$0xff]
        %v500 = vld [vmem:[%s233 + $0x7f8] sm:$0xff]
        %v501 = vld [vmem:[%s233 + $0x800] sm:$0xff]
        %v502 = vld [vmem:[%s233 + $0x808] sm:$0xff]
        %v503 = vld [vmem:[%s233 + $0x810] sm:$0xff]
        %v504 = vld [vmem:[%s233 + $0x818] sm:$0xff]
        %v505 = vld [vmem:[%s233 + $0x820] sm:$0xff]
        %v506 = vld [vmem:[%s233 + $0x828] sm:$0xff]
        %v507 = vld [vmem:[%s233 + $0x830] sm:$0xff]
        %v508 = vld [vmem:[%s233 + $0x838] sm:$0xff]
        %v509 = vld [vmem:[%s233 + $0x840] sm:$0xff]
        %v510 = vld [vmem:[%s233 + $0x848] sm:$0xff]
        %v511 = vld [vmem:[%s233 + $0x850] sm:$0xff]
        %v512 = vld [vmem:[%s233 + $0x858] sm:$0xff]
        %v513 = vld [vmem:[%s233 + $0x860] sm:$0xff]
        %v514 = vld [vmem:[%s233 + $0x868] sm:$0xff]
        %v515 = vld [vmem:[%s233 + $0x870] sm:$0xff]
        %v516 = vld [vmem:[%s233 + $0x878] sm:$0xff]
        %v517 = vld [vmem:[%s233 + $0x880] sm:$0xff]
        %v518 = vld [vmem:[%s233 + $0x888] sm:$0xff]
        %v519 = vld [vmem:[%s233 + $0x890] sm:$0xff]
        %v520 = vld [vmem:[%s233 + $0x898] sm:$0xff]
        %v521 = vld [vmem:[%s233 + $0x8a0] sm:$0xff]
        %v522 = vld [vmem:[%s233 + $0x8a8] sm:$0xff]
        %v523 = vld [vmem:[%s233 + $0x8b0] sm:$0xff]
        %v524 = vld [vmem:[%s233 + $0x8b8] sm:$0xff]
        %v525 = vld [vmem:[%s233 + $0x8c0] sm:$0xff]
        %v526 = vld [vmem:[%s233 + $0x8c8] sm:$0xff]
        %v527 = vld [vmem:[%s233 + $0x8d0] sm:$0xff]
        %v528 = vld [vmem:[%s233 + $0x8d8] sm:$0xff]
        %v529 = vld [vmem:[%s233 + $0x8e0] sm:$0xff]
        %v530 = vld [vmem:[%s233 + $0x8e8] sm:$0xff]
        %v531 = vld [vmem:[%s233 + $0x8f0] sm:$0xff]
        %v532 = vld [vmem:[%s233 + $0x8f8] sm:$0xff]
        %v533 = vld [vmem:[%s233 + $0x900] sm:$0xff]
        %v534 = vld [vmem:[%s233 + $0x908] sm:$0xff]
        %v535 = vld [vmem:[%s233 + $0x910] sm:$0xff]
        %v536 = vld [vmem:[%s233 + $0x918] sm:$0xff]
        %v537 = vld [vmem:[%s233 + $0x920] sm:$0xff]
        %v538 = vld [vmem:[%s233 + $0x928] sm:$0xff]
        %v539 = vld [vmem:[%s233 + $0x930] sm:$0xff]
        %v540 = vld [vmem:[%s233 + $0x938] sm:$0xff]
        %v541 = vld [vmem:[%s233 + $0x940] sm:$0xff]
        %v542 = vld [vmem:[%s233 + $0x948] sm:$0xff]
        %v543 = vld [vmem:[%s233 + $0x950] sm:$0xff]
        %v544 = vld [vmem:[%s233 + $0x958] sm:$0xff]
        %v545 = vld [vmem:[%s233 + $0x960] sm:$0xff]
        %v546 = vld [vmem:[%s233 + $0x968] sm:$0xff]
        %v547 = vld [vmem:[%s233 + $0x970] sm:$0xff]
        %v548 = vld [vmem:[%s233 + $0x978] sm:$0xff]
        %v549 = vld [vmem:[%s233 + $0x980] sm:$0xff]
        %v550 = vld [vmem:[%s233 + $0x988] sm:$0xff]
        %v551 = vld [vmem:[%s233 + $0x990] sm:$0xff]
        %v552 = vld [vmem:[%s233 + $0x998] sm:$0xff]
        %v553 = vld [vmem:[%s233 + $0x9a0] sm:$0xff]
        %v554 = vld [vmem:[%s233 + $0x9a8] sm:$0xff]
        %v555 = vld [vmem:[%s233 + $0x9b0] sm:$0xff]
        %v556 = vld [vmem:[%s233 + $0x9b8] sm:$0xff]
        %v557 = vld [vmem:[%s233 + $0x9c0] sm:$0xff]
        %v558 = vld [vmem:[%s233 + $0x9c8] sm:$0xff]
        %v559 = vld [vmem:[%s233 + $0x9d0] sm:$0xff]
        %v560 = vld [vmem:[%s233 + $0x9d8] sm:$0xff]
        %v561 = vld [vmem:[%s233 + $0x9e0] sm:$0xff]
        %v562 = vld [vmem:[%s233 + $0x9e8] sm:$0xff]
        %v563 = vld [vmem:[%s233 + $0x9f0] sm:$0xff]
        %v564 = vld [vmem:[%s233 + $0x9f8] sm:$0xff]
        %v566 = vcombine.high %v244, %v244
        %v568 = vunpack.c.l.s4 1966171168
        %v569 = vunpack.c.0.s8 %v568
        %v570 = vlaneseq
        %v571 = vshrl.u32 %v570, 7
        %v572 = vsub.s32 %v569, %v571
        %v573 = vrot.slane %v244, %v572
        %v575 = vunpack.c.l.s4 1966171168
        %v576 = vunpack.c.0.s8 %v575
        %v577 = vlaneseq
        %v578 = vshrl.u32 %v577, 7
        %v579 = vsub.s32 %v576, %v578
        %v580 = vrot.slane %v566, %v579
        %v581 = vcombine.high %v573, %v573
        %v583 = vunpack.c.l.s4 1966171168
        %v584 = vunpack.c.0.s8 %v583
        %v585 = vlaneseq
        %v586 = vshrl.u32 %v585, 7
        %v587 = vsub.s32 %v584, %v586
        %v588 = vrot.slane %v573, %v587
        %v590 = vunpack.c.l.s4 1966171168
        %v591 = vunpack.c.0.s8 %v590
        %v592 = vlaneseq
        %v593 = vshrl.u32 %v592, 7
        %v594 = vsub.s32 %v591, %v593
        %v595 = vrot.slane %v580, %v594
        %v597 = vunpack.c.l.s4 1966171168
        %v598 = vunpack.c.0.s8 %v597
        %v599 = vlaneseq
        %v600 = vshrl.u32 %v599, 7
        %v601 = vsub.s32 %v598, %v600
        %v602 = vrot.slane %v581, %v601
        %v603 = vcombine.high %v588, %v588
        %v604 = vcombine.high %v602, %v602
        %v930 = vunpack.c.l.b16 %v245
        %v931 = vunpack.c.h.b16 %v245
        %v932 = vunpack.c.l.b16 %v246
        %v933 = vunpack.c.h.b16 %v246
        %v934 = vunpack.c.l.b16 %v247
        %v935 = vunpack.c.h.b16 %v247
        %v936 = vunpack.c.l.b16 %v248
        %v937 = vunpack.c.h.b16 %v248
        %v938 = vunpack.c.l.b16 %v249
        %v939 = vunpack.c.h.b16 %v249
        %v940 = vunpack.c.l.b16 %v250
        %v941 = vunpack.c.h.b16 %v250
        %v942 = vunpack.c.l.b16 %v251
        %v943 = vunpack.c.h.b16 %v251
        %v944 = vunpack.c.l.b16 %v252
        %v945 = vunpack.c.h.b16 %v252
        %v946 = vunpack.c.l.b16 %v253
        %v947 = vunpack.c.h.b16 %v253
        %v948 = vunpack.c.l.b16 %v254
        %v949 = vunpack.c.h.b16 %v254
        %v950 = vunpack.c.l.b16 %v255
        %v951 = vunpack.c.h.b16 %v255
        %v952 = vunpack.c.l.b16 %v256
        %v953 = vunpack.c.h.b16 %v256
        %v954 = vunpack.c.l.b16 %v257
        %v955 = vunpack.c.h.b16 %v257
        %v956 = vunpack.c.l.b16 %v258
        %v957 = vunpack.c.h.b16 %v258
        %v958 = vunpack.c.l.b16 %v259
        %v959 = vunpack.c.h.b16 %v259
        %v960 = vunpack.c.l.b16 %v260
        %v961 = vunpack.c.h.b16 %v260
        %v962 = vunpack.c.l.b16 %v261
        %v963 = vunpack.c.h.b16 %v261
        %v964 = vunpack.c.l.b16 %v262
        %v965 = vunpack.c.h.b16 %v262
        %v966 = vunpack.c.l.b16 %v263
        %v967 = vunpack.c.h.b16 %v263
        %v968 = vunpack.c.l.b16 %v264
        %v969 = vunpack.c.h.b16 %v264
        %v970 = vunpack.c.l.b16 %v265
        %v971 = vunpack.c.h.b16 %v265
        %v972 = vunpack.c.l.b16 %v266
        %v973 = vunpack.c.h.b16 %v266
        %v974 = vunpack.c.l.b16 %v267
        %v975 = vunpack.c.h.b16 %v267
        %v976 = vunpack.c.l.b16 %v268
        %v977 = vunpack.c.h.b16 %v268
        %v978 = vunpack.c.l.b16 %v269
        %v979 = vunpack.c.h.b16 %v269
        %v980 = vunpack.c.l.b16 %v270
        %v981 = vunpack.c.h.b16 %v270
        %v982 = vunpack.c.l.b16 %v271
        %v983 = vunpack.c.h.b16 %v271
        %v984 = vunpack.c.l.b16 %v272
        %v985 = vunpack.c.h.b16 %v272
        %v986 = vunpack.c.l.b16 %v273
        %v987 = vunpack.c.h.b16 %v273
        %v988 = vunpack.c.l.b16 %v274
        %v989 = vunpack.c.h.b16 %v274
        %v990 = vunpack.c.l.b16 %v275
        %v991 = vunpack.c.h.b16 %v275
        %v992 = vunpack.c.l.b16 %v276
        %v993 = vunpack.c.h.b16 %v276
        %v994 = vunpack.c.l.b16 %v277
        %v995 = vunpack.c.h.b16 %v277
        %v996 = vunpack.c.l.b16 %v278
        %v997 = vunpack.c.h.b16 %v278
        %v998 = vunpack.c.l.b16 %v279
        %v999 = vunpack.c.h.b16 %v279
        %v1000 = vunpack.c.l.b16 %v280
        %v1001 = vunpack.c.h.b16 %v280
        %v1002 = vunpack.c.l.b16 %v281
        %v1003 = vunpack.c.h.b16 %v281
        %v1004 = vunpack.c.l.b16 %v282
        %v1005 = vunpack.c.h.b16 %v282
        %v1006 = vunpack.c.l.b16 %v283
        %v1007 = vunpack.c.h.b16 %v283
        %v1008 = vunpack.c.l.b16 %v284
        %v1009 = vunpack.c.h.b16 %v284
        %v1010 = vunpack.c.l.b16 %v285
        %v1011 = vunpack.c.h.b16 %v285
        %v1012 = vunpack.c.l.b16 %v286
        %v1013 = vunpack.c.h.b16 %v286
        %v1014 = vunpack.c.l.b16 %v287
        %v1015 = vunpack.c.h.b16 %v287
        %v1016 = vunpack.c.l.b16 %v288
        %v1017 = vunpack.c.h.b16 %v288
        %v1018 = vunpack.c.l.b16 %v289
        %v1019 = vunpack.c.h.b16 %v289
        %v1020 = vunpack.c.l.b16 %v290
        %v1021 = vunpack.c.h.b16 %v290
        %v1022 = vunpack.c.l.b16 %v291
        %v1023 = vunpack.c.h.b16 %v291
        %v1024 = vunpack.c.l.b16 %v292
        %v1025 = vunpack.c.h.b16 %v292
        %v1026 = vunpack.c.l.b16 %v293
        %v1027 = vunpack.c.h.b16 %v293
        %v1028 = vunpack.c.l.b16 %v294
        %v1029 = vunpack.c.h.b16 %v294
        %v1030 = vunpack.c.l.b16 %v295
        %v1031 = vunpack.c.h.b16 %v295
        %v1032 = vunpack.c.l.b16 %v296
        %v1033 = vunpack.c.h.b16 %v296
        %v1034 = vunpack.c.l.b16 %v297
        %v1035 = vunpack.c.h.b16 %v297
        %v1036 = vunpack.c.l.b16 %v298
        %v1037 = vunpack.c.h.b16 %v298
        %v1038 = vunpack.c.l.b16 %v299
        %v1039 = vunpack.c.h.b16 %v299
        %v1040 = vunpack.c.l.b16 %v300
        %v1041 = vunpack.c.h.b16 %v300
        %v1042 = vunpack.c.l.b16 %v301
        %v1043 = vunpack.c.h.b16 %v301
        %v1044 = vunpack.c.l.b16 %v302
        %v1045 = vunpack.c.h.b16 %v302
        %v1046 = vunpack.c.l.b16 %v303
        %v1047 = vunpack.c.h.b16 %v303
        %v1048 = vunpack.c.l.b16 %v304
        %v1049 = vunpack.c.h.b16 %v304
        %v1050 = vunpack.c.l.b16 %v305
        %v1051 = vunpack.c.h.b16 %v305
        %v1052 = vunpack.c.l.b16 %v306
        %v1053 = vunpack.c.h.b16 %v306
        %v1054 = vunpack.c.l.b16 %v307
        %v1055 = vunpack.c.h.b16 %v307
        %v1056 = vunpack.c.l.b16 %v308
        %v1057 = vunpack.c.h.b16 %v308
        %v1058 = vunpack.c.l.b16 %v309
        %v1059 = vunpack.c.h.b16 %v309
        %v1060 = vunpack.c.l.b16 %v310
        %v1061 = vunpack.c.h.b16 %v310
        %v1062 = vunpack.c.l.b16 %v311
        %v1063 = vunpack.c.h.b16 %v311
        %v1064 = vunpack.c.l.b16 %v312
        %v1065 = vunpack.c.h.b16 %v312
        %v1066 = vunpack.c.l.b16 %v313
        %v1067 = vunpack.c.h.b16 %v313
        %v1068 = vunpack.c.l.b16 %v314
        %v1069 = vunpack.c.h.b16 %v314
        %v1070 = vunpack.c.l.b16 %v315
        %v1071 = vunpack.c.h.b16 %v315
        %v1072 = vunpack.c.l.b16 %v316
        %v1073 = vunpack.c.h.b16 %v316
        %v1074 = vunpack.c.l.b16 %v317
        %v1075 = vunpack.c.h.b16 %v317
        %v1076 = vunpack.c.l.b16 %v318
        %v1077 = vunpack.c.h.b16 %v318
        %v1078 = vunpack.c.l.b16 %v319
        %v1079 = vunpack.c.h.b16 %v319
        %v1080 = vunpack.c.l.b16 %v320
        %v1081 = vunpack.c.h.b16 %v320
        %v1082 = vunpack.c.l.b16 %v321
        %v1083 = vunpack.c.h.b16 %v321
        %v1084 = vunpack.c.l.b16 %v322
        %v1085 = vunpack.c.h.b16 %v322
        %v1086 = vunpack.c.l.b16 %v323
        %v1087 = vunpack.c.h.b16 %v323
        %v1088 = vunpack.c.l.b16 %v324
        %v1089 = vunpack.c.h.b16 %v324
        %v1090 = vunpack.c.l.b16 %v325
        %v1091 = vunpack.c.h.b16 %v325
        %v1092 = vunpack.c.l.b16 %v326
        %v1093 = vunpack.c.h.b16 %v326
        %v1094 = vunpack.c.l.b16 %v327
        %v1095 = vunpack.c.h.b16 %v327
        %v1096 = vunpack.c.l.b16 %v328
        %v1097 = vunpack.c.h.b16 %v328
        %v1098 = vunpack.c.l.b16 %v329
        %v1099 = vunpack.c.h.b16 %v329
        %v1100 = vunpack.c.l.b16 %v330
        %v1101 = vunpack.c.h.b16 %v330
        %v1102 = vunpack.c.l.b16 %v331
        %v1103 = vunpack.c.h.b16 %v331
        %v1104 = vunpack.c.l.b16 %v332
        %v1105 = vunpack.c.h.b16 %v332
        %v1106 = vunpack.c.l.b16 %v333
        %v1107 = vunpack.c.h.b16 %v333
        %v1108 = vunpack.c.l.b16 %v334
        %v1109 = vunpack.c.h.b16 %v334
        %v1110 = vunpack.c.l.b16 %v335
        %v1111 = vunpack.c.h.b16 %v335
        %v1112 = vunpack.c.l.b16 %v336
        %v1113 = vunpack.c.h.b16 %v336
        %v1114 = vunpack.c.l.b16 %v337
        %v1115 = vunpack.c.h.b16 %v337
        %v1116 = vunpack.c.l.b16 %v338
        %v1117 = vunpack.c.h.b16 %v338
        %v1118 = vunpack.c.l.b16 %v339
        %v1119 = vunpack.c.h.b16 %v339
        %v1120 = vunpack.c.l.b16 %v340
        %v1121 = vunpack.c.h.b16 %v340
        %v1122 = vunpack.c.l.b16 %v341
        %v1123 = vunpack.c.h.b16 %v341
        %v1124 = vunpack.c.l.b16 %v342
        %v1125 = vunpack.c.h.b16 %v342
        %v1126 = vunpack.c.l.b16 %v343
        %v1127 = vunpack.c.h.b16 %v343
        %v1128 = vunpack.c.l.b16 %v344
        %v1129 = vunpack.c.h.b16 %v344
        %v1130 = vunpack.c.l.b16 %v345
        %v1131 = vunpack.c.h.b16 %v345
        %v1132 = vunpack.c.l.b16 %v346
        %v1133 = vunpack.c.h.b16 %v346
        %v1134 = vunpack.c.l.b16 %v347
        %v1135 = vunpack.c.h.b16 %v347
        %v1136 = vunpack.c.l.b16 %v348
        %v1137 = vunpack.c.h.b16 %v348
        %v1138 = vunpack.c.l.b16 %v349
        %v1139 = vunpack.c.h.b16 %v349
        %v1140 = vunpack.c.l.b16 %v350
        %v1141 = vunpack.c.h.b16 %v350
        %v1142 = vunpack.c.l.b16 %v351
        %v1143 = vunpack.c.h.b16 %v351
        %v1144 = vunpack.c.l.b16 %v352
        %v1145 = vunpack.c.h.b16 %v352
        %v1146 = vunpack.c.l.b16 %v353
        %v1147 = vunpack.c.h.b16 %v353
        %v1148 = vunpack.c.l.b16 %v354
        %v1149 = vunpack.c.h.b16 %v354
        %v1150 = vunpack.c.l.b16 %v355
        %v1151 = vunpack.c.h.b16 %v355
        %v1152 = vunpack.c.l.b16 %v356
        %v1153 = vunpack.c.h.b16 %v356
        %v1154 = vunpack.c.l.b16 %v357
        %v1155 = vunpack.c.h.b16 %v357
        %v1156 = vunpack.c.l.b16 %v358
        %v1157 = vunpack.c.h.b16 %v358
        %v1158 = vunpack.c.l.b16 %v359
        %v1159 = vunpack.c.h.b16 %v359
        %v1160 = vunpack.c.l.b16 %v360
        %v1161 = vunpack.c.h.b16 %v360
        %v1162 = vunpack.c.l.b16 %v361
        %v1163 = vunpack.c.h.b16 %v361
        %v1164 = vunpack.c.l.b16 %v362
        %v1165 = vunpack.c.h.b16 %v362
        %v1166 = vunpack.c.l.b16 %v363
        %v1167 = vunpack.c.h.b16 %v363
        %v1168 = vunpack.c.l.b16 %v364
        %v1169 = vunpack.c.h.b16 %v364
        %v1170 = vunpack.c.l.b16 %v365
        %v1171 = vunpack.c.h.b16 %v365
        %v1172 = vunpack.c.l.b16 %v366
        %v1173 = vunpack.c.h.b16 %v366
        %v1174 = vunpack.c.l.b16 %v367
        %v1175 = vunpack.c.h.b16 %v367
        %v1176 = vunpack.c.l.b16 %v368
        %v1177 = vunpack.c.h.b16 %v368
        %v1178 = vunpack.c.l.b16 %v369
        %v1179 = vunpack.c.h.b16 %v369
        %v1180 = vunpack.c.l.b16 %v370
        %v1181 = vunpack.c.h.b16 %v370
        %v1182 = vunpack.c.l.b16 %v371
        %v1183 = vunpack.c.h.b16 %v371
        %v1184 = vunpack.c.l.b16 %v372
        %v1185 = vunpack.c.h.b16 %v372
        %v1186 = vunpack.c.l.b16 %v373
        %v1187 = vunpack.c.h.b16 %v373
        %v1188 = vunpack.c.l.b16 %v374
        %v1189 = vunpack.c.h.b16 %v374
        %v1190 = vunpack.c.l.b16 %v375
        %v1191 = vunpack.c.h.b16 %v375
        %v1192 = vunpack.c.l.b16 %v376
        %v1193 = vunpack.c.h.b16 %v376
        %v1194 = vunpack.c.l.b16 %v377
        %v1195 = vunpack.c.h.b16 %v377
        %v1196 = vunpack.c.l.b16 %v378
        %v1197 = vunpack.c.h.b16 %v378
        %v1198 = vunpack.c.l.b16 %v379
        %v1199 = vunpack.c.h.b16 %v379
        %v1200 = vunpack.c.l.b16 %v380
        %v1201 = vunpack.c.h.b16 %v380
        %v1202 = vunpack.c.l.b16 %v381
        %v1203 = vunpack.c.h.b16 %v381
        %v1204 = vunpack.c.l.b16 %v382
        %v1205 = vunpack.c.h.b16 %v382
        %v1206 = vunpack.c.l.b16 %v383
        %v1207 = vunpack.c.h.b16 %v383
        %v1208 = vunpack.c.l.b16 %v384
        %v1209 = vunpack.c.h.b16 %v384
        %v1210 = vunpack.c.l.b16 %v385
        %v1211 = vunpack.c.h.b16 %v385
        %v1212 = vunpack.c.l.b16 %v386
        %v1213 = vunpack.c.h.b16 %v386
        %v1214 = vunpack.c.l.b16 %v387
        %v1215 = vunpack.c.h.b16 %v387
        %v1216 = vunpack.c.l.b16 %v388
        %v1217 = vunpack.c.h.b16 %v388
        %v1218 = vunpack.c.l.b16 %v389
        %v1219 = vunpack.c.h.b16 %v389
        %v1220 = vunpack.c.l.b16 %v390
        %v1221 = vunpack.c.h.b16 %v390
        %v1222 = vunpack.c.l.b16 %v391
        %v1223 = vunpack.c.h.b16 %v391
        %v1224 = vunpack.c.l.b16 %v392
        %v1225 = vunpack.c.h.b16 %v392
        %v1226 = vunpack.c.l.b16 %v393
        %v1227 = vunpack.c.h.b16 %v393
        %v1228 = vunpack.c.l.b16 %v394
        %v1229 = vunpack.c.h.b16 %v394
        %v1230 = vunpack.c.l.b16 %v395
        %v1231 = vunpack.c.h.b16 %v395
        %v1232 = vunpack.c.l.b16 %v396
        %v1233 = vunpack.c.h.b16 %v396
        %v1234 = vunpack.c.l.b16 %v397
        %v1235 = vunpack.c.h.b16 %v397
        %v1236 = vunpack.c.l.b16 %v398
        %v1237 = vunpack.c.h.b16 %v398
        %v1238 = vunpack.c.l.b16 %v399
        %v1239 = vunpack.c.h.b16 %v399
        %v1240 = vunpack.c.l.b16 %v400
        %v1241 = vunpack.c.h.b16 %v400
        %v1242 = vunpack.c.l.b16 %v401
        %v1243 = vunpack.c.h.b16 %v401
        %v1244 = vunpack.c.l.b16 %v402
        %v1245 = vunpack.c.h.b16 %v402
        %v1246 = vunpack.c.l.b16 %v403
        %v1247 = vunpack.c.h.b16 %v403
        %v1248 = vunpack.c.l.b16 %v404
        %v1249 = vunpack.c.h.b16 %v404
        %v1250 = vunpack.c.l.b16 %v405
        %v1251 = vunpack.c.h.b16 %v405
        %v1252 = vunpack.c.l.b16 %v406
        %v1253 = vunpack.c.h.b16 %v406
        %v1254 = vunpack.c.l.b16 %v407
        %v1255 = vunpack.c.h.b16 %v407
        %v1256 = vunpack.c.l.b16 %v408
        %v1257 = vunpack.c.h.b16 %v408
        %v1258 = vunpack.c.l.b16 %v409
        %v1259 = vunpack.c.h.b16 %v409
        %v1260 = vunpack.c.l.b16 %v410
        %v1261 = vunpack.c.h.b16 %v410
        %v1262 = vunpack.c.l.b16 %v411
        %v1263 = vunpack.c.h.b16 %v411
        %v1264 = vunpack.c.l.b16 %v412
        %v1265 = vunpack.c.h.b16 %v412
        %v1266 = vunpack.c.l.b16 %v413
        %v1267 = vunpack.c.h.b16 %v413
        %v1268 = vunpack.c.l.b16 %v414
        %v1269 = vunpack.c.h.b16 %v414
        %v1270 = vunpack.c.l.b16 %v415
        %v1271 = vunpack.c.h.b16 %v415
        %v1272 = vunpack.c.l.b16 %v416
        %v1273 = vunpack.c.h.b16 %v416
        %v1274 = vunpack.c.l.b16 %v417
        %v1275 = vunpack.c.h.b16 %v417
        %v1276 = vunpack.c.l.b16 %v418
        %v1277 = vunpack.c.h.b16 %v418
        %v1278 = vunpack.c.l.b16 %v419
        %v1279 = vunpack.c.h.b16 %v419
        %v1280 = vunpack.c.l.b16 %v420
        %v1281 = vunpack.c.h.b16 %v420
        %v1282 = vunpack.c.l.b16 %v421
        %v1283 = vunpack.c.h.b16 %v421
        %v1284 = vunpack.c.l.b16 %v422
        %v1285 = vunpack.c.h.b16 %v422
        %v1286 = vunpack.c.l.b16 %v423
        %v1287 = vunpack.c.h.b16 %v423
        %v1288 = vunpack.c.l.b16 %v424
        %v1289 = vunpack.c.h.b16 %v424
        %v1290 = vunpack.c.l.b16 %v425
        %v1291 = vunpack.c.h.b16 %v425
        %v1292 = vunpack.c.l.b16 %v426
        %v1293 = vunpack.c.h.b16 %v426
        %v1294 = vunpack.c.l.b16 %v427
        %v1295 = vunpack.c.h.b16 %v427
        %v1296 = vunpack.c.l.b16 %v428
        %v1297 = vunpack.c.h.b16 %v428
        %v1298 = vunpack.c.l.b16 %v429
        %v1299 = vunpack.c.h.b16 %v429
        %v1300 = vunpack.c.l.b16 %v430
        %v1301 = vunpack.c.h.b16 %v430
        %v1302 = vunpack.c.l.b16 %v431
        %v1303 = vunpack.c.h.b16 %v431
        %v1304 = vunpack.c.l.b16 %v432
        %v1305 = vunpack.c.h.b16 %v432
        %v1306 = vunpack.c.l.b16 %v433
        %v1307 = vunpack.c.h.b16 %v433
        %v1308 = vunpack.c.l.b16 %v434
        %v1309 = vunpack.c.h.b16 %v434
        %v1310 = vunpack.c.l.b16 %v435
        %v1311 = vunpack.c.h.b16 %v435
        %v1312 = vunpack.c.l.b16 %v436
        %v1313 = vunpack.c.h.b16 %v436
        %v1314 = vunpack.c.l.b16 %v437
        %v1315 = vunpack.c.h.b16 %v437
        %v1316 = vunpack.c.l.b16 %v438
        %v1317 = vunpack.c.h.b16 %v438
        %v1318 = vunpack.c.l.b16 %v439
        %v1319 = vunpack.c.h.b16 %v439
        %v1320 = vunpack.c.l.b16 %v440
        %v1321 = vunpack.c.h.b16 %v440
        %v1322 = vunpack.c.l.b16 %v441
        %v1323 = vunpack.c.h.b16 %v441
        %v1324 = vunpack.c.l.b16 %v442
        %v1325 = vunpack.c.h.b16 %v442
        %v1326 = vunpack.c.l.b16 %v443
        %v1327 = vunpack.c.h.b16 %v443
        %v1328 = vunpack.c.l.b16 %v444
        %v1329 = vunpack.c.h.b16 %v444
        %v1330 = vunpack.c.l.b16 %v445
        %v1331 = vunpack.c.h.b16 %v445
        %v1332 = vunpack.c.l.b16 %v446
        %v1333 = vunpack.c.h.b16 %v446
        %v1334 = vunpack.c.l.b16 %v447
        %v1335 = vunpack.c.h.b16 %v447
        %v1336 = vunpack.c.l.b16 %v448
        %v1337 = vunpack.c.h.b16 %v448
        %v1338 = vunpack.c.l.b16 %v449
        %v1339 = vunpack.c.h.b16 %v449
        %v1340 = vunpack.c.l.b16 %v450
        %v1341 = vunpack.c.h.b16 %v450
        %v1342 = vunpack.c.l.b16 %v451
        %v1343 = vunpack.c.h.b16 %v451
        %v1344 = vunpack.c.l.b16 %v452
        %v1345 = vunpack.c.h.b16 %v452
        %v1346 = vunpack.c.l.b16 %v453
        %v1347 = vunpack.c.h.b16 %v453
        %v1348 = vunpack.c.l.b16 %v454
        %v1349 = vunpack.c.h.b16 %v454
        %v1350 = vunpack.c.l.b16 %v455
        %v1351 = vunpack.c.h.b16 %v455
        %v1352 = vunpack.c.l.b16 %v456
        %v1353 = vunpack.c.h.b16 %v456
        %v1354 = vunpack.c.l.b16 %v457
        %v1355 = vunpack.c.h.b16 %v457
        %v1356 = vunpack.c.l.b16 %v458
        %v1357 = vunpack.c.h.b16 %v458
        %v1358 = vunpack.c.l.b16 %v459
        %v1359 = vunpack.c.h.b16 %v459
        %v1360 = vunpack.c.l.b16 %v460
        %v1361 = vunpack.c.h.b16 %v460
        %v1362 = vunpack.c.l.b16 %v461
        %v1363 = vunpack.c.h.b16 %v461
        %v1364 = vunpack.c.l.b16 %v462
        %v1365 = vunpack.c.h.b16 %v462
        %v1366 = vunpack.c.l.b16 %v463
        %v1367 = vunpack.c.h.b16 %v463
        %v1368 = vunpack.c.l.b16 %v464
        %v1369 = vunpack.c.h.b16 %v464
        %v1370 = vunpack.c.l.b16 %v465
        %v1371 = vunpack.c.h.b16 %v465
        %v1372 = vunpack.c.l.b16 %v466
        %v1373 = vunpack.c.h.b16 %v466
        %v1374 = vunpack.c.l.b16 %v467
        %v1375 = vunpack.c.h.b16 %v467
        %v1376 = vunpack.c.l.b16 %v468
        %v1377 = vunpack.c.h.b16 %v468
        %v1378 = vunpack.c.l.b16 %v469
        %v1379 = vunpack.c.h.b16 %v469
        %v1380 = vunpack.c.l.b16 %v470
        %v1381 = vunpack.c.h.b16 %v470
        %v1382 = vunpack.c.l.b16 %v471
        %v1383 = vunpack.c.h.b16 %v471
        %v1384 = vunpack.c.l.b16 %v472
        %v1385 = vunpack.c.h.b16 %v472
        %v1386 = vunpack.c.l.b16 %v473
        %v1387 = vunpack.c.h.b16 %v473
        %v1388 = vunpack.c.l.b16 %v474
        %v1389 = vunpack.c.h.b16 %v474
        %v1390 = vunpack.c.l.b16 %v475
        %v1391 = vunpack.c.h.b16 %v475
        %v1392 = vunpack.c.l.b16 %v476
        %v1393 = vunpack.c.h.b16 %v476
        %v1394 = vunpack.c.l.b16 %v477
        %v1395 = vunpack.c.h.b16 %v477
        %v1396 = vunpack.c.l.b16 %v478
        %v1397 = vunpack.c.h.b16 %v478
        %v1398 = vunpack.c.l.b16 %v479
        %v1399 = vunpack.c.h.b16 %v479
        %v1400 = vunpack.c.l.b16 %v480
        %v1401 = vunpack.c.h.b16 %v480
        %v1402 = vunpack.c.l.b16 %v481
        %v1403 = vunpack.c.h.b16 %v481
        %v1404 = vunpack.c.l.b16 %v482
        %v1405 = vunpack.c.h.b16 %v482
        %v1406 = vunpack.c.l.b16 %v483
        %v1407 = vunpack.c.h.b16 %v483
        %v1408 = vunpack.c.l.b16 %v484
        %v1409 = vunpack.c.h.b16 %v484
        %v1410 = vunpack.c.l.b16 %v485
        %v1411 = vunpack.c.h.b16 %v485
        %v1412 = vunpack.c.l.b16 %v486
        %v1413 = vunpack.c.h.b16 %v486
        %v1414 = vunpack.c.l.b16 %v487
        %v1415 = vunpack.c.h.b16 %v487
        %v1416 = vunpack.c.l.b16 %v488
        %v1417 = vunpack.c.h.b16 %v488
        %v1418 = vunpack.c.l.b16 %v489
        %v1419 = vunpack.c.h.b16 %v489
        %v1420 = vunpack.c.l.b16 %v490
        %v1421 = vunpack.c.h.b16 %v490
        %v1422 = vunpack.c.l.b16 %v491
        %v1423 = vunpack.c.h.b16 %v491
        %v1424 = vunpack.c.l.b16 %v492
        %v1425 = vunpack.c.h.b16 %v492
        %v1426 = vunpack.c.l.b16 %v493
        %v1427 = vunpack.c.h.b16 %v493
        %v1428 = vunpack.c.l.b16 %v494
        %v1429 = vunpack.c.h.b16 %v494
        %v1430 = vunpack.c.l.b16 %v495
        %v1431 = vunpack.c.h.b16 %v495
        %v1432 = vunpack.c.l.b16 %v496
        %v1433 = vunpack.c.h.b16 %v496
        %v1434 = vunpack.c.l.b16 %v497
        %v1435 = vunpack.c.h.b16 %v497
        %v1436 = vunpack.c.l.b16 %v498
        %v1437 = vunpack.c.h.b16 %v498
        %v1438 = vunpack.c.l.b16 %v499
        %v1439 = vunpack.c.h.b16 %v499
        %v1440 = vunpack.c.l.b16 %v500
        %v1441 = vunpack.c.h.b16 %v500
        %v1442 = vunpack.c.l.b16 %v501
        %v1443 = vunpack.c.h.b16 %v501
        %v1444 = vunpack.c.l.b16 %v502
        %v1445 = vunpack.c.h.b16 %v502
        %v1446 = vunpack.c.l.b16 %v503
        %v1447 = vunpack.c.h.b16 %v503
        %v1448 = vunpack.c.l.b16 %v504
        %v1449 = vunpack.c.h.b16 %v504
        %v1450 = vunpack.c.l.b16 %v505
        %v1451 = vunpack.c.h.b16 %v505
        %v1452 = vunpack.c.l.b16 %v506
        %v1453 = vunpack.c.h.b16 %v506
        %v1454 = vunpack.c.l.b16 %v507
        %v1455 = vunpack.c.h.b16 %v507
        %v1456 = vunpack.c.l.b16 %v508
        %v1457 = vunpack.c.h.b16 %v508
        %v1458 = vunpack.c.l.b16 %v509
        %v1459 = vunpack.c.h.b16 %v509
        %v1460 = vunpack.c.l.b16 %v510
        %v1461 = vunpack.c.h.b16 %v510
        %v1462 = vunpack.c.l.b16 %v511
        %v1463 = vunpack.c.h.b16 %v511
        %v1464 = vunpack.c.l.b16 %v512
        %v1465 = vunpack.c.h.b16 %v512
        %v1466 = vunpack.c.l.b16 %v513
        %v1467 = vunpack.c.h.b16 %v513
        %v1468 = vunpack.c.l.b16 %v514
        %v1469 = vunpack.c.h.b16 %v514
        %v1470 = vunpack.c.l.b16 %v515
        %v1471 = vunpack.c.h.b16 %v515
        %v1472 = vunpack.c.l.b16 %v516
        %v1473 = vunpack.c.h.b16 %v516
        %v1474 = vunpack.c.l.b16 %v517
        %v1475 = vunpack.c.h.b16 %v517
        %v1476 = vunpack.c.l.b16 %v518
        %v1477 = vunpack.c.h.b16 %v518
        %v1478 = vunpack.c.l.b16 %v519
        %v1479 = vunpack.c.h.b16 %v519
        %v1480 = vunpack.c.l.b16 %v520
        %v1481 = vunpack.c.h.b16 %v520
        %v1482 = vunpack.c.l.b16 %v521
        %v1483 = vunpack.c.h.b16 %v521
        %v1484 = vunpack.c.l.b16 %v522
        %v1485 = vunpack.c.h.b16 %v522
        %v1486 = vunpack.c.l.b16 %v523
        %v1487 = vunpack.c.h.b16 %v523
        %v1488 = vunpack.c.l.b16 %v524
        %v1489 = vunpack.c.h.b16 %v524
        %v1490 = vunpack.c.l.b16 %v525
        %v1491 = vunpack.c.h.b16 %v525
        %v1492 = vunpack.c.l.b16 %v526
        %v1493 = vunpack.c.h.b16 %v526
        %v1494 = vunpack.c.l.b16 %v527
        %v1495 = vunpack.c.h.b16 %v527
        %v1496 = vunpack.c.l.b16 %v528
        %v1497 = vunpack.c.h.b16 %v528
        %v1498 = vunpack.c.l.b16 %v529
        %v1499 = vunpack.c.h.b16 %v529
        %v1500 = vunpack.c.l.b16 %v530
        %v1501 = vunpack.c.h.b16 %v530
        %v1502 = vunpack.c.l.b16 %v531
        %v1503 = vunpack.c.h.b16 %v531
        %v1504 = vunpack.c.l.b16 %v532
        %v1505 = vunpack.c.h.b16 %v532
        %v1506 = vunpack.c.l.b16 %v533
        %v1507 = vunpack.c.h.b16 %v533
        %v1508 = vunpack.c.l.b16 %v534
        %v1509 = vunpack.c.h.b16 %v534
        %v1510 = vunpack.c.l.b16 %v535
        %v1511 = vunpack.c.h.b16 %v535
        %v1512 = vunpack.c.l.b16 %v536
        %v1513 = vunpack.c.h.b16 %v536
        %v1514 = vunpack.c.l.b16 %v537
        %v1515 = vunpack.c.h.b16 %v537
        %v1516 = vunpack.c.l.b16 %v538
        %v1517 = vunpack.c.h.b16 %v538
        %v1518 = vunpack.c.l.b16 %v539
        %v1519 = vunpack.c.h.b16 %v539
        %v1520 = vunpack.c.l.b16 %v540
        %v1521 = vunpack.c.h.b16 %v540
        %v1522 = vunpack.c.l.b16 %v541
        %v1523 = vunpack.c.h.b16 %v541
        %v1524 = vunpack.c.l.b16 %v542
        %v1525 = vunpack.c.h.b16 %v542
        %v1526 = vunpack.c.l.b16 %v543
        %v1527 = vunpack.c.h.b16 %v543
        %v1528 = vunpack.c.l.b16 %v544
        %v1529 = vunpack.c.h.b16 %v544
        %v1530 = vunpack.c.l.b16 %v545
        %v1531 = vunpack.c.h.b16 %v545
        %v1532 = vunpack.c.l.b16 %v546
        %v1533 = vunpack.c.h.b16 %v546
        %v1534 = vunpack.c.l.b16 %v547
        %v1535 = vunpack.c.h.b16 %v547
        %v1536 = vunpack.c.l.b16 %v548
        %v1537 = vunpack.c.h.b16 %v548
        %v1538 = vunpack.c.l.b16 %v549
        %v1539 = vunpack.c.h.b16 %v549
        %v1540 = vunpack.c.l.b16 %v550
        %v1541 = vunpack.c.h.b16 %v550
        %v1542 = vunpack.c.l.b16 %v551
        %v1543 = vunpack.c.h.b16 %v551
        %v1544 = vunpack.c.l.b16 %v552
        %v1545 = vunpack.c.h.b16 %v552
        %v1546 = vunpack.c.l.b16 %v553
        %v1547 = vunpack.c.h.b16 %v553
        %v1548 = vunpack.c.l.b16 %v554
        %v1549 = vunpack.c.h.b16 %v554
        %v1550 = vunpack.c.l.b16 %v555
        %v1551 = vunpack.c.h.b16 %v555
        %v1552 = vunpack.c.l.b16 %v556
        %v1553 = vunpack.c.h.b16 %v556
        %v1554 = vunpack.c.l.b16 %v557
        %v1555 = vunpack.c.h.b16 %v557
        %v1556 = vunpack.c.l.b16 %v558
        %v1557 = vunpack.c.h.b16 %v558
        %v1558 = vunpack.c.l.b16 %v559
        %v1559 = vunpack.c.h.b16 %v559
        %v1560 = vunpack.c.l.b16 %v560
        %v1561 = vunpack.c.h.b16 %v560
        %v1562 = vunpack.c.l.b16 %v561
        %v1563 = vunpack.c.h.b16 %v561
        %v1564 = vunpack.c.l.b16 %v562
        %v1565 = vunpack.c.h.b16 %v562
        %v1566 = vunpack.c.l.b16 %v563
        %v1567 = vunpack.c.h.b16 %v563
        %v1568 = vunpack.c.l.b16 %v564
        %v1569 = vunpack.c.h.b16 %v564
        %v1570 = vpack.c.b16 %v938, %v930
        %v1571 = vpack.c.b16 %v939, %v931
        %v1572 = vpack.c.b16 %v940, %v932
        %v1573 = vpack.c.b16 %v941, %v933
        %v1574 = vpack.c.b16 %v942, %v934
        %v1575 = vpack.c.b16 %v943, %v935
        %v1576 = vpack.c.b16 %v944, %v936
        %v1577 = vpack.c.b16 %v945, %v937
        %v1578 = vpack.c.b16 %v954, %v946
        %v1579 = vpack.c.b16 %v955, %v947
        %v1580 = vpack.c.b16 %v956, %v948
        %v1581 = vpack.c.b16 %v957, %v949
        %v1582 = vpack.c.b16 %v958, %v950
        %v1583 = vpack.c.b16 %v959, %v951
        %v1584 = vpack.c.b16 %v960, %v952
        %v1585 = vpack.c.b16 %v961, %v953
        %v1586 = vpack.c.b16 %v970, %v962
        %v1587 = vpack.c.b16 %v971, %v963
        %v1588 = vpack.c.b16 %v972, %v964
        %v1589 = vpack.c.b16 %v973, %v965
        %v1590 = vpack.c.b16 %v974, %v966
        %v1591 = vpack.c.b16 %v975, %v967
        %v1592 = vpack.c.b16 %v976, %v968
        %v1593 = vpack.c.b16 %v977, %v969
        %v1594 = vpack.c.b16 %v986, %v978
        %v1595 = vpack.c.b16 %v987, %v979
        %v1596 = vpack.c.b16 %v988, %v980
        %v1597 = vpack.c.b16 %v989, %v981
        %v1598 = vpack.c.b16 %v990, %v982
        %v1599 = vpack.c.b16 %v991, %v983
        %v1600 = vpack.c.b16 %v992, %v984
        %v1601 = vpack.c.b16 %v993, %v985
        %v1602 = vpack.c.b16 %v1002, %v994
        %v1603 = vpack.c.b16 %v1003, %v995
        %v1604 = vpack.c.b16 %v1004, %v996
        %v1605 = vpack.c.b16 %v1005, %v997
        %v1606 = vpack.c.b16 %v1006, %v998
        %v1607 = vpack.c.b16 %v1007, %v999
        %v1608 = vpack.c.b16 %v1008, %v1000
        %v1609 = vpack.c.b16 %v1009, %v1001
        %v1610 = vpack.c.b16 %v1018, %v1010
        %v1611 = vpack.c.b16 %v1019, %v1011
        %v1612 = vpack.c.b16 %v1020, %v1012
        %v1613 = vpack.c.b16 %v1021, %v1013
        %v1614 = vpack.c.b16 %v1022, %v1014
        %v1615 = vpack.c.b16 %v1023, %v1015
        %v1616 = vpack.c.b16 %v1024, %v1016
        %v1617 = vpack.c.b16 %v1025, %v1017
        %v1618 = vpack.c.b16 %v1034, %v1026
        %v1619 = vpack.c.b16 %v1035, %v1027
        %v1620 = vpack.c.b16 %v1036, %v1028
        %v1621 = vpack.c.b16 %v1037, %v1029
        %v1622 = vpack.c.b16 %v1038, %v1030
        %v1623 = vpack.c.b16 %v1039, %v1031
        %v1624 = vpack.c.b16 %v1040, %v1032
        %v1625 = vpack.c.b16 %v1041, %v1033
        %v1626 = vpack.c.b16 %v1050, %v1042
        %v1627 = vpack.c.b16 %v1051, %v1043
        %v1628 = vpack.c.b16 %v1052, %v1044
        %v1629 = vpack.c.b16 %v1053, %v1045
        %v1630 = vpack.c.b16 %v1054, %v1046
        %v1631 = vpack.c.b16 %v1055, %v1047
        %v1632 = vpack.c.b16 %v1056, %v1048
        %v1633 = vpack.c.b16 %v1057, %v1049
        %v1634 = vpack.c.b16 %v1066, %v1058
        %v1635 = vpack.c.b16 %v1067, %v1059
        %v1636 = vpack.c.b16 %v1068, %v1060
        %v1637 = vpack.c.b16 %v1069, %v1061
        %v1638 = vpack.c.b16 %v1070, %v1062
        %v1639 = vpack.c.b16 %v1071, %v1063
        %v1640 = vpack.c.b16 %v1072, %v1064
        %v1641 = vpack.c.b16 %v1073, %v1065
        %v1642 = vpack.c.b16 %v1082, %v1074
        %v1643 = vpack.c.b16 %v1083, %v1075
        %v1644 = vpack.c.b16 %v1084, %v1076
        %v1645 = vpack.c.b16 %v1085, %v1077
        %v1646 = vpack.c.b16 %v1086, %v1078
        %v1647 = vpack.c.b16 %v1087, %v1079
        %v1648 = vpack.c.b16 %v1088, %v1080
        %v1649 = vpack.c.b16 %v1089, %v1081
        %v1650 = vpack.c.b16 %v1098, %v1090
        %v1651 = vpack.c.b16 %v1099, %v1091
        %v1652 = vpack.c.b16 %v1100, %v1092
        %v1653 = vpack.c.b16 %v1101, %v1093
        %v1654 = vpack.c.b16 %v1102, %v1094
        %v1655 = vpack.c.b16 %v1103, %v1095
        %v1656 = vpack.c.b16 %v1104, %v1096
        %v1657 = vpack.c.b16 %v1105, %v1097
        %v1658 = vpack.c.b16 %v1114, %v1106
        %v1659 = vpack.c.b16 %v1115, %v1107
        %v1660 = vpack.c.b16 %v1116, %v1108
        %v1661 = vpack.c.b16 %v1117, %v1109
        %v1662 = vpack.c.b16 %v1118, %v1110
        %v1663 = vpack.c.b16 %v1119, %v1111
        %v1664 = vpack.c.b16 %v1120, %v1112
        %v1665 = vpack.c.b16 %v1121, %v1113
        %v1666 = vpack.c.b16 %v1130, %v1122
        %v1667 = vpack.c.b16 %v1131, %v1123
        %v1668 = vpack.c.b16 %v1132, %v1124
        %v1669 = vpack.c.b16 %v1133, %v1125
        %v1670 = vpack.c.b16 %v1134, %v1126
        %v1671 = vpack.c.b16 %v1135, %v1127
        %v1672 = vpack.c.b16 %v1136, %v1128
        %v1673 = vpack.c.b16 %v1137, %v1129
        %v1674 = vpack.c.b16 %v1146, %v1138
        %v1675 = vpack.c.b16 %v1147, %v1139
        %v1676 = vpack.c.b16 %v1148, %v1140
        %v1677 = vpack.c.b16 %v1149, %v1141
        %v1678 = vpack.c.b16 %v1150, %v1142
        %v1679 = vpack.c.b16 %v1151, %v1143
        %v1680 = vpack.c.b16 %v1152, %v1144
        %v1681 = vpack.c.b16 %v1153, %v1145
        %v1682 = vpack.c.b16 %v1162, %v1154
        %v1683 = vpack.c.b16 %v1163, %v1155
        %v1684 = vpack.c.b16 %v1164, %v1156
        %v1685 = vpack.c.b16 %v1165, %v1157
        %v1686 = vpack.c.b16 %v1166, %v1158
        %v1687 = vpack.c.b16 %v1167, %v1159
        %v1688 = vpack.c.b16 %v1168, %v1160
        %v1689 = vpack.c.b16 %v1169, %v1161
        %v1690 = vpack.c.b16 %v1178, %v1170
        %v1691 = vpack.c.b16 %v1179, %v1171
        %v1692 = vpack.c.b16 %v1180, %v1172
        %v1693 = vpack.c.b16 %v1181, %v1173
        %v1694 = vpack.c.b16 %v1182, %v1174
        %v1695 = vpack.c.b16 %v1183, %v1175
        %v1696 = vpack.c.b16 %v1184, %v1176
        %v1697 = vpack.c.b16 %v1185, %v1177
        %v1698 = vpack.c.b16 %v1194, %v1186
        %v1699 = vpack.c.b16 %v1195, %v1187
        %v1700 = vpack.c.b16 %v1196, %v1188
        %v1701 = vpack.c.b16 %v1197, %v1189
        %v1702 = vpack.c.b16 %v1198, %v1190
        %v1703 = vpack.c.b16 %v1199, %v1191
        %v1704 = vpack.c.b16 %v1200, %v1192
        %v1705 = vpack.c.b16 %v1201, %v1193
        %v1706 = vpack.c.b16 %v1210, %v1202
        %v1707 = vpack.c.b16 %v1211, %v1203
        %v1708 = vpack.c.b16 %v1212, %v1204
        %v1709 = vpack.c.b16 %v1213, %v1205
        %v1710 = vpack.c.b16 %v1214, %v1206
        %v1711 = vpack.c.b16 %v1215, %v1207
        %v1712 = vpack.c.b16 %v1216, %v1208
        %v1713 = vpack.c.b16 %v1217, %v1209
        %v1714 = vpack.c.b16 %v1226, %v1218
        %v1715 = vpack.c.b16 %v1227, %v1219
        %v1716 = vpack.c.b16 %v1228, %v1220
        %v1717 = vpack.c.b16 %v1229, %v1221
        %v1718 = vpack.c.b16 %v1230, %v1222
        %v1719 = vpack.c.b16 %v1231, %v1223
        %v1720 = vpack.c.b16 %v1232, %v1224
        %v1721 = vpack.c.b16 %v1233, %v1225
        %v1722 = vpack.c.b16 %v1242, %v1234
        %v1723 = vpack.c.b16 %v1243, %v1235
        %v1724 = vpack.c.b16 %v1244, %v1236
        %v1725 = vpack.c.b16 %v1245, %v1237
        %v1726 = vpack.c.b16 %v1246, %v1238
        %v1727 = vpack.c.b16 %v1247, %v1239
        %v1728 = vpack.c.b16 %v1248, %v1240
        %v1729 = vpack.c.b16 %v1249, %v1241
        %v1730 = vpack.c.b16 %v1258, %v1250
        %v1731 = vpack.c.b16 %v1259, %v1251
        %v1732 = vpack.c.b16 %v1260, %v1252
        %v1733 = vpack.c.b16 %v1261, %v1253
        %v1734 = vpack.c.b16 %v1262, %v1254
        %v1735 = vpack.c.b16 %v1263, %v1255
        %v1736 = vpack.c.b16 %v1264, %v1256
        %v1737 = vpack.c.b16 %v1265, %v1257
        %v1738 = vpack.c.b16 %v1274, %v1266
        %v1739 = vpack.c.b16 %v1275, %v1267
        %v1740 = vpack.c.b16 %v1276, %v1268
        %v1741 = vpack.c.b16 %v1277, %v1269
        %v1742 = vpack.c.b16 %v1278, %v1270
        %v1743 = vpack.c.b16 %v1279, %v1271
        %v1744 = vpack.c.b16 %v1280, %v1272
        %v1745 = vpack.c.b16 %v1281, %v1273
        %v1746 = vpack.c.b16 %v1290, %v1282
        %v1747 = vpack.c.b16 %v1291, %v1283
        %v1748 = vpack.c.b16 %v1292, %v1284
        %v1749 = vpack.c.b16 %v1293, %v1285
        %v1750 = vpack.c.b16 %v1294, %v1286
        %v1751 = vpack.c.b16 %v1295, %v1287
        %v1752 = vpack.c.b16 %v1296, %v1288
        %v1753 = vpack.c.b16 %v1297, %v1289
        %v1754 = vpack.c.b16 %v1306, %v1298
        %v1755 = vpack.c.b16 %v1307, %v1299
        %v1756 = vpack.c.b16 %v1308, %v1300
        %v1757 = vpack.c.b16 %v1309, %v1301
        %v1758 = vpack.c.b16 %v1310, %v1302
        %v1759 = vpack.c.b16 %v1311, %v1303
        %v1760 = vpack.c.b16 %v1312, %v1304
        %v1761 = vpack.c.b16 %v1313, %v1305
        %v1762 = vpack.c.b16 %v1322, %v1314
        %v1763 = vpack.c.b16 %v1323, %v1315
        %v1764 = vpack.c.b16 %v1324, %v1316
        %v1765 = vpack.c.b16 %v1325, %v1317
        %v1766 = vpack.c.b16 %v1326, %v1318
        %v1767 = vpack.c.b16 %v1327, %v1319
        %v1768 = vpack.c.b16 %v1328, %v1320
        %v1769 = vpack.c.b16 %v1329, %v1321
        %v1770 = vpack.c.b16 %v1338, %v1330
        %v1771 = vpack.c.b16 %v1339, %v1331
        %v1772 = vpack.c.b16 %v1340, %v1332
        %v1773 = vpack.c.b16 %v1341, %v1333
        %v1774 = vpack.c.b16 %v1342, %v1334
        %v1775 = vpack.c.b16 %v1343, %v1335
        %v1776 = vpack.c.b16 %v1344, %v1336
        %v1777 = vpack.c.b16 %v1345, %v1337
        %v1778 = vpack.c.b16 %v1354, %v1346
        %v1779 = vpack.c.b16 %v1355, %v1347
        %v1780 = vpack.c.b16 %v1356, %v1348
        %v1781 = vpack.c.b16 %v1357, %v1349
        %v1782 = vpack.c.b16 %v1358, %v1350
        %v1783 = vpack.c.b16 %v1359, %v1351
        %v1784 = vpack.c.b16 %v1360, %v1352
        %v1785 = vpack.c.b16 %v1361, %v1353
        %v1786 = vpack.c.b16 %v1370, %v1362
        %v1787 = vpack.c.b16 %v1371, %v1363
        %v1788 = vpack.c.b16 %v1372, %v1364
        %v1789 = vpack.c.b16 %v1373, %v1365
        %v1790 = vpack.c.b16 %v1374, %v1366
        %v1791 = vpack.c.b16 %v1375, %v1367
        %v1792 = vpack.c.b16 %v1376, %v1368
        %v1793 = vpack.c.b16 %v1377, %v1369
        %v1794 = vpack.c.b16 %v1386, %v1378
        %v1795 = vpack.c.b16 %v1387, %v1379
        %v1796 = vpack.c.b16 %v1388, %v1380
        %v1797 = vpack.c.b16 %v1389, %v1381
        %v1798 = vpack.c.b16 %v1390, %v1382
        %v1799 = vpack.c.b16 %v1391, %v1383
        %v1800 = vpack.c.b16 %v1392, %v1384
        %v1801 = vpack.c.b16 %v1393, %v1385
        %v1802 = vpack.c.b16 %v1402, %v1394
        %v1803 = vpack.c.b16 %v1403, %v1395
        %v1804 = vpack.c.b16 %v1404, %v1396
        %v1805 = vpack.c.b16 %v1405, %v1397
        %v1806 = vpack.c.b16 %v1406, %v1398
        %v1807 = vpack.c.b16 %v1407, %v1399
        %v1808 = vpack.c.b16 %v1408, %v1400
        %v1809 = vpack.c.b16 %v1409, %v1401
        %v1810 = vpack.c.b16 %v1418, %v1410
        %v1811 = vpack.c.b16 %v1419, %v1411
        %v1812 = vpack.c.b16 %v1420, %v1412
        %v1813 = vpack.c.b16 %v1421, %v1413
        %v1814 = vpack.c.b16 %v1422, %v1414
        %v1815 = vpack.c.b16 %v1423, %v1415
        %v1816 = vpack.c.b16 %v1424, %v1416
        %v1817 = vpack.c.b16 %v1425, %v1417
        %v1818 = vpack.c.b16 %v1434, %v1426
        %v1819 = vpack.c.b16 %v1435, %v1427
        %v1820 = vpack.c.b16 %v1436, %v1428
        %v1821 = vpack.c.b16 %v1437, %v1429
        %v1822 = vpack.c.b16 %v1438, %v1430
        %v1823 = vpack.c.b16 %v1439, %v1431
        %v1824 = vpack.c.b16 %v1440, %v1432
        %v1825 = vpack.c.b16 %v1441, %v1433
        %v1826 = vpack.c.b16 %v1450, %v1442
        %v1827 = vpack.c.b16 %v1451, %v1443
        %v1828 = vpack.c.b16 %v1452, %v1444
        %v1829 = vpack.c.b16 %v1453, %v1445
        %v1830 = vpack.c.b16 %v1454, %v1446
        %v1831 = vpack.c.b16 %v1455, %v1447
        %v1832 = vpack.c.b16 %v1456, %v1448
        %v1833 = vpack.c.b16 %v1457, %v1449
        %v1834 = vpack.c.b16 %v1466, %v1458
        %v1835 = vpack.c.b16 %v1467, %v1459
        %v1836 = vpack.c.b16 %v1468, %v1460
        %v1837 = vpack.c.b16 %v1469, %v1461
        %v1838 = vpack.c.b16 %v1470, %v1462
        %v1839 = vpack.c.b16 %v1471, %v1463
        %v1840 = vpack.c.b16 %v1472, %v1464
        %v1841 = vpack.c.b16 %v1473, %v1465
        %v1842 = vpack.c.b16 %v1482, %v1474
        %v1843 = vpack.c.b16 %v1483, %v1475
        %v1844 = vpack.c.b16 %v1484, %v1476
        %v1845 = vpack.c.b16 %v1485, %v1477
        %v1846 = vpack.c.b16 %v1486, %v1478
        %v1847 = vpack.c.b16 %v1487, %v1479
        %v1848 = vpack.c.b16 %v1488, %v1480
        %v1849 = vpack.c.b16 %v1489, %v1481
        %v1850 = vpack.c.b16 %v1498, %v1490
        %v1851 = vpack.c.b16 %v1499, %v1491
        %v1852 = vpack.c.b16 %v1500, %v1492
        %v1853 = vpack.c.b16 %v1501, %v1493
        %v1854 = vpack.c.b16 %v1502, %v1494
        %v1855 = vpack.c.b16 %v1503, %v1495
        %v1856 = vpack.c.b16 %v1504, %v1496
        %v1857 = vpack.c.b16 %v1505, %v1497
        %v1858 = vpack.c.b16 %v1514, %v1506
        %v1859 = vpack.c.b16 %v1515, %v1507
        %v1860 = vpack.c.b16 %v1516, %v1508
        %v1861 = vpack.c.b16 %v1517, %v1509
        %v1862 = vpack.c.b16 %v1518, %v1510
        %v1863 = vpack.c.b16 %v1519, %v1511
        %v1864 = vpack.c.b16 %v1520, %v1512
        %v1865 = vpack.c.b16 %v1521, %v1513
        %v1866 = vpack.c.b16 %v1530, %v1522
        %v1867 = vpack.c.b16 %v1531, %v1523
        %v1868 = vpack.c.b16 %v1532, %v1524
        %v1869 = vpack.c.b16 %v1533, %v1525
        %v1870 = vpack.c.b16 %v1534, %v1526
        %v1871 = vpack.c.b16 %v1535, %v1527
        %v1872 = vpack.c.b16 %v1536, %v1528
        %v1873 = vpack.c.b16 %v1537, %v1529
        %v1874 = vpack.c.b16 %v1546, %v1538
        %v1875 = vpack.c.b16 %v1547, %v1539
        %v1876 = vpack.c.b16 %v1548, %v1540
        %v1877 = vpack.c.b16 %v1549, %v1541
        %v1878 = vpack.c.b16 %v1550, %v1542
        %v1879 = vpack.c.b16 %v1551, %v1543
        %v1880 = vpack.c.b16 %v1552, %v1544
        %v1881 = vpack.c.b16 %v1553, %v1545
        %v1882 = vpack.c.b16 %v1562, %v1554
        %v1883 = vpack.c.b16 %v1563, %v1555
        %v1884 = vpack.c.b16 %v1564, %v1556
        %v1885 = vpack.c.b16 %v1565, %v1557
        %v1886 = vpack.c.b16 %v1566, %v1558
        %v1887 = vpack.c.b16 %v1567, %v1559
        %v1888 = vpack.c.b16 %v1568, %v1560
        %v1889 = vpack.c.b16 %v1569, %v1561
        %2210 = vmatprep.subr.bf16.mxu0 %v1571
        %2211 = vmatpush1.bf16.msra.mxu0 %v1570
        %2212 = vmatprep.subr.bf16.mxu0 %v1579
        %2213 = vmatpush1.bf16.msra.mxu0 %v1578
        %2214 = vmatprep.subr.bf16.mxu0 %v1587
        %2215 = vmatpush1.bf16.msra.mxu0 %v1586
        %2216 = vmatprep.subr.bf16.mxu0 %v1595
        %2217 = vmatpush1.bf16.msra.mxu0 %v1594
        %2218 = vmatprep.subr.bf16.mxu0 %v1603
        %2219 = vmatpush1.bf16.msra.mxu0 %v1602
        %2220 = vmatprep.subr.bf16.mxu0 %v1611
        %2221 = vmatpush1.bf16.msra.mxu0 %v1610
        %2222 = vmatprep.subr.bf16.mxu0 %v1619
        %2223 = vmatpush1.bf16.msra.mxu0 %v1618
        %2224 = vmatprep.subr.bf16.mxu0 %v1627
        %2225 = vmatpush1.bf16.msra.mxu0 %v1626
        %2226 = vmatprep.subr.bf16.mxu0 %v1635
        %2227 = vmatpush1.bf16.msra.mxu0 %v1634
        %2228 = vmatprep.subr.bf16.mxu0 %v1643
        %2229 = vmatpush1.bf16.msra.mxu0 %v1642
        %2230 = vmatprep.subr.bf16.mxu0 %v1651
        %2231 = vmatpush1.bf16.msra.mxu0 %v1650
        %2232 = vmatprep.subr.bf16.mxu0 %v1659
        %2233 = vmatpush1.bf16.msra.mxu0 %v1658
        %2234 = vmatprep.subr.bf16.mxu0 %v1667
        %2235 = vmatpush1.bf16.msra.mxu0 %v1666
        %2236 = vmatprep.subr.bf16.mxu0 %v1675
        %2237 = vmatpush1.bf16.msra.mxu0 %v1674
        %2238 = vmatprep.subr.bf16.mxu0 %v1683
        %2239 = vmatpush1.bf16.msra.mxu0 %v1682
        %2240 = vmatprep.subr.bf16.mxu0 %v1691
        %2241 = vmatpush1.bf16.msra.mxu0 %v1690
        %2242 = vmatprep.mubr.bf16.mxu0 %v602
        %2243 = vmatmul.mubr.bf16.gmra.mrb[0].mxu0 %v588
        %v2244 = vpop.f32.mrb[0].mxu0
        %v2245 = vadd.f32 0.0, %v2244
        %v2246 = vpop.f32.mrb[0].mxu0
        %v2247 = vadd.f32 0.0, %v2246
        %v2248 = vpop.f32.mrb[0].mxu0
        %v2249 = vpop.f32.mrb[0].mxu0
        %2250 = vdwg.mxu0
        %2251 = vmatprep.subr.bf16.mxu0 %v1699
        %2252 = vmatpush1.bf16.msra.mxu0 %v1698
        %2253 = vmatprep.subr.bf16.mxu0 %v1707
        %2254 = vmatpush1.bf16.msra.mxu0 %v1706
        %2255 = vmatprep.subr.bf16.mxu0 %v1715
        %2256 = vmatpush1.bf16.msra.mxu0 %v1714
        %2257 = vmatprep.subr.bf16.mxu0 %v1723
        %2258 = vmatpush1.bf16.msra.mxu0 %v1722
        %2259 = vmatprep.subr.bf16.mxu0 %v1731
        %2260 = vmatpush1.bf16.msra.mxu0 %v1730
        %2261 = vmatprep.subr.bf16.mxu0 %v1739
        %2262 = vmatpush1.bf16.msra.mxu0 %v1738
        %2263 = vmatprep.subr.bf16.mxu0 %v1747
        %2264 = vmatpush1.bf16.msra.mxu0 %v1746
        %2265 = vmatprep.subr.bf16.mxu0 %v1755
        %2266 = vmatpush1.bf16.msra.mxu0 %v1754
        %2267 = vmatprep.subr.bf16.mxu0 %v1763
        %2268 = vmatpush1.bf16.msra.mxu0 %v1762
        %2269 = vmatprep.subr.bf16.mxu0 %v1771
        %2270 = vmatpush1.bf16.msra.mxu0 %v1770
        %2271 = vmatprep.subr.bf16.mxu0 %v1779
        %2272 = vmatpush1.bf16.msra.mxu0 %v1778
        %2273 = vmatprep.subr.bf16.mxu0 %v1787
        %2274 = vmatpush1.bf16.msra.mxu0 %v1786
        %2275 = vmatprep.subr.bf16.mxu0 %v1795
        %2276 = vmatpush1.bf16.msra.mxu0 %v1794
        %2277 = vmatprep.subr.bf16.mxu0 %v1803
        %2278 = vmatpush1.bf16.msra.mxu0 %v1802
        %2279 = vmatprep.subr.bf16.mxu0 %v1811
        %2280 = vmatpush1.bf16.msra.mxu0 %v1810
        %2281 = vmatprep.subr.bf16.mxu0 %v1819
        %2282 = vmatpush1.bf16.msra.mxu0 %v1818
        %2283 = vmatprep.mubr.bf16.mxu0 %v604
        %2284 = vmatmul.mubr.bf16.gmra.mrb[0].mxu0 %v603
        %v2285 = vpop.f32.mrb[0].mxu0
        %v2286 = vadd.f32 %v2245, %v2285
        %v2287 = vpop.f32.mrb[0].mxu0
        %v2288 = vadd.f32 %v2247, %v2287
        %v2289 = vpop.f32.mrb[0].mxu0
        %v2290 = vpop.f32.mrb[0].mxu0
        %2291 = vdwg.mxu0
        %2292 = vmatprep.subr.bf16.mxu0 %v1827
        %2293 = vmatpush1.bf16.msra.mxu0 %v1826
        %2294 = vmatprep.subr.bf16.mxu0 %v1835
        %2295 = vmatpush1.bf16.msra.mxu0 %v1834
        %2296 = vmatprep.subr.bf16.mxu0 %v1843
        %2297 = vmatpush1.bf16.msra.mxu0 %v1842
        %2298 = vmatprep.subr.bf16.mxu0 %v1851
        %2299 = vmatpush1.bf16.msra.mxu0 %v1850
        %2300 = vmatprep.subr.bf16.mxu0 %v1859
        %2301 = vmatpush1.bf16.msra.mxu0 %v1858
        %2302 = vmatprep.subr.bf16.mxu0 %v1867
        %2303 = vmatpush1.bf16.msra.mxu0 %v1866
        %2304 = vmatprep.subr.bf16.mxu0 %v1875
        %2305 = vmatpush1.bf16.msra.mxu0 %v1874
        %2306 = vmatprep.subr.bf16.mxu0 %v1883
        %2307 = vmatpush1.bf16.msra.mxu0 %v1882
        %2308 = vmatprep.subr.bf16.mxu0 0
        %2309 = vmatpush1.bf16.msra.mxu0 0
        %2310 = vmatprep.subr.bf16.mxu0 0
        %2311 = vmatpush1.bf16.msra.mxu0 0
        %2312 = vmatprep.subr.bf16.mxu0 0
        %2313 = vmatpush1.bf16.msra.mxu0 0
        %2314 = vmatprep.subr.bf16.mxu0 0
        %2315 = vmatpush1.bf16.msra.mxu0 0
        %2316 = vmatprep.subr.bf16.mxu0 0
        %2317 = vmatpush1.bf16.msra.mxu0 0
        %2318 = vmatprep.subr.bf16.mxu0 0
        %2319 = vmatpush1.bf16.msra.mxu0 0
        %2320 = vmatprep.subr.bf16.mxu0 0
        %2321 = vmatpush1.bf16.msra.mxu0 0
        %2322 = vmatprep.subr.bf16.mxu0 0
        %2323 = vmatpush1.bf16.msra.mxu0 0
        %2324 = vmatprep.mubr.bf16.mxu0 0
        %2325 = vmatmul.mubr.bf16.gmra.mrb[0].mxu0 %v595
        %v2326 = vpop.f32.mrb[0].mxu0
        %v2327 = vadd.f32 %v2286, %v2326
        %v2328 = vpop.f32.mrb[0].mxu0
        %v2329 = vadd.f32 %v2288, %v2328
        %v2330 = vpop.f32.mrb[0].mxu0
        %v2331 = vpop.f32.mrb[0].mxu0
        %2332 = vdwg.mxu0
        %2333 = vmatprep.subr.bf16.mxu0 %v1573
        %2334 = vmatpush1.bf16.msra.mxu0 %v1572
        %2335 = vmatprep.subr.bf16.mxu0 %v1581
        %2336 = vmatpush1.bf16.msra.mxu0 %v1580
        %2337 = vmatprep.subr.bf16.mxu0 %v1589
        %2338 = vmatpush1.bf16.msra.mxu0 %v1588
        %2339 = vmatprep.subr.bf16.mxu0 %v1597
        %2340 = vmatpush1.bf16.msra.mxu0 %v1596
        %2341 = vmatprep.subr.bf16.mxu0 %v1605
        %2342 = vmatpush1.bf16.msra.mxu0 %v1604
        %2343 = vmatprep.subr.bf16.mxu0 %v1613
        %2344 = vmatpush1.bf16.msra.mxu0 %v1612
        %2345 = vmatprep.subr.bf16.mxu0 %v1621
        %2346 = vmatpush1.bf16.msra.mxu0 %v1620
        %2347 = vmatprep.subr.bf16.mxu0 %v1629
        %2348 = vmatpush1.bf16.msra.mxu0 %v1628
        %2349 = vmatprep.subr.bf16.mxu0 %v1637
        %2350 = vmatpush1.bf16.msra.mxu0 %v1636
        %2351 = vmatprep.subr.bf16.mxu0 %v1645
        %2352 = vmatpush1.bf16.msra.mxu0 %v1644
        %2353 = vmatprep.subr.bf16.mxu0 %v1653
        %2354 = vmatpush1.bf16.msra.mxu0 %v1652
        %2355 = vmatprep.subr.bf16.mxu0 %v1661
        %2356 = vmatpush1.bf16.msra.mxu0 %v1660
        %2357 = vmatprep.subr.bf16.mxu0 %v1669
        %2358 = vmatpush1.bf16.msra.mxu0 %v1668
        %2359 = vmatprep.subr.bf16.mxu0 %v1677
        %2360 = vmatpush1.bf16.msra.mxu0 %v1676
        %2361 = vmatprep.subr.bf16.mxu0 %v1685
        %2362 = vmatpush1.bf16.msra.mxu0 %v1684
        %2363 = vmatprep.subr.bf16.mxu0 %v1693
        %2364 = vmatpush1.bf16.msra.mxu0 %v1692
        %2365 = vmatprep.mubr.bf16.mxu0 %v602
        %2366 = vmatmul.mubr.bf16.gmra.mrb[0].mxu0 %v588
        %v2367 = vpop.f32.mrb[0].mxu0
        %v2368 = vadd.f32 0.0, %v2367
        %v2369 = vpop.f32.mrb[0].mxu0
        %v2370 = vadd.f32 0.0, %v2369
        %v2371 = vpop.f32.mrb[0].mxu0
        %v2372 = vpop.f32.mrb[0].mxu0
        %2373 = vdwg.mxu0
        %2374 = vmatprep.subr.bf16.mxu0 %v1701
        %2375 = vmatpush1.bf16.msra.mxu0 %v1700
        %2376 = vmatprep.subr.bf16.mxu0 %v1709
        %2377 = vmatpush1.bf16.msra.mxu0 %v1708
        %2378 = vmatprep.subr.bf16.mxu0 %v1717
        %2379 = vmatpush1.bf16.msra.mxu0 %v1716
        %2380 = vmatprep.subr.bf16.mxu0 %v1725
        %2381 = vmatpush1.bf16.msra.mxu0 %v1724
        %2382 = vmatprep.subr.bf16.mxu0 %v1733
        %2383 = vmatpush1.bf16.msra.mxu0 %v1732
        %2384 = vmatprep.subr.bf16.mxu0 %v1741
        %2385 = vmatpush1.bf16.msra.mxu0 %v1740
        %2386 = vmatprep.subr.bf16.mxu0 %v1749
        %2387 = vmatpush1.bf16.msra.mxu0 %v1748
        %2388 = vmatprep.subr.bf16.mxu0 %v1757
        %2389 = vmatpush1.bf16.msra.mxu0 %v1756
        %2390 = vmatprep.subr.bf16.mxu0 %v1765
        %2391 = vmatpush1.bf16.msra.mxu0 %v1764
        %2392 = vmatprep.subr.bf16.mxu0 %v1773
        %2393 = vmatpush1.bf16.msra.mxu0 %v1772
        %2394 = vmatprep.subr.bf16.mxu0 %v1781
        %2395 = vmatpush1.bf16.msra.mxu0 %v1780
        %2396 = vmatprep.subr.bf16.mxu0 %v1789
        %2397 = vmatpush1.bf16.msra.mxu0 %v1788
        %2398 = vmatprep.subr.bf16.mxu0 %v1797
        %2399 = vmatpush1.bf16.msra.mxu0 %v1796
        %2400 = vmatprep.subr.bf16.mxu0 %v1805
        %2401 = vmatpush1.bf16.msra.mxu0 %v1804
        %2402 = vmatprep.subr.bf16.mxu0 %v1813
        %2403 = vmatpush1.bf16.msra.mxu0 %v1812
        %2404 = vmatprep.subr.bf16.mxu0 %v1821
        %2405 = vmatpush1.bf16.msra.mxu0 %v1820
        %2406 = vmatprep.mubr.bf16.mxu0 %v604
        %2407 = vmatmul.mubr.bf16.gmra.mrb[0].mxu0 %v603
        %v2408 = vpop.f32.mrb[0].mxu0
        %v2409 = vadd.f32 %v2368, %v2408
        %v2410 = vpop.f32.mrb[0].mxu0
        %v2411 = vadd.f32 %v2370, %v2410
        %v2412 = vpop.f32.mrb[0].mxu0
        %v2413 = vpop.f32.mrb[0].mxu0
        %2414 = vdwg.mxu0
        %2415 = vmatprep.subr.bf16.mxu0 %v1829
        %2416 = vmatpush1.bf16.msra.mxu0 %v1828
        %2417 = vmatprep.subr.bf16.mxu0 %v1837
        %2418 = vmatpush1.bf16.msra.mxu0 %v1836
        %2419 = vmatprep.subr.bf16.mxu0 %v1845
        %2420 = vmatpush1.bf16.msra.mxu0 %v1844
        %2421 = vmatprep.subr.bf16.mxu0 %v1853
        %2422 = vmatpush1.bf16.msra.mxu0 %v1852
        %2423 = vmatprep.subr.bf16.mxu0 %v1861
        %2424 = vmatpush1.bf16.msra.mxu0 %v1860
        %2425 = vmatprep.subr.bf16.mxu0 %v1869
        %2426 = vmatpush1.bf16.msra.mxu0 %v1868
        %2427 = vmatprep.subr.bf16.mxu0 %v1877
        %2428 = vmatpush1.bf16.msra.mxu0 %v1876
        %2429 = vmatprep.subr.bf16.mxu0 %v1885
        %2430 = vmatpush1.bf16.msra.mxu0 %v1884
        %2431 = vmatprep.subr.bf16.mxu0 0
        %2432 = vmatpush1.bf16.msra.mxu0 0
        %2433 = vmatprep.subr.bf16.mxu0 0
        %2434 = vmatpush1.bf16.msra.mxu0 0
        %2435 = vmatprep.subr.bf16.mxu0 0
        %2436 = vmatpush1.bf16.msra.mxu0 0
        %2437 = vmatprep.subr.bf16.mxu0 0
        %2438 = vmatpush1.bf16.msra.mxu0 0
        %2439 = vmatprep.subr.bf16.mxu0 0
        %2440 = vmatpush1.bf16.msra.mxu0 0
        %2441 = vmatprep.subr.bf16.mxu0 0
        %2442 = vmatpush1.bf16.msra.mxu0 0
        %2443 = vmatprep.subr.bf16.mxu0 0
        %2444 = vmatpush1.bf16.msra.mxu0 0
        %2445 = vmatprep.subr.bf16.mxu0 0
        %2446 = vmatpush1.bf16.msra.mxu0 0
        %2447 = vmatprep.mubr.bf16.mxu0 0
        %2448 = vmatmul.mubr.bf16.gmra.mrb[0].mxu0 %v595
        %v2449 = vpop.f32.mrb[0].mxu0
        %v2450 = vadd.f32 %v2409, %v2449
        %v2451 = vpop.f32.mrb[0].mxu0
        %v2452 = vadd.f32 %v2411, %v2451
        %v2453 = vpop.f32.mrb[0].mxu0
        %v2454 = vpop.f32.mrb[0].mxu0
        %2455 = vdwg.mxu0
        %2456 = vmatprep.subr.bf16.mxu0 %v1575
        %2457 = vmatpush1.bf16.msra.mxu0 %v1574
        %2458 = vmatprep.subr.bf16.mxu0 %v1583
        %2459 = vmatpush1.bf16.msra.mxu0 %v1582
        %2460 = vmatprep.subr.bf16.mxu0 %v1591
        %2461 = vmatpush1.bf16.msra.mxu0 %v1590
        %2462 = vmatprep.subr.bf16.mxu0 %v1599
        %2463 = vmatpush1.bf16.msra.mxu0 %v1598
        %2464 = vmatprep.subr.bf16.mxu0 %v1607
        %2465 = vmatpush1.bf16.msra.mxu0 %v1606
        %2466 = vmatprep.subr.bf16.mxu0 %v1615
        %2467 = vmatpush1.bf16.msra.mxu0 %v1614
        %2468 = vmatprep.subr.bf16.mxu0 %v1623
        %2469 = vmatpush1.bf16.msra.mxu0 %v1622
        %2470 = vmatprep.subr.bf16.mxu0 %v1631
        %2471 = vmatpush1.bf16.msra.mxu0 %v1630
        %2472 = vmatprep.subr.bf16.mxu0 %v1639
        %2473 = vmatpush1.bf16.msra.mxu0 %v1638
        %2474 = vmatprep.subr.bf16.mxu0 %v1647
        %2475 = vmatpush1.bf16.msra.mxu0 %v1646
        %2476 = vmatprep.subr.bf16.mxu0 %v1655
        %2477 = vmatpush1.bf16.msra.mxu0 %v1654
        %2478 = vmatprep.subr.bf16.mxu0 %v1663
        %2479 = vmatpush1.bf16.msra.mxu0 %v1662
        %2480 = vmatprep.subr.bf16.mxu0 %v1671
        %2481 = vmatpush1.bf16.msra.mxu0 %v1670
        %2482 = vmatprep.subr.bf16.mxu0 %v1679
        %2483 = vmatpush1.bf16.msra.mxu0 %v1678
        %2484 = vmatprep.subr.bf16.mxu0 %v1687
        %2485 = vmatpush1.bf16.msra.mxu0 %v1686
        %2486 = vmatprep.subr.bf16.mxu0 %v1695
        %2487 = vmatpush1.bf16.msra.mxu0 %v1694
        %2488 = vmatprep.mubr.bf16.mxu0 %v602
        %2489 = vmatmul.mubr.bf16.gmra.mrb[0].mxu0 %v588
        %v2490 = vpop.f32.mrb[0].mxu0
        %v2491 = vadd.f32 0.0, %v2490
        %v2492 = vpop.f32.mrb[0].mxu0
        %v2493 = vadd.f32 0.0, %v2492
        %v2494 = vpop.f32.mrb[0].mxu0
        %v2495 = vpop.f32.mrb[0].mxu0
        %2496 = vdwg.mxu0
        %2497 = vmatprep.subr.bf16.mxu0 %v1703
        %2498 = vmatpush1.bf16.msra.mxu0 %v1702
        %2499 = vmatprep.subr.bf16.mxu0 %v1711
        %2500 = vmatpush1.bf16.msra.mxu0 %v1710
        %2501 = vmatprep.subr.bf16.mxu0 %v1719
        %2502 = vmatpush1.bf16.msra.mxu0 %v1718
        %2503 = vmatprep.subr.bf16.mxu0 %v1727
        %2504 = vmatpush1.bf16.msra.mxu0 %v1726
        %2505 = vmatprep.subr.bf16.mxu0 %v1735
        %2506 = vmatpush1.bf16.msra.mxu0 %v1734
        %2507 = vmatprep.subr.bf16.mxu0 %v1743
        %2508 = vmatpush1.bf16.msra.mxu0 %v1742
        %2509 = vmatprep.subr.bf16.mxu0 %v1751
        %2510 = vmatpush1.bf16.msra.mxu0 %v1750
        %2511 = vmatprep.subr.bf16.mxu0 %v1759
        %2512 = vmatpush1.bf16.msra.mxu0 %v1758
        %2513 = vmatprep.subr.bf16.mxu0 %v1767
        %2514 = vmatpush1.bf16.msra.mxu0 %v1766
        %2515 = vmatprep.subr.bf16.mxu0 %v1775
        %2516 = vmatpush1.bf16.msra.mxu0 %v1774
        %2517 = vmatprep.subr.bf16.mxu0 %v1783
        %2518 = vmatpush1.bf16.msra.mxu0 %v1782
        %2519 = vmatprep.subr.bf16.mxu0 %v1791
        %2520 = vmatpush1.bf16.msra.mxu0 %v1790
        %2521 = vmatprep.subr.bf16.mxu0 %v1799
        %2522 = vmatpush1.bf16.msra.mxu0 %v1798
        %2523 = vmatprep.subr.bf16.mxu0 %v1807
        %2524 = vmatpush1.bf16.msra.mxu0 %v1806
        %2525 = vmatprep.subr.bf16.mxu0 %v1815
        %2526 = vmatpush1.bf16.msra.mxu0 %v1814
        %2527 = vmatprep.subr.bf16.mxu0 %v1823
        %2528 = vmatpush1.bf16.msra.mxu0 %v1822
        %2529 = vmatprep.mubr.bf16.mxu0 %v604
        %2530 = vmatmul.mubr.bf16.gmra.mrb[0].mxu0 %v603
        %v2531 = vpop.f32.mrb[0].mxu0
        %v2532 = vadd.f32 %v2491, %v2531
        %v2533 = vpop.f32.mrb[0].mxu0
        %v2534 = vadd.f32 %v2493, %v2533
        %v2535 = vpop.f32.mrb[0].mxu0
        %v2536 = vpop.f32.mrb[0].mxu0
        %2537 = vdwg.mxu0
        %2538 = vmatprep.subr.bf16.mxu0 %v1831
        %2539 = vmatpush1.bf16.msra.mxu0 %v1830
        %2540 = vmatprep.subr.bf16.mxu0 %v1839
        %2541 = vmatpush1.bf16.msra.mxu0 %v1838
        %2542 = vmatprep.subr.bf16.mxu0 %v1847
        %2543 = vmatpush1.bf16.msra.mxu0 %v1846
        %2544 = vmatprep.subr.bf16.mxu0 %v1855
        %2545 = vmatpush1.bf16.msra.mxu0 %v1854
        %2546 = vmatprep.subr.bf16.mxu0 %v1863
        %2547 = vmatpush1.bf16.msra.mxu0 %v1862
        %2548 = vmatprep.subr.bf16.mxu0 %v1871
        %2549 = vmatpush1.bf16.msra.mxu0 %v1870
        %2550 = vmatprep.subr.bf16.mxu0 %v1879
        %2551 = vmatpush1.bf16.msra.mxu0 %v1878
        %2552 = vmatprep.subr.bf16.mxu0 %v1887
        %2553 = vmatpush1.bf16.msra.mxu0 %v1886
        %2554 = vmatprep.subr.bf16.mxu0 0
        %2555 = vmatpush1.bf16.msra.mxu0 0
        %2556 = vmatprep.subr.bf16.mxu0 0
        %2557 = vmatpush1.bf16.msra.mxu0 0
        %2558 = vmatprep.subr.bf16.mxu0 0
        %2559 = vmatpush1.bf16.msra.mxu0 0
        %2560 = vmatprep.subr.bf16.mxu0 0
        %2561 = vmatpush1.bf16.msra.mxu0 0
        %2562 = vmatprep.subr.bf16.mxu0 0
        %2563 = vmatpush1.bf16.msra.mxu0 0
        %2564 = vmatprep.subr.bf16.mxu0 0
        %2565 = vmatpush1.bf16.msra.mxu0 0
        %2566 = vmatprep.subr.bf16.mxu0 0
        %2567 = vmatpush1.bf16.msra.mxu0 0
        %2568 = vmatprep.subr.bf16.mxu0 0
        %2569 = vmatpush1.bf16.msra.mxu0 0
        %2570 = vmatprep.mubr.bf16.mxu0 0
        %2571 = vmatmul.mubr.bf16.gmra.mrb[0].mxu0 %v595
        %v2572 = vpop.f32.mrb[0].mxu0
        %v2573 = vadd.f32 %v2532, %v2572
        %v2574 = vpop.f32.mrb[0].mxu0
        %v2575 = vadd.f32 %v2534, %v2574
        %v2576 = vpop.f32.mrb[0].mxu0
        %v2577 = vpop.f32.mrb[0].mxu0
        %2578 = vdwg.mxu0
        %2579 = vmatprep.subr.bf16.mxu0 %v1577
        %2580 = vmatpush1.bf16.msra.mxu0 %v1576
        %2581 = vmatprep.subr.bf16.mxu0 %v1585
        %2582 = vmatpush1.bf16.msra.mxu0 %v1584
        %2583 = vmatprep.subr.bf16.mxu0 %v1593
        %2584 = vmatpush1.bf16.msra.mxu0 %v1592
        %2585 = vmatprep.subr.bf16.mxu0 %v1601
        %2586 = vmatpush1.bf16.msra.mxu0 %v1600
        %2587 = vmatprep.subr.bf16.mxu0 %v1609
        %2588 = vmatpush1.bf16.msra.mxu0 %v1608
        %2589 = vmatprep.subr.bf16.mxu0 %v1617
        %2590 = vmatpush1.bf16.msra.mxu0 %v1616
        %2591 = vmatprep.subr.bf16.mxu0 %v1625
        %2592 = vmatpush1.bf16.msra.mxu0 %v1624
        %2593 = vmatprep.subr.bf16.mxu0 %v1633
        %2594 = vmatpush1.bf16.msra.mxu0 %v1632
        %2595 = vmatprep.subr.bf16.mxu0 %v1641
        %2596 = vmatpush1.bf16.msra.mxu0 %v1640
        %2597 = vmatprep.subr.bf16.mxu0 %v1649
        %2598 = vmatpush1.bf16.msra.mxu0 %v1648
        %2599 = vmatprep.subr.bf16.mxu0 %v1657
        %2600 = vmatpush1.bf16.msra.mxu0 %v1656
        %2601 = vmatprep.subr.bf16.mxu0 %v1665
        %2602 = vmatpush1.bf16.msra.mxu0 %v1664
        %2603 = vmatprep.subr.bf16.mxu0 %v1673
        %2604 = vmatpush1.bf16.msra.mxu0 %v1672
        %2605 = vmatprep.subr.bf16.mxu0 %v1681
        %2606 = vmatpush1.bf16.msra.mxu0 %v1680
        %2607 = vmatprep.subr.bf16.mxu0 %v1689
        %2608 = vmatpush1.bf16.msra.mxu0 %v1688
        %2609 = vmatprep.subr.bf16.mxu0 %v1697
        %2610 = vmatpush1.bf16.msra.mxu0 %v1696
        %2611 = vmatprep.mubr.bf16.mxu0 %v602
        %2612 = vmatmul.mubr.bf16.gmra.mrb[0].mxu0 %v588
        %v2613 = vpop.f32.mrb[0].mxu0
        %v2614 = vadd.f32 0.0, %v2613
        %v2615 = vpop.f32.mrb[0].mxu0
        %v2616 = vadd.f32 0.0, %v2615
        %v2617 = vpop.f32.mrb[0].mxu0
        %v2618 = vpop.f32.mrb[0].mxu0
        %2619 = vdwg.mxu0
        %2620 = vmatprep.subr.bf16.mxu0 %v1705
        %2621 = vmatpush1.bf16.msra.mxu0 %v1704
        %2622 = vmatprep.subr.bf16.mxu0 %v1713
        %2623 = vmatpush1.bf16.msra.mxu0 %v1712
        %2624 = vmatprep.subr.bf16.mxu0 %v1721
        %2625 = vmatpush1.bf16.msra.mxu0 %v1720
        %2626 = vmatprep.subr.bf16.mxu0 %v1729
        %2627 = vmatpush1.bf16.msra.mxu0 %v1728
        %2628 = vmatprep.subr.bf16.mxu0 %v1737
        %2629 = vmatpush1.bf16.msra.mxu0 %v1736
        %2630 = vmatprep.subr.bf16.mxu0 %v1745
        %2631 = vmatpush1.bf16.msra.mxu0 %v1744
        %2632 = vmatprep.subr.bf16.mxu0 %v1753
        %2633 = vmatpush1.bf16.msra.mxu0 %v1752
        %2634 = vmatprep.subr.bf16.mxu0 %v1761
        %2635 = vmatpush1.bf16.msra.mxu0 %v1760
        %2636 = vmatprep.subr.bf16.mxu0 %v1769
        %2637 = vmatpush1.bf16.msra.mxu0 %v1768
        %2638 = vmatprep.subr.bf16.mxu0 %v1777
        %2639 = vmatpush1.bf16.msra.mxu0 %v1776
        %2640 = vmatprep.subr.bf16.mxu0 %v1785
        %2641 = vmatpush1.bf16.msra.mxu0 %v1784
        %2642 = vmatprep.subr.bf16.mxu0 %v1793
        %2643 = vmatpush1.bf16.msra.mxu0 %v1792
        %2644 = vmatprep.subr.bf16.mxu0 %v1801
        %2645 = vmatpush1.bf16.msra.mxu0 %v1800
        %2646 = vmatprep.subr.bf16.mxu0 %v1809
        %2647 = vmatpush1.bf16.msra.mxu0 %v1808
        %2648 = vmatprep.subr.bf16.mxu0 %v1817
        %2649 = vmatpush1.bf16.msra.mxu0 %v1816
        %2650 = vmatprep.subr.bf16.mxu0 %v1825
        %2651 = vmatpush1.bf16.msra.mxu0 %v1824
        %2652 = vmatprep.mubr.bf16.mxu0 %v604
        %2653 = vmatmul.mubr.bf16.gmra.mrb[0].mxu0 %v603
        %v2654 = vpop.f32.mrb[0].mxu0
        %v2655 = vadd.f32 %v2614, %v2654
        %v2656 = vpop.f32.mrb[0].mxu0
        %v2657 = vadd.f32 %v2616, %v2656
        %v2658 = vpop.f32.mrb[0].mxu0
        %v2659 = vpop.f32.mrb[0].mxu0
        %2660 = vdwg.mxu0
        %2661 = vmatprep.subr.bf16.mxu0 %v1833
        %2662 = vmatpush1.bf16.msra.mxu0 %v1832
        %2663 = vmatprep.subr.bf16.mxu0 %v1841
        %2664 = vmatpush1.bf16.msra.mxu0 %v1840
        %2665 = vmatprep.subr.bf16.mxu0 %v1849
        %2666 = vmatpush1.bf16.msra.mxu0 %v1848
        %2667 = vmatprep.subr.bf16.mxu0 %v1857
        %2668 = vmatpush1.bf16.msra.mxu0 %v1856
        %2669 = vmatprep.subr.bf16.mxu0 %v1865
        %2670 = vmatpush1.bf16.msra.mxu0 %v1864
        %2671 = vmatprep.subr.bf16.mxu0 %v1873
        %2672 = vmatpush1.bf16.msra.mxu0 %v1872
        %2673 = vmatprep.subr.bf16.mxu0 %v1881
        %2674 = vmatpush1.bf16.msra.mxu0 %v1880
        %2675 = vmatprep.subr.bf16.mxu0 %v1889
        %2676 = vmatpush1.bf16.msra.mxu0 %v1888
        %2677 = vmatprep.subr.bf16.mxu0 0
        %2678 = vmatpush1.bf16.msra.mxu0 0
        %2679 = vmatprep.subr.bf16.mxu0 0
        %2680 = vmatpush1.bf16.msra.mxu0 0
        %2681 = vmatprep.subr.bf16.mxu0 0
        %2682 = vmatpush1.bf16.msra.mxu0 0
        %2683 = vmatprep.subr.bf16.mxu0 0
        %2684 = vmatpush1.bf16.msra.mxu0 0
        %2685 = vmatprep.subr.bf16.mxu0 0
        %2686 = vmatpush1.bf16.msra.mxu0 0
        %2687 = vmatprep.subr.bf16.mxu0 0
        %2688 = vmatpush1.bf16.msra.mxu0 0
        %2689 = vmatprep.subr.bf16.mxu0 0
        %2690 = vmatpush1.bf16.msra.mxu0 0
        %2691 = vmatprep.subr.bf16.mxu0 0
        %2692 = vmatpush1.bf16.msra.mxu0 0
        %2693 = vmatprep.mubr.bf16.mxu0 0
        %2694 = vmatmul.mubr.bf16.gmra.mrb[0].mxu0 %v595
        %v2695 = vpop.f32.mrb[0].mxu0
        %v2696 = vadd.f32 %v2655, %v2695
        %v2697 = vpop.f32.mrb[0].mxu0
        %v2698 = vadd.f32 %v2657, %v2697
        %v2699 = vpop.f32.mrb[0].mxu0
        %v2700 = vpop.f32.mrb[0].mxu0
        %2701 = vdwg.mxu0
        %v2710 = vcombine.low %v2327, %v2329
        %v2711 = vcombine.low %v2450, %v2452
        %v2713 = vunpack.c.l.s4 1983009808
        %v2714 = vunpack.c.0.s8 %v2713
        %v2715 = vlaneseq
        %v2716 = vshrl.u32 %v2715, 7
        %v2717 = vsub.s32 %v2714, %v2716
        %v2718 = vrot.slane %v2710, %v2717
        %v2720 = vunpack.c.l.s4 1983009808
        %v2721 = vunpack.c.0.s8 %v2720
        %v2722 = vlaneseq
        %v2723 = vshrl.u32 %v2722, 7
        %v2724 = vsub.s32 %v2721, %v2723
        %v2725 = vrot.slane %v2711, %v2724
        %v2726 = vcombine.low %v2718, %v2725
        %v2727 = vcombine.low %v2573, %v2575
        %v2728 = vcombine.low %v2696, %v2698
        %v2730 = vunpack.c.l.s4 1983009808
        %v2731 = vunpack.c.0.s8 %v2730
        %v2732 = vlaneseq
        %v2733 = vshrl.u32 %v2732, 7
        %v2734 = vsub.s32 %v2731, %v2733
        %v2735 = vrot.slane %v2727, %v2734
        %v2737 = vunpack.c.l.s4 1983009808
        %v2738 = vunpack.c.0.s8 %v2737
        %v2739 = vlaneseq
        %v2740 = vshrl.u32 %v2739, 7
        %v2741 = vsub.s32 %v2738, %v2740
        %v2742 = vrot.slane %v2728, %v2741
        %v2743 = vcombine.low %v2735, %v2742
        %v2746 = vadd.f32 %v242, %v2726
        %v2747 = vadd.f32 %v243, %v2743
        %2748 = vst [vmem:[#allocation2] sm:$0xff] %v2746
        %2749 = vst [vmem:[#allocation2 + $0x8] sm:$0xff] %v2747
        %p2750 = scmp.eq.s32.totalorder %s17, 4
        // Predicated region
        $region45: #{dueling_dqn_forward.7} parent=39 // pred_check
          %p2751 = pneg %p2750
        $region46: #{dueling_dqn_forward.7} parent=39 // pred_check_branch
          %2753 = sbr.rel (%p2751) target = $region48
        $region47: #{dueling_dqn_forward.7} parent=39 // pred_region
          %v2754 = vld [vmem:[#allocation2] sm:$0xff]
          %v2755 = vld [vmem:[#allocation2 + $0x8] sm:$0xff]
          %v2756 = vld [vmem:[%s2] sm:$0xff]
          %v2758 = vlaneseq
          %v2759 = vshrl.u32 %v2758, 7
          %v2760 = vsub.s32 0, %v2759
          %v2761 = vrot.slane %v2756, %v2760
          %v2762 = vlaneseq
          %v2763 = vshrl.u32 %v2762, 7
          %v2764 = vsub.s32 1, %v2763
          %v2765 = vrot.slane %v2756, %v2764
          %v2766 = vlaneseq
          %v2767 = vshrl.u32 %v2766, 7
          %v2768 = vsub.s32 2, %v2767
          %v2769 = vrot.slane %v2756, %v2768
          %v2770 = vlaneseq
          %v2771 = vshrl.u32 %v2770, 7
          %v2772 = vsub.s32 3, %v2771
          %v2773 = vrot.slane %v2756, %v2772
          %v2774 = vlaneseq
          %v2775 = vshrl.u32 %v2774, 7
          %v2776 = vsub.s32 4, %v2775
          %v2777 = vrot.slane %v2756, %v2776
          %v2778 = vlaneseq
          %v2779 = vshrl.u32 %v2778, 7
          %v2780 = vsub.s32 5, %v2779
          %v2781 = vrot.slane %v2756, %v2780
          %v2782 = vlaneseq
          %v2783 = vshrl.u32 %v2782, 7
          %v2784 = vsub.s32 6, %v2783
          %v2785 = vrot.slane %v2756, %v2784
          %v2786 = vlaneseq
          %v2787 = vshrl.u32 %v2786, 7
          %v2788 = vsub.s32 7, %v2787
          %v2789 = vrot.slane %v2756, %v2788
          %v2790 = vcombine.low %v2761, %v2765
          %v2791 = vcombine.low %v2769, %v2773
          %v2793 = vunpack.c.l.s4 1983009808
          %v2794 = vunpack.c.0.s8 %v2793
          %v2795 = vlaneseq
          %v2796 = vshrl.u32 %v2795, 7
          %v2797 = vsub.s32 %v2794, %v2796
          %v2798 = vrot.slane %v2790, %v2797
          %v2800 = vunpack.c.l.s4 1983009808
          %v2801 = vunpack.c.0.s8 %v2800
          %v2802 = vlaneseq
          %v2803 = vshrl.u32 %v2802, 7
          %v2804 = vsub.s32 %v2801, %v2803
          %v2805 = vrot.slane %v2791, %v2804
          %v2806 = vcombine.low %v2798, %v2805
          %v2807 = vcombine.low %v2777, %v2781
          %v2808 = vcombine.low %v2785, %v2789
          %v2810 = vunpack.c.l.s4 1983009808
          %v2811 = vunpack.c.0.s8 %v2810
          %v2812 = vlaneseq
          %v2813 = vshrl.u32 %v2812, 7
          %v2814 = vsub.s32 %v2811, %v2813
          %v2815 = vrot.slane %v2807, %v2814
          %v2817 = vunpack.c.l.s4 1983009808
          %v2818 = vunpack.c.0.s8 %v2817
          %v2819 = vlaneseq
          %v2820 = vshrl.u32 %v2819, 7
          %v2821 = vsub.s32 %v2818, %v2820
          %v2822 = vrot.slane %v2808, %v2821
          %v2823 = vcombine.low %v2815, %v2822
          %v2826 = vadd.f32 %v2754, %v2806
          %v2827 = vadd.f32 %v2755, %v2823
          %v2828 = vmax.f32 %v2826, 0.0
          %v2829 = vmax.f32 %v2827, 0.0
          %v2832 = vcombine.high %v2828, %v2828
          %v2834 = vunpack.c.l.s4 1983009808
          %v2835 = vunpack.c.0.s8 %v2834
          %v2836 = vlaneseq
          %v2837 = vshrl.u32 %v2836, 7
          %v2838 = vsub.s32 %v2835, %v2837
          %v2839 = vrot.slane %v2828, %v2838
          %v2841 = vunpack.c.l.s4 1983009808
          %v2842 = vunpack.c.0.s8 %v2841
          %v2843 = vlaneseq
          %v2844 = vshrl.u32 %v2843, 7
          %v2845 = vsub.s32 %v2842, %v2844
          %v2846 = vrot.slane %v2832, %v2845
          %v2847 = vcombine.high %v2839, %v2839
          %v2848 = vcombine.high %v2846, %v2846
          %v2849 = vcombine.high %v2829, %v2829
          %v2851 = vunpack.c.l.s4 1983009808
          %v2852 = vunpack.c.0.s8 %v2851
          %v2853 = vlaneseq
          %v2854 = vshrl.u32 %v2853, 7
          %v2855 = vsub.s32 %v2852, %v2854
          %v2856 = vrot.slane %v2829, %v2855
          %v2858 = vunpack.c.l.s4 1983009808
          %v2859 = vunpack.c.0.s8 %v2858
          %v2860 = vlaneseq
          %v2861 = vshrl.u32 %v2860, 7
          %v2862 = vsub.s32 %v2859, %v2861
          %v2863 = vrot.slane %v2849, %v2862
          %v2864 = vcombine.high %v2856, %v2856
          %v2865 = vcombine.high %v2863, %v2863
          %v2874 = vpack.c.bf16 %v2839, %v2839
          %v2875 = vpack.c.bf16 %v2847, %v2847
          %v2876 = vpack.c.bf16 %v2846, %v2846
          %v2877 = vpack.c.bf16 %v2848, %v2848
          %v2878 = vpack.c.bf16 %v2856, %v2856
          %v2879 = vpack.c.bf16 %v2864, %v2864
          %v2880 = vpack.c.bf16 %v2863, %v2863
          %v2881 = vpack.c.bf16 %v2865, %v2865
          %v2882 = vld [vmem:[%s3] sm:$0xf]
          %v2883 = vld [vmem:[%s3 + $0x4] sm:$0xf]
          %v2884 = vld [vmem:[%s3 + $0x8] sm:$0xf]
          %v2885 = vld [vmem:[%s3 + $0xc] sm:$0xf]
          %v2886 = vld [vmem:[%s3 + $0x10] sm:$0xf]
          %v2887 = vld [vmem:[%s3 + $0x14] sm:$0xf]
          %v2888 = vld [vmem:[%s3 + $0x18] sm:$0xf]
          %v2889 = vld [vmem:[%s3 + $0x1c] sm:$0xf]
          %v2890 = vld [vmem:[%s3 + $0x20] sm:$0xf]
          %v2891 = vld [vmem:[%s3 + $0x24] sm:$0xf]
          %v2892 = vld [vmem:[%s3 + $0x28] sm:$0xf]
          %v2893 = vld [vmem:[%s3 + $0x2c] sm:$0xf]
          %v2894 = vld [vmem:[%s3 + $0x30] sm:$0xf]
          %v2895 = vld [vmem:[%s3 + $0x34] sm:$0xf]
          %v2896 = vld [vmem:[%s3 + $0x38] sm:$0xf]
          %v2897 = vld [vmem:[%s3 + $0x3c] sm:$0xf]
          %v2898 = vld [vmem:[%s3 + $0x40] sm:$0xf]
          %v2899 = vld [vmem:[%s3 + $0x44] sm:$0xf]
          %v2900 = vld [vmem:[%s3 + $0x48] sm:$0xf]
          %v2901 = vld [vmem:[%s3 + $0x4c] sm:$0xf]
          %v2902 = vld [vmem:[%s3 + $0x50] sm:$0xf]
          %v2903 = vld [vmem:[%s3 + $0x54] sm:$0xf]
          %v2904 = vld [vmem:[%s3 + $0x58] sm:$0xf]
          %v2905 = vld [vmem:[%s3 + $0x5c] sm:$0xf]
          %v2906 = vld [vmem:[%s3 + $0x60] sm:$0xf]
          %v2907 = vld [vmem:[%s3 + $0x64] sm:$0xf]
          %v2908 = vld [vmem:[%s3 + $0x68] sm:$0xf]
          %v2909 = vld [vmem:[%s3 + $0x6c] sm:$0xf]
          %v2910 = vld [vmem:[%s3 + $0x70] sm:$0xf]
          %v2911 = vld [vmem:[%s3 + $0x74] sm:$0xf]
          %v2912 = vld [vmem:[%s3 + $0x78] sm:$0xf]
          %v2913 = vld [vmem:[%s3 + $0x7c] sm:$0xf]
          %v2914 = vld [vmem:[%s3 + $0x80] sm:$0xf]
          %v2915 = vld [vmem:[%s3 + $0x84] sm:$0xf]
          %v2916 = vld [vmem:[%s3 + $0x88] sm:$0xf]
          %v2917 = vld [vmem:[%s3 + $0x8c] sm:$0xf]
          %v2918 = vld [vmem:[%s3 + $0x90] sm:$0xf]
          %v2919 = vld [vmem:[%s3 + $0x94] sm:$0xf]
          %v2920 = vld [vmem:[%s3 + $0x98] sm:$0xf]
          %v2921 = vld [vmem:[%s3 + $0x9c] sm:$0xf]
          %v2922 = vld [vmem:[%s3 + $0xa0] sm:$0xf]
          %v2923 = vld [vmem:[%s3 + $0xa4] sm:$0xf]
          %v2924 = vld [vmem:[%s3 + $0xa8] sm:$0xf]
          %v2925 = vld [vmem:[%s3 + $0xac] sm:$0xf]
          %v2926 = vld [vmem:[%s3 + $0xb0] sm:$0xf]
          %v2927 = vld [vmem:[%s3 + $0xb4] sm:$0xf]
          %v2928 = vld [vmem:[%s3 + $0xb8] sm:$0xf]
          %v2929 = vld [vmem:[%s3 + $0xbc] sm:$0xf]
          %v2930 = vld [vmem:[%s3 + $0xc0] sm:$0xf]
          %v2931 = vld [vmem:[%s3 + $0xc4] sm:$0xf]
          %v2932 = vld [vmem:[%s3 + $0xc8] sm:$0xf]
          %v2933 = vld [vmem:[%s3 + $0xcc] sm:$0xf]
          %v2934 = vld [vmem:[%s3 + $0xd0] sm:$0xf]
          %v2935 = vld [vmem:[%s3 + $0xd4] sm:$0xf]
          %v2936 = vld [vmem:[%s3 + $0xd8] sm:$0xf]
          %v2937 = vld [vmem:[%s3 + $0xdc] sm:$0xf]
          %v2938 = vld [vmem:[%s3 + $0xe0] sm:$0xf]
          %v2939 = vld [vmem:[%s3 + $0xe4] sm:$0xf]
          %v2940 = vld [vmem:[%s3 + $0xe8] sm:$0xf]
          %v2941 = vld [vmem:[%s3 + $0xec] sm:$0xf]
          %v2942 = vld [vmem:[%s3 + $0xf0] sm:$0xf]
          %v2943 = vld [vmem:[%s3 + $0xf4] sm:$0xf]
          %v2944 = vld [vmem:[%s3 + $0xf8] sm:$0xf]
          %v2945 = vld [vmem:[%s3 + $0xfc] sm:$0xf]
          %v2946 = vld [vmem:[%s3 + $0x100] sm:$0xf]
          %v2947 = vld [vmem:[%s3 + $0x104] sm:$0xf]
          %v2948 = vld [vmem:[%s3 + $0x108] sm:$0xf]
          %v2949 = vld [vmem:[%s3 + $0x10c] sm:$0xf]
          %v2950 = vld [vmem:[%s3 + $0x110] sm:$0xf]
          %v2951 = vld [vmem:[%s3 + $0x114] sm:$0xf]
          %v2952 = vld [vmem:[%s3 + $0x118] sm:$0xf]
          %v2953 = vld [vmem:[%s3 + $0x11c] sm:$0xf]
          %v2954 = vld [vmem:[%s3 + $0x120] sm:$0xf]
          %v2955 = vld [vmem:[%s3 + $0x124] sm:$0xf]
          %v2956 = vld [vmem:[%s3 + $0x128] sm:$0xf]
          %v2957 = vld [vmem:[%s3 + $0x12c] sm:$0xf]
          %v2958 = vld [vmem:[%s3 + $0x130] sm:$0xf]
          %v2959 = vld [vmem:[%s3 + $0x134] sm:$0xf]
          %v2960 = vld [vmem:[%s3 + $0x138] sm:$0xf]
          %v2961 = vld [vmem:[%s3 + $0x13c] sm:$0xf]
          %v2962 = vld [vmem:[%s3 + $0x140] sm:$0xf]
          %v2963 = vld [vmem:[%s3 + $0x144] sm:$0xf]
          %v2964 = vld [vmem:[%s3 + $0x148] sm:$0xf]
          %v2965 = vld [vmem:[%s3 + $0x14c] sm:$0xf]
          %v2966 = vld [vmem:[%s3 + $0x150] sm:$0xf]
          %v2967 = vld [vmem:[%s3 + $0x154] sm:$0xf]
          %v2968 = vld [vmem:[%s3 + $0x158] sm:$0xf]
          %v2969 = vld [vmem:[%s3 + $0x15c] sm:$0xf]
          %v2970 = vld [vmem:[%s3 + $0x160] sm:$0xf]
          %v2971 = vld [vmem:[%s3 + $0x164] sm:$0xf]
          %v2972 = vld [vmem:[%s3 + $0x168] sm:$0xf]
          %v2973 = vld [vmem:[%s3 + $0x16c] sm:$0xf]
          %v2974 = vld [vmem:[%s3 + $0x170] sm:$0xf]
          %v2975 = vld [vmem:[%s3 + $0x174] sm:$0xf]
          %v2976 = vld [vmem:[%s3 + $0x178] sm:$0xf]
          %v2977 = vld [vmem:[%s3 + $0x17c] sm:$0xf]
          %v2978 = vld [vmem:[%s3 + $0x180] sm:$0xf]
          %v2979 = vld [vmem:[%s3 + $0x184] sm:$0xf]
          %v2980 = vld [vmem:[%s3 + $0x188] sm:$0xf]
          %v2981 = vld [vmem:[%s3 + $0x18c] sm:$0xf]
          %v2982 = vld [vmem:[%s3 + $0x190] sm:$0xf]
          %v2983 = vld [vmem:[%s3 + $0x194] sm:$0xf]
          %v2984 = vld [vmem:[%s3 + $0x198] sm:$0xf]
          %v2985 = vld [vmem:[%s3 + $0x19c] sm:$0xf]
          %v2986 = vld [vmem:[%s3 + $0x1a0] sm:$0xf]
          %v2987 = vld [vmem:[%s3 + $0x1a4] sm:$0xf]
          %v2988 = vld [vmem:[%s3 + $0x1a8] sm:$0xf]
          %v2989 = vld [vmem:[%s3 + $0x1ac] sm:$0xf]
          %v2990 = vld [vmem:[%s3 + $0x1b0] sm:$0xf]
          %v2991 = vld [vmem:[%s3 + $0x1b4] sm:$0xf]
          %v2992 = vld [vmem:[%s3 + $0x1b8] sm:$0xf]
          %v2993 = vld [vmem:[%s3 + $0x1bc] sm:$0xf]
          %v2994 = vld [vmem:[%s3 + $0x1c0] sm:$0xf]
          %v2995 = vld [vmem:[%s3 + $0x1c4] sm:$0xf]
          %v2996 = vld [vmem:[%s3 + $0x1c8] sm:$0xf]
          %v2997 = vld [vmem:[%s3 + $0x1cc] sm:$0xf]
          %v2998 = vld [vmem:[%s3 + $0x1d0] sm:$0xf]
          %v2999 = vld [vmem:[%s3 + $0x1d4] sm:$0xf]
          %v3000 = vld [vmem:[%s3 + $0x1d8] sm:$0xf]
          %v3001 = vld [vmem:[%s3 + $0x1dc] sm:$0xf]
          %v3002 = vld [vmem:[%s3 + $0x1e0] sm:$0xf]
          %v3003 = vld [vmem:[%s3 + $0x1e4] sm:$0xf]
          %v3004 = vld [vmem:[%s3 + $0x1e8] sm:$0xf]
          %v3005 = vld [vmem:[%s3 + $0x1ec] sm:$0xf]
          %v3006 = vld [vmem:[%s3 + $0x1f0] sm:$0xf]
          %v3007 = vld [vmem:[%s3 + $0x1f4] sm:$0xf]
          %v3008 = vld [vmem:[%s3 + $0x1f8] sm:$0xf]
          %v3009 = vld [vmem:[%s3 + $0x1fc] sm:$0xf]
          %v3010 = vld [vmem:[%s4] sm:$0x1]
          %v3012 = vlaneseq
          %v3013 = vshrl.u32 %v3012, 7
          %v3014 = vsub.s32 0, %v3013
          %v3015 = vrot.slane %v3010, %v3014
          %v3145 = vunpack.c.l.b16 %v2882
          %v3146 = vunpack.c.l.b16 %v2883
          %v3147 = vunpack.c.l.b16 %v2884
          %v3148 = vunpack.c.l.b16 %v2885
          %v3149 = vunpack.c.l.b16 %v2886
          %v3150 = vunpack.c.l.b16 %v2887
          %v3151 = vunpack.c.l.b16 %v2888
          %v3152 = vunpack.c.l.b16 %v2889
          %v3153 = vunpack.c.l.b16 %v2890
          %v3154 = vunpack.c.l.b16 %v2891
          %v3155 = vunpack.c.l.b16 %v2892
          %v3156 = vunpack.c.l.b16 %v2893
          %v3157 = vunpack.c.l.b16 %v2894
          %v3158 = vunpack.c.l.b16 %v2895
          %v3159 = vunpack.c.l.b16 %v2896
          %v3160 = vunpack.c.l.b16 %v2897
          %v3161 = vunpack.c.l.b16 %v2898
          %v3162 = vunpack.c.l.b16 %v2899
          %v3163 = vunpack.c.l.b16 %v2900
          %v3164 = vunpack.c.l.b16 %v2901
          %v3165 = vunpack.c.l.b16 %v2902
          %v3166 = vunpack.c.l.b16 %v2903
          %v3167 = vunpack.c.l.b16 %v2904
          %v3168 = vunpack.c.l.b16 %v2905
          %v3169 = vunpack.c.l.b16 %v2906
          %v3170 = vunpack.c.l.b16 %v2907
          %v3171 = vunpack.c.l.b16 %v2908
          %v3172 = vunpack.c.l.b16 %v2909
          %v3173 = vunpack.c.l.b16 %v2910
          %v3174 = vunpack.c.l.b16 %v2911
          %v3175 = vunpack.c.l.b16 %v2912
          %v3176 = vunpack.c.l.b16 %v2913
          %v3177 = vunpack.c.l.b16 %v2914
          %v3178 = vunpack.c.l.b16 %v2915
          %v3179 = vunpack.c.l.b16 %v2916
          %v3180 = vunpack.c.l.b16 %v2917
          %v3181 = vunpack.c.l.b16 %v2918
          %v3182 = vunpack.c.l.b16 %v2919
          %v3183 = vunpack.c.l.b16 %v2920
          %v3184 = vunpack.c.l.b16 %v2921
          %v3185 = vunpack.c.l.b16 %v2922
          %v3186 = vunpack.c.l.b16 %v2923
          %v3187 = vunpack.c.l.b16 %v2924
          %v3188 = vunpack.c.l.b16 %v2925
          %v3189 = vunpack.c.l.b16 %v2926
          %v3190 = vunpack.c.l.b16 %v2927
          %v3191 = vunpack.c.l.b16 %v2928
          %v3192 = vunpack.c.l.b16 %v2929
          %v3193 = vunpack.c.l.b16 %v2930
          %v3194 = vunpack.c.l.b16 %v2931
          %v3195 = vunpack.c.l.b16 %v2932
          %v3196 = vunpack.c.l.b16 %v2933
          %v3197 = vunpack.c.l.b16 %v2934
          %v3198 = vunpack.c.l.b16 %v2935
          %v3199 = vunpack.c.l.b16 %v2936
          %v3200 = vunpack.c.l.b16 %v2937
          %v3201 = vunpack.c.l.b16 %v2938
          %v3202 = vunpack.c.l.b16 %v2939
          %v3203 = vunpack.c.l.b16 %v2940
          %v3204 = vunpack.c.l.b16 %v2941
          %v3205 = vunpack.c.l.b16 %v2942
          %v3206 = vunpack.c.l.b16 %v2943
          %v3207 = vunpack.c.l.b16 %v2944
          %v3208 = vunpack.c.l.b16 %v2945
          %v3209 = vunpack.c.l.b16 %v2946
          %v3210 = vunpack.c.l.b16 %v2947
          %v3211 = vunpack.c.l.b16 %v2948
          %v3212 = vunpack.c.l.b16 %v2949
          %v3213 = vunpack.c.l.b16 %v2950
          %v3214 = vunpack.c.l.b16 %v2951
          %v3215 = vunpack.c.l.b16 %v2952
          %v3216 = vunpack.c.l.b16 %v2953
          %v3217 = vunpack.c.l.b16 %v2954
          %v3218 = vunpack.c.l.b16 %v2955
          %v3219 = vunpack.c.l.b16 %v2956
          %v3220 = vunpack.c.l.b16 %v2957
          %v3221 = vunpack.c.l.b16 %v2958
          %v3222 = vunpack.c.l.b16 %v2959
          %v3223 = vunpack.c.l.b16 %v2960
          %v3224 = vunpack.c.l.b16 %v2961
          %v3225 = vunpack.c.l.b16 %v2962
          %v3226 = vunpack.c.l.b16 %v2963
          %v3227 = vunpack.c.l.b16 %v2964
          %v3228 = vunpack.c.l.b16 %v2965
          %v3229 = vunpack.c.l.b16 %v2966
          %v3230 = vunpack.c.l.b16 %v2967
          %v3231 = vunpack.c.l.b16 %v2968
          %v3232 = vunpack.c.l.b16 %v2969
          %v3233 = vunpack.c.l.b16 %v2970
          %v3234 = vunpack.c.l.b16 %v2971
          %v3235 = vunpack.c.l.b16 %v2972
          %v3236 = vunpack.c.l.b16 %v2973
          %v3237 = vunpack.c.l.b16 %v2974
          %v3238 = vunpack.c.l.b16 %v2975
          %v3239 = vunpack.c.l.b16 %v2976
          %v3240 = vunpack.c.l.b16 %v2977
          %v3241 = vunpack.c.l.b16 %v2978
          %v3242 = vunpack.c.l.b16 %v2979
          %v3243 = vunpack.c.l.b16 %v2980
          %v3244 = vunpack.c.l.b16 %v2981
          %v3245 = vunpack.c.l.b16 %v2982
          %v3246 = vunpack.c.l.b16 %v2983
          %v3247 = vunpack.c.l.b16 %v2984
          %v3248 = vunpack.c.l.b16 %v2985
          %v3249 = vunpack.c.l.b16 %v2986
          %v3250 = vunpack.c.l.b16 %v2987
          %v3251 = vunpack.c.l.b16 %v2988
          %v3252 = vunpack.c.l.b16 %v2989
          %v3253 = vunpack.c.l.b16 %v2990
          %v3254 = vunpack.c.l.b16 %v2991
          %v3255 = vunpack.c.l.b16 %v2992
          %v3256 = vunpack.c.l.b16 %v2993
          %v3257 = vunpack.c.l.b16 %v2994
          %v3258 = vunpack.c.l.b16 %v2995
          %v3259 = vunpack.c.l.b16 %v2996
          %v3260 = vunpack.c.l.b16 %v2997
          %v3261 = vunpack.c.l.b16 %v2998
          %v3262 = vunpack.c.l.b16 %v2999
          %v3263 = vunpack.c.l.b16 %v3000
          %v3264 = vunpack.c.l.b16 %v3001
          %v3265 = vunpack.c.l.b16 %v3002
          %v3266 = vunpack.c.l.b16 %v3003
          %v3267 = vunpack.c.l.b16 %v3004
          %v3268 = vunpack.c.l.b16 %v3005
          %v3269 = vunpack.c.l.b16 %v3006
          %v3270 = vunpack.c.l.b16 %v3007
          %v3271 = vunpack.c.l.b16 %v3008
          %v3272 = vunpack.c.l.b16 %v3009
          %v3273 = vpack.c.b16 %v3146, %v3145
          %v3274 = vpack.c.b16 %v3148, %v3147
          %v3275 = vpack.c.b16 %v3150, %v3149
          %v3276 = vpack.c.b16 %v3152, %v3151
          %v3277 = vpack.c.b16 %v3154, %v3153
          %v3278 = vpack.c.b16 %v3156, %v3155
          %v3279 = vpack.c.b16 %v3158, %v3157
          %v3280 = vpack.c.b16 %v3160, %v3159
          %v3281 = vpack.c.b16 %v3162, %v3161
          %v3282 = vpack.c.b16 %v3164, %v3163
          %v3283 = vpack.c.b16 %v3166, %v3165
          %v3284 = vpack.c.b16 %v3168, %v3167
          %v3285 = vpack.c.b16 %v3170, %v3169
          %v3286 = vpack.c.b16 %v3172, %v3171
          %v3287 = vpack.c.b16 %v3174, %v3173
          %v3288 = vpack.c.b16 %v3176, %v3175
          %v3289 = vpack.c.b16 %v3178, %v3177
          %v3290 = vpack.c.b16 %v3180, %v3179
          %v3291 = vpack.c.b16 %v3182, %v3181
          %v3292 = vpack.c.b16 %v3184, %v3183
          %v3293 = vpack.c.b16 %v3186, %v3185
          %v3294 = vpack.c.b16 %v3188, %v3187
          %v3295 = vpack.c.b16 %v3190, %v3189
          %v3296 = vpack.c.b16 %v3192, %v3191
          %v3297 = vpack.c.b16 %v3194, %v3193
          %v3298 = vpack.c.b16 %v3196, %v3195
          %v3299 = vpack.c.b16 %v3198, %v3197
          %v3300 = vpack.c.b16 %v3200, %v3199
          %v3301 = vpack.c.b16 %v3202, %v3201
          %v3302 = vpack.c.b16 %v3204, %v3203
          %v3303 = vpack.c.b16 %v3206, %v3205
          %v3304 = vpack.c.b16 %v3208, %v3207
          %v3305 = vpack.c.b16 %v3210, %v3209
          %v3306 = vpack.c.b16 %v3212, %v3211
          %v3307 = vpack.c.b16 %v3214, %v3213
          %v3308 = vpack.c.b16 %v3216, %v3215
          %v3309 = vpack.c.b16 %v3218, %v3217
          %v3310 = vpack.c.b16 %v3220, %v3219
          %v3311 = vpack.c.b16 %v3222, %v3221
          %v3312 = vpack.c.b16 %v3224, %v3223
          %v3313 = vpack.c.b16 %v3226, %v3225
          %v3314 = vpack.c.b16 %v3228, %v3227
          %v3315 = vpack.c.b16 %v3230, %v3229
          %v3316 = vpack.c.b16 %v3232, %v3231
          %v3317 = vpack.c.b16 %v3234, %v3233
          %v3318 = vpack.c.b16 %v3236, %v3235
          %v3319 = vpack.c.b16 %v3238, %v3237
          %v3320 = vpack.c.b16 %v3240, %v3239
          %v3321 = vpack.c.b16 %v3242, %v3241
          %v3322 = vpack.c.b16 %v3244, %v3243
          %v3323 = vpack.c.b16 %v3246, %v3245
          %v3324 = vpack.c.b16 %v3248, %v3247
          %v3325 = vpack.c.b16 %v3250, %v3249
          %v3326 = vpack.c.b16 %v3252, %v3251
          %v3327 = vpack.c.b16 %v3254, %v3253
          %v3328 = vpack.c.b16 %v3256, %v3255
          %v3329 = vpack.c.b16 %v3258, %v3257
          %v3330 = vpack.c.b16 %v3260, %v3259
          %v3331 = vpack.c.b16 %v3262, %v3261
          %v3332 = vpack.c.b16 %v3264, %v3263
          %v3333 = vpack.c.b16 %v3266, %v3265
          %v3334 = vpack.c.b16 %v3268, %v3267
          %v3335 = vpack.c.b16 %v3270, %v3269
          %v3336 = vpack.c.b16 %v3272, %v3271
          %3401 = vmatprep.subr.bf16.mxu0 0
          %3402 = vmatpush1.bf16.msra.mxu0 %v3273
          %3403 = vmatprep.subr.bf16.mxu0 0
          %3404 = vmatpush1.bf16.msra.mxu0 %v3274
          %3405 = vmatprep.subr.bf16.mxu0 0
          %3406 = vmatpush1.bf16.msra.mxu0 %v3275
          %3407 = vmatprep.subr.bf16.mxu0 0
          %3408 = vmatpush1.bf16.msra.mxu0 %v3276
          %3409 = vmatprep.subr.bf16.mxu0 0
          %3410 = vmatpush1.bf16.msra.mxu0 %v3277
          %3411 = vmatprep.subr.bf16.mxu0 0
          %3412 = vmatpush1.bf16.msra.mxu0 %v3278
          %3413 = vmatprep.subr.bf16.mxu0 0
          %3414 = vmatpush1.bf16.msra.mxu0 %v3279
          %3415 = vmatprep.subr.bf16.mxu0 0
          %3416 = vmatpush1.bf16.msra.mxu0 %v3280
          %3417 = vmatprep.subr.bf16.mxu0 0
          %3418 = vmatpush1.bf16.msra.mxu0 %v3281
          %3419 = vmatprep.subr.bf16.mxu0 0
          %3420 = vmatpush1.bf16.msra.mxu0 %v3282
          %3421 = vmatprep.subr.bf16.mxu0 0
          %3422 = vmatpush1.bf16.msra.mxu0 %v3283
          %3423 = vmatprep.subr.bf16.mxu0 0
          %3424 = vmatpush1.bf16.msra.mxu0 %v3284
          %3425 = vmatprep.subr.bf16.mxu0 0
          %3426 = vmatpush1.bf16.msra.mxu0 %v3285
          %3427 = vmatprep.subr.bf16.mxu0 0
          %3428 = vmatpush1.bf16.msra.mxu0 %v3286
          %3429 = vmatprep.subr.bf16.mxu0 0
          %3430 = vmatpush1.bf16.msra.mxu0 %v3287
          %3431 = vmatprep.subr.bf16.mxu0 0
          %3432 = vmatpush1.bf16.msra.mxu0 %v3288
          %3433 = vmatprep.mubr.bf16.mxu0 %v2875
          %3434 = vmatmul.mubr.bf16.gmra.mrb[0].mxu0 %v2874
          %v3435 = vpop.f32.mrb[0].mxu0
          %v3436 = vadd.f32 %v3015, %v3435
          %v3437 = vpop.f32.mrb[0].mxu0
          %v3438 = vpop.f32.mrb[0].mxu0
          %v3439 = vpop.f32.mrb[0].mxu0
          %3440 = vdwg.mxu0
          %3441 = vmatprep.subr.bf16.mxu0 0
          %3442 = vmatpush1.bf16.msra.mxu0 %v3289
          %3443 = vmatprep.subr.bf16.mxu0 0
          %3444 = vmatpush1.bf16.msra.mxu0 %v3290
          %3445 = vmatprep.subr.bf16.mxu0 0
          %3446 = vmatpush1.bf16.msra.mxu0 %v3291
          %3447 = vmatprep.subr.bf16.mxu0 0
          %3448 = vmatpush1.bf16.msra.mxu0 %v3292
          %3449 = vmatprep.subr.bf16.mxu0 0
          %3450 = vmatpush1.bf16.msra.mxu0 %v3293
          %3451 = vmatprep.subr.bf16.mxu0 0
          %3452 = vmatpush1.bf16.msra.mxu0 %v3294
          %3453 = vmatprep.subr.bf16.mxu0 0
          %3454 = vmatpush1.bf16.msra.mxu0 %v3295
          %3455 = vmatprep.subr.bf16.mxu0 0
          %3456 = vmatpush1.bf16.msra.mxu0 %v3296
          %3457 = vmatprep.subr.bf16.mxu0 0
          %3458 = vmatpush1.bf16.msra.mxu0 %v3297
          %3459 = vmatprep.subr.bf16.mxu0 0
          %3460 = vmatpush1.bf16.msra.mxu0 %v3298
          %3461 = vmatprep.subr.bf16.mxu0 0
          %3462 = vmatpush1.bf16.msra.mxu0 %v3299
          %3463 = vmatprep.subr.bf16.mxu0 0
          %3464 = vmatpush1.bf16.msra.mxu0 %v3300
          %3465 = vmatprep.subr.bf16.mxu0 0
          %3466 = vmatpush1.bf16.msra.mxu0 %v3301
          %3467 = vmatprep.subr.bf16.mxu0 0
          %3468 = vmatpush1.bf16.msra.mxu0 %v3302
          %3469 = vmatprep.subr.bf16.mxu0 0
          %3470 = vmatpush1.bf16.msra.mxu0 %v3303
          %3471 = vmatprep.subr.bf16.mxu0 0
          %3472 = vmatpush1.bf16.msra.mxu0 %v3304
          %3473 = vmatprep.mubr.bf16.mxu0 %v2877
          %3474 = vmatmul.mubr.bf16.gmra.mrb[0].mxu0 %v2876
          %v3475 = vpop.f32.mrb[0].mxu0
          %v3476 = vadd.f32 %v3436, %v3475
          %v3477 = vpop.f32.mrb[0].mxu0
          %v3478 = vpop.f32.mrb[0].mxu0
          %v3479 = vpop.f32.mrb[0].mxu0
          %3480 = vdwg.mxu0
          %3481 = vmatprep.subr.bf16.mxu0 0
          %3482 = vmatpush1.bf16.msra.mxu0 %v3305
          %3483 = vmatprep.subr.bf16.mxu0 0
          %3484 = vmatpush1.bf16.msra.mxu0 %v3306
          %3485 = vmatprep.subr.bf16.mxu0 0
          %3486 = vmatpush1.bf16.msra.mxu0 %v3307
          %3487 = vmatprep.subr.bf16.mxu0 0
          %3488 = vmatpush1.bf16.msra.mxu0 %v3308
          %3489 = vmatprep.subr.bf16.mxu0 0
          %3490 = vmatpush1.bf16.msra.mxu0 %v3309
          %3491 = vmatprep.subr.bf16.mxu0 0
          %3492 = vmatpush1.bf16.msra.mxu0 %v3310
          %3493 = vmatprep.subr.bf16.mxu0 0
          %3494 = vmatpush1.bf16.msra.mxu0 %v3311
          %3495 = vmatprep.subr.bf16.mxu0 0
          %3496 = vmatpush1.bf16.msra.mxu0 %v3312
          %3497 = vmatprep.subr.bf16.mxu0 0
          %3498 = vmatpush1.bf16.msra.mxu0 %v3313
          %3499 = vmatprep.subr.bf16.mxu0 0
          %3500 = vmatpush1.bf16.msra.mxu0 %v3314
          %3501 = vmatprep.subr.bf16.mxu0 0
          %3502 = vmatpush1.bf16.msra.mxu0 %v3315
          %3503 = vmatprep.subr.bf16.mxu0 0
          %3504 = vmatpush1.bf16.msra.mxu0 %v3316
          %3505 = vmatprep.subr.bf16.mxu0 0
          %3506 = vmatpush1.bf16.msra.mxu0 %v3317
          %3507 = vmatprep.subr.bf16.mxu0 0
          %3508 = vmatpush1.bf16.msra.mxu0 %v3318
          %3509 = vmatprep.subr.bf16.mxu0 0
          %3510 = vmatpush1.bf16.msra.mxu0 %v3319
          %3511 = vmatprep.subr.bf16.mxu0 0
          %3512 = vmatpush1.bf16.msra.mxu0 %v3320
          %3513 = vmatprep.mubr.bf16.mxu0 %v2879
          %3514 = vmatmul.mubr.bf16.gmra.mrb[0].mxu0 %v2878
          %v3515 = vpop.f32.mrb[0].mxu0
          %v3516 = vadd.f32 %v3476, %v3515
          %v3517 = vpop.f32.mrb[0].mxu0
          %v3518 = vpop.f32.mrb[0].mxu0
          %v3519 = vpop.f32.mrb[0].mxu0
          %3520 = vdwg.mxu0
          %3521 = vmatprep.subr.bf16.mxu0 0
          %3522 = vmatpush1.bf16.msra.mxu0 %v3321
          %3523 = vmatprep.subr.bf16.mxu0 0
          %3524 = vmatpush1.bf16.msra.mxu0 %v3322
          %3525 = vmatprep.subr.bf16.mxu0 0
          %3526 = vmatpush1.bf16.msra.mxu0 %v3323
          %3527 = vmatprep.subr.bf16.mxu0 0
          %3528 = vmatpush1.bf16.msra.mxu0 %v3324
          %3529 = vmatprep.subr.bf16.mxu0 0
          %3530 = vmatpush1.bf16.msra.mxu0 %v3325
          %3531 = vmatprep.subr.bf16.mxu0 0
          %3532 = vmatpush1.bf16.msra.mxu0 %v3326
          %3533 = vmatprep.subr.bf16.mxu0 0
          %3534 = vmatpush1.bf16.msra.mxu0 %v3327
          %3535 = vmatprep.subr.bf16.mxu0 0
          %3536 = vmatpush1.bf16.msra.mxu0 %v3328
          %3537 = vmatprep.subr.bf16.mxu0 0
          %3538 = vmatpush1.bf16.msra.mxu0 %v3329
          %3539 = vmatprep.subr.bf16.mxu0 0
          %3540 = vmatpush1.bf16.msra.mxu0 %v3330
          %3541 = vmatprep.subr.bf16.mxu0 0
          %3542 = vmatpush1.bf16.msra.mxu0 %v3331
          %3543 = vmatprep.subr.bf16.mxu0 0
          %3544 = vmatpush1.bf16.msra.mxu0 %v3332
          %3545 = vmatprep.subr.bf16.mxu0 0
          %3546 = vmatpush1.bf16.msra.mxu0 %v3333
          %3547 = vmatprep.subr.bf16.mxu0 0
          %3548 = vmatpush1.bf16.msra.mxu0 %v3334
          %3549 = vmatprep.subr.bf16.mxu0 0
          %3550 = vmatpush1.bf16.msra.mxu0 %v3335
          %3551 = vmatprep.subr.bf16.mxu0 0
          %3552 = vmatpush1.bf16.msra.mxu0 %v3336
          %3553 = vmatprep.mubr.bf16.mxu0 %v2881
          %3554 = vmatmul.mubr.bf16.gmra.mrb[0].mxu0 %v2880
          %v3555 = vpop.f32.mrb[0].mxu0
          %v3556 = vadd.f32 %v3516, %v3555
          %v3557 = vpop.f32.mrb[0].mxu0
          %v3558 = vpop.f32.mrb[0].mxu0
          %v3559 = vpop.f32.mrb[0].mxu0
          %3560 = vdwg.mxu0
          %v3561 = vlaneseq
          %v3562 = vand.u32 %v3561, 127
          %vm3563 = vcmp.lt.s32.totalorder %v3562, 6
          %v3564 = vsel %vm3563, %v3556, 0.0
          %vm3565 = vcmask 1041408
          %v3566 = vsel %vm3565, %v3564, 0.0
          %3567 = vadd.xlane.f32.xlu0 %v3566
          %v3568 = vpop.xlane.xlu0 %3567
          %vm3569 = vcmp.eq.s32.totalorder %v3562, 6
          %v3570 = vsel %vm3569, %v3556, 0.0
          %v3571 = vsel %vm3565, %v3570, 0.0
          %3572 = vadd.xlane.f32.xlu0 %v3571
          %v3573 = vpop.xlane.xlu0 %3572
          %v3574 = vadd.f32 %v3573, %v3556
          %v3575 = vmul.f32 %v3568, 0.16666667
          %v3576 = vsub.f32 %v3574, %v3575
          %3577 = vst [vmem:[#allocation3] sm:$0x3] %v3576
        $region48: #{dueling_dqn_forward.7} parent=39 // pred_fallthru
          _
        // Predicated region
        $region49: #{dueling_dqn_forward.7} parent=39 // pred_check
          %p3578 = pneg %p145
        $region50: #{dueling_dqn_forward.7} parent=39 // pred_check_branch
          %3580 = sbr.rel (%p3578) target = $region52
        $region51: #{dueling_dqn_forward.7} parent=39 // pred_region
          %s3582 = ssub.s32 32, 32
          %3583 = vsyncadd [#allocation4], %s3582
          %s3585 = sshll.u32 [#allocation3], 4
          %s3586 = int_to_ptr.vmem [resolvable:$true] %s3585
          %3588 = dma.vmem_to_hbm [thread:$0]  %s3586, 32, %s5, [#allocation4]
        $region52: #{dueling_dqn_forward.7} parent=39 // pred_fallthru
          _
        // Predicated region
        $region53: #{dueling_dqn_forward.7} parent=39 // pred_check
          %p3589 = pneg %p145
        $region54: #{dueling_dqn_forward.7} parent=39 // pred_check_branch
          %3591 = sbr.rel (%p3589) target = $region56
        $region55: #{dueling_dqn_forward.7} parent=39 // pred_region
          %3592 = dma.done [#allocation4], 32
        $region56: #{dueling_dqn_forward.7} parent=39 // pred_fallthru
          _
      $region40: #{dueling_dqn_forward.7} parent=5 // pred_fallthru
        _
      %p3593 = scmp.le.s32.totalorder 2, %s12
      // Predicated region
      $region57: #{dueling_dqn_forward.7} parent=5 // pred_check
        %p3594 = pneg %p3593
      $region58: #{dueling_dqn_forward.7} parent=5 // pred_check_branch
        %3596 = sbr.rel (%p3594) target = $region60
      $region59: #{dueling_dqn_forward.7} parent=5 // pred_region
        %s3597 = ssub.s32 %s12, 2
      $region60: #{dueling_dqn_forward.7} parent=5 // pred_fallthru
        _
    $region6: #{dueling_dqn_forward.7} parent=1 // loop_footer
      %s16 = sadd.s32 1, %s12
    $region7: #{dueling_dqn_forward.7} parent=1 // loop_footer_branch
      %11 = sbr.rel target = $region3
    $region8: #{dueling_dqn_forward.7} parent=1 // loop_exit
      _
    %3598 = vsyncpa [#allocation4], 1
    %s3599 = scalar_lea.sflag [#allocation4], 1
    %3600 = vsyncpa %s3599, 1

</llo_original>
